<compile_context>
chip_gen: v6e
topology: v6e:2x2x1
jax: 0.10.0
libtpu: 0.0.40
codegen_flags: <defaults>
</compile_context>

<pallas_src>
import functools

import jax
import jax.numpy as jnp
from jax import lax
from jax.experimental import pallas as pl
from jax.experimental.pallas import tpu as pltpu


OUT_PAD = 128  # lane-dense logits width; sliced back to class_count in wrapper


def _round_up(x, m):
    return ((x + m - 1) // m) * m


# ----------------------------- Pallas kernel --------------------------------

def snli_fused_kernel(
    x_ref,      # (TC*M, Ep)     bf16  time-major chunk of stacked embeddings
    len_ref,    # (M, 1)         int32 lengths (0 for padded rows)
    wih_ref,    # (Ep, 4H)       bf16
    whh_ref,    # (H, 4H)        bf16
    bl_ref,     # (1, 4H)        f32   (b_ih + b_hh)
    w1_ref,     # (4H, C)        bf16
    b1_ref,     # (1, C)         f32
    w2_ref,     # (C, C)         bf16
    b2_ref,     # (1, C)         f32
    w3_ref,     # (C, OUT_PAD)   bf16  (zero-padded columns)
    b3_ref,     # (1, OUT_PAD)   f32
    out_ref,    # (M//2, OUT_PAD) f32
    g_ref,      # scratch (2*TC*M, 4H) bf16  -- 2-slot projected-gates buffer
    h_ref,      # scratch (M, H) bf16|f32    -- carried hidden state
    c_ref,      # scratch (M, H) f32         -- carried cell state
    *, tc, m, hidden, bf16_state,
):
    H = hidden
    M = m
    TC = tc
    CH = TC * M                      # rows per time chunk

    i = pl.program_id(0)
    n = pl.num_programs(0)           # n_chunks + 1 (pipeline-skewed grid)

    # ---- init carried state on the first iteration -------------------------
    @pl.when(i == 0)
    def _():
        h_ref[...] = jnp.zeros_like(h_ref)
        c_ref[...] = jnp.zeros_like(c_ref)

    # ---- produce: hoisted input projection for chunk i -> slot i % 2 -------
    # Skipped on the final (ghost) iteration.
    @pl.when(i < n - 1)
    def _():
        goff = pl.multiple_of((i % 2) * CH, CH)
        g_ref[pl.ds(goff, CH), :] = jnp.dot(
            x_ref[...], wih_ref[...],
            preferred_element_type=jnp.float32).astype(jnp.bfloat16)

    # ---- consume: recurrence over chunk i-1 from slot (i-1) % 2 ------------
    @pl.when(i > 0)
    def _():
        lengths = len_ref[...]                                # (M, 1) int32
        bias = jnp.broadcast_to(bl_ref[...], (M, 4 * H))      # hoisted bcast
        t0 = (i - 1) * TC
        roff_base = ((i + 1) % 2) * CH                        # == ((i-1)%2)*CH

        def step(t, carry):
            h, c = carry
            row = pl.multiple_of(roff_base + t * M, M)
            g_t = g_ref[pl.ds(row, M), :].astype(jnp.float32)  # (M, 4H)
            h_mm = h if bf16_state else h.astype(jnp.bfloat16)
            gates = g_t + bias + jnp.dot(h_mm, whh_ref[...],
                                         preferred_element_type=jnp.float32)
            if bf16_state:
                # bf16 EUP nonlinearities (v6e/v7x); f32 c accumulation.
                gb = gates.astype(jnp.bfloat16)
                i_g = jax.nn.sigmoid(gb[:, 0 * H:1 * H])
                f_g = jax.nn.sigmoid(gb[:, 1 * H:2 * H])
                g_g = jnp.tanh(gb[:, 2 * H:3 * H])
                o_g = jax.nn.sigmoid(gb[:, 3 * H:4 * H])
                c_new = f_g * c + i_g * g_g                   # promotes to f32
                h_new = o_g * jnp.tanh(c_new.astype(jnp.bfloat16))   # bf16 h
            else:
                i_g = jax.nn.sigmoid(gates[:, 0 * H:1 * H])
                f_g = jax.nn.sigmoid(gates[:, 1 * H:2 * H])
                g_g = jnp.tanh(gates[:, 2 * H:3 * H])
                o_g = jax.nn.sigmoid(gates[:, 3 * H:4 * H])
                c_new = f_g * c + i_g * g_g
                h_new = o_g * jnp.tanh(c_new)
            active = (t0 + t) < lengths                       # packed-seq freeze
            h = jnp.where(active, h_new, h)
            c = jnp.where(active, c_new, c)
            return h, c

        unroll = TC if TC <= 8 else 8
        h, c = lax.fori_loop(0, TC, step, (h_ref[...], c_ref[...]),
                             unroll=unroll)
        h_ref[...] = h
        c_ref[...] = c

    # ---- fused classifier head on the final iteration ----------------------
    @pl.when(i == n - 1)
    def _():
        mh = M // 2
        hf = h_ref[...].astype(jnp.float32)
        u = hf[0:mh, :]                          # premise finals
        v = hf[mh:M, :]                          # hypothesis finals
        u_bf = u.astype(jnp.bfloat16)
        v_bf = v.astype(jnp.bfloat16)
        d_bf = jnp.abs(u - v).astype(jnp.bfloat16)
        p_bf = (u * v).astype(jnp.bfloat16)
        # split-W1 accumulation avoids materializing the (B, 4H) feature tile
        h1 = (jnp.dot(u_bf, w1_ref[0 * H:1 * H, :], preferred_element_type=jnp.float32)
              + jnp.dot(v_bf, w1_ref[1 * H:2 * H, :], preferred_element_type=jnp.float32)
              + jnp.dot(d_bf, w1_ref[2 * H:3 * H, :], preferred_element_type=jnp.float32)
              + jnp.dot(p_bf, w1_ref[3 * H:4 * H, :], preferred_element_type=jnp.float32)
              + b1_ref[...])
        h2 = jnp.dot(h1.astype(jnp.bfloat16), w2_ref[...],
                     preferred_element_type=jnp.float32) + b2_ref[...]
        out_ref[...] = (jnp.dot(h2.astype(jnp.bfloat16), w3_ref[...],
                                preferred_element_type=jnp.float32)
                        + b3_ref[...])


# ------------------------------- wrapper -------------------------------------

def _full_spec(shape):
    n = len(shape)
    return pl.BlockSpec(shape, lambda i, _n=n: (0,) * _n)


def snli_forward(params, premise_batch, hypothesis_batch, *, time_chunk=16):
    """premise_batch / hypothesis_batch: (embeddings (B,T,E) f32, lengths (B,))."""
    p_emb, p_len = premise_batch
    h_emb, h_len = hypothesis_batch
    B, T, E = p_emb.shape
    H = params["w_hh"].shape[0]
    C = params["w1"].shape[1]
    K = params["w3"].shape[1]

    mh = max(8, _round_up(B, 8))        # premise rows padded to a sublane multiple
    M = 2 * mh                          # premise + hypothesis stacked
    TC = min(time_chunk, max(T, 1))
    T_pad = _round_up(T, TC)
    n_chunks = T_pad // TC
    n_iters = n_chunks + 1              # +1 ghost iteration for the pipeline skew
    Ep = _round_up(E, 128)              # lane-dense embedding dim

    # stack premise (rows [0,B)) and hypothesis (rows [mh, mh+B));
    # pad batch, E, and time (incl. one ghost chunk so the skewed x index is valid)
    x = jnp.zeros((M, n_iters * TC, Ep), jnp.float32)
    x = x.at[0:B, 0:T, 0:E].set(p_emb).at[mh:mh + B, 0:T, 0:E].set(h_emb)
    lengths = jnp.zeros((M, 1), jnp.int32)
    lengths = lengths.at[0:B, 0].set(p_len.astype(jnp.int32))
    lengths = lengths.at[mh:mh + B, 0].set(h_len.astype(jnp.int32))

    # time-major, flattened so row = t*M + m; bf16 matmul operand
    x2d = jnp.transpose(x, (1, 0, 2)).reshape(n_iters * TC * M, Ep).astype(jnp.bfloat16)

    # bf16 weights for the MXU; W_ih rows padded with zeros to Ep, logits padded lane-dense
    wih = jnp.zeros((Ep, 4 * H), jnp.bfloat16).at[0:E, :].set(
        params["w_ih"].astype(jnp.bfloat16))
    whh = params["w_hh"].astype(jnp.bfloat16)
    w1 = params["w1"].astype(jnp.bfloat16)
    w2 = params["w2"].astype(jnp.bfloat16)
    w3p = jnp.zeros((C, OUT_PAD), jnp.bfloat16).at[:, 0:K].set(
        params["w3"].astype(jnp.bfloat16))
    b3p = jnp.zeros((1, OUT_PAD), jnp.float32).at[:, 0:K].set(params["b3"])

    # bf16 gates / bf16 h carry only where the VPU/EUP are bf16-capable (v6e/v7x)
    dev_kind = jax.devices()[0].device_kind.lower()
    bf16_state = "v5" not in dev_kind

    kernel = functools.partial(snli_fused_kernel, tc=TC, m=M, hidden=H,
                               bf16_state=bf16_state)

    # Raise the scoped VMEM limit only when the estimated footprint needs it
    # (2-slot bf16 g scratch + double-buffered x chunk + weights + headroom).
    g_bytes = 2 * TC * M * 4 * H * 2
    x_bytes = 2 * TC * M * Ep * 2
    w_bytes = ((Ep + H) * 4 * H + 4 * H * C + C * C + C * OUT_PAD) * 2
    need = g_bytes + x_bytes + 2 * w_bytes + (4 << 20)
    vmem_limit = None if need <= (30 << 20) else min(need + (8 << 20), 100 << 20)

    logits_pad = pl.pallas_call(
        kernel,
        out_shape=jax.ShapeDtypeStruct((mh, OUT_PAD), jnp.float32),
        grid=(n_iters,),
        in_specs=[
            pl.BlockSpec((TC * M, Ep), lambda i: (i, 0)),   # streamed x chunk
            _full_spec((M, 1)),
            _full_spec((Ep, 4 * H)),
            _full_spec((H, 4 * H)),
            _full_spec((1, 4 * H)),
            _full_spec((4 * H, C)),
            _full_spec((1, C)),
            _full_spec((C, C)),
            _full_spec((1, C)),
            _full_spec((C, OUT_PAD)),
            _full_spec((1, OUT_PAD)),
        ],
        out_specs=_full_spec((mh, OUT_PAD)),
        scratch_shapes=[
            pltpu.VMEM((2 * TC * M, 4 * H), jnp.bfloat16),              # g (2 slots)
            pltpu.VMEM((M, H), jnp.bfloat16 if bf16_state else jnp.float32),  # h
            pltpu.VMEM((M, H), jnp.float32),                            # c
        ],
        compiler_params=pltpu.CompilerParams(
            dimension_semantics=("arbitrary",),
            vmem_limit_bytes=vmem_limit),
    )(x2d, lengths, wih, whh, params["b_lstm"], w1, params["b1"],
      w2, params["b2"], w3p, b3p)

    return logits_pad[0:B, 0:K]


# --------------------------- pure-JAX reference -------------------------------

def snli_forward_ref(params, premise_batch, hypothesis_batch):
    def encode(x, lengths):
        B, T, E = x.shape
        H = params["w_hh"].shape[0]

        def step(carry, xt_t):
            h, c = carry
            x_t, t = xt_t
            gates = x_t @ params["w_ih"] + h @ params["w_hh"] + params["b_lstm"]
            i_g = jax.nn.sigmoid(gates[:, 0 * H:1 * H])
            f_g = jax.nn.sigmoid(gates[:, 1 * H:2 * H])
            g_g = jnp.tanh(gates[:, 2 * H:3 * H])
            o_g = jax.nn.sigmoid(gates[:, 3 * H:4 * H])
            c_new = f_g * c + i_g * g_g
            h_new = o_g * jnp.tanh(c_new)
            m = (t < lengths.reshape(B, 1))
            return (jnp.where(m, h_new, h), jnp.where(m, c_new, c)), None

        xs = jnp.transpose(x, (1, 0, 2))
        (h, _), _ = lax.scan(step, (jnp.zeros((B, H)), jnp.zeros((B, H))),
                             (xs, jnp.arange(T)))
        return h

    u = encode(*premise_batch)
    v = encode(*hypothesis_batch)
    feats = jnp.concatenate([u, v, jnp.abs(u - v), u * v], axis=1)
    h1 = feats @ params["w1"] + params["b1"]
    h2 = h1 @ params["w2"] + params["b2"]
    return h2 @ params["w3"] + params["b3"]


# ---------------------------------- main --------------------------------------

if __name__ == "__main__":
    B, T, E = 2, 8, 32          # batch, seq len, embedding dim (stand-in for 300)
    H = 128                     # lstm_dim (stand-in for 512)
    C = 128                     # connected_dim
    K = 3                       # class_count

    key = jax.random.PRNGKey(0)
    ks = jax.random.split(key, 12)
    s = 0.1
    params = {
        "w_ih":   s * jax.random.normal(ks[0], (E, 4 * H), jnp.float32),
        "w_hh":   s * jax.random.normal(ks[1], (H, 4 * H), jnp.float32),
        "b_lstm": s * jax.random.normal(ks[2], (1, 4 * H), jnp.float32),  # b_ih + b_hh
        "w1":     s * jax.random.normal(ks[3], (4 * H, C), jnp.float32),
        "b1":     s * jax.random.normal(ks[4], (1, C), jnp.float32),
        "w2":     s * jax.random.normal(ks[5], (C, C), jnp.float32),
        "b2":     s * jax.random.normal(ks[6], (1, C), jnp.float32),
        "w3":     s * jax.random.normal(ks[7], (C, K), jnp.float32),
        "b3":     s * jax.random.normal(ks[8], (1, K), jnp.float32),
    }

    premise = jax.random.normal(ks[9], (B, T, E), jnp.float32)
    hypothesis = jax.random.normal(ks[10], (B, T, E), jnp.float32)
    p_len = jnp.array([8, 5], jnp.int32)
    h_len = jnp.array([6, 8], jnp.int32)

    logits = snli_forward(params, (premise, p_len), (hypothesis, h_len))
    logits = jax.block_until_ready(logits)

    ref = snli_forward_ref(params, (premise, p_len), (hypothesis, h_len))
    assert logits.shape == (B, K)
    # bf16 MXU operands + bf16 gate nonlinearities / h carry (v6e/v7x) with f32
    # accumulation -> looser tolerance vs the all-f32 reference.
    assert jnp.allclose(logits, ref, rtol=1e-1, atol=1e-1), (logits, ref)

    print("KERNEL_OK")
</pallas_src>

<mosaic_0001>
module attributes {stable_mosaic.version = 11 : i64} {
  func.func @snli_fused_kernel(%arg0: i32, %arg1: memref<128x128xbf16, #tpu.memory_space<vmem>>, %arg2: memref<16x1xi32, #tpu.memory_space<vmem>>, %arg3: memref<128x512xbf16, #tpu.memory_space<vmem>>, %arg4: memref<128x512xbf16, #tpu.memory_space<vmem>>, %arg5: memref<1x512xf32, #tpu.memory_space<vmem>>, %arg6: memref<512x128xbf16, #tpu.memory_space<vmem>>, %arg7: memref<1x128xf32, #tpu.memory_space<vmem>>, %arg8: memref<128x128xbf16, #tpu.memory_space<vmem>>, %arg9: memref<1x128xf32, #tpu.memory_space<vmem>>, %arg10: memref<128x128xbf16, #tpu.memory_space<vmem>>, %arg11: memref<1x128xf32, #tpu.memory_space<vmem>>, %arg12: memref<8x128xf32, #tpu.memory_space<vmem>>, %arg13: memref<256x512xbf16, #tpu.memory_space<vmem>>, %arg14: memref<16x128xbf16, #tpu.memory_space<vmem>>, %arg15: memref<16x128xf32, #tpu.memory_space<vmem>>) attributes {dimension_semantics = [#tpu.dimension_semantics<arbitrary>], iteration_bounds = array<i64: 2>, scalar_prefetch = 0 : i64, scratch_operands = 3 : i64, tpu.core_type = #tpu.core_type<tc>, window_params = [{transform_indices = @transform_0, window_bounds = array<i64: 128, 128>}, {pipeline_mode = #tpu.pipeline_mode<synchronous>, transform_indices = @transform_1, window_bounds = array<i64: 16, 1>}, {pipeline_mode = #tpu.pipeline_mode<synchronous>, transform_indices = @transform_2, window_bounds = array<i64: 128, 512>}, {pipeline_mode = #tpu.pipeline_mode<synchronous>, transform_indices = @transform_3, window_bounds = array<i64: 128, 512>}, {pipeline_mode = #tpu.pipeline_mode<synchronous>, transform_indices = @transform_4, window_bounds = array<i64: 1, 512>}, {pipeline_mode = #tpu.pipeline_mode<synchronous>, transform_indices = @transform_5, window_bounds = array<i64: 512, 128>}, {pipeline_mode = #tpu.pipeline_mode<synchronous>, transform_indices = @transform_6, window_bounds = array<i64: 1, 128>}, {pipeline_mode = #tpu.pipeline_mode<synchronous>, transform_indices = @transform_7, window_bounds = array<i64: 128, 128>}, {pipeline_mode = #tpu.pipeline_mode<synchronous>, transform_indices = @transform_8, window_bounds = array<i64: 1, 128>}, {pipeline_mode = #tpu.pipeline_mode<synchronous>, transform_indices = @transform_9, window_bounds = array<i64: 128, 128>}, {pipeline_mode = #tpu.pipeline_mode<synchronous>, transform_indices = @transform_10, window_bounds = array<i64: 1, 128>}, {pipeline_mode = #tpu.pipeline_mode<synchronous>, transform_indices = @transform_11, window_bounds = array<i64: 8, 128>}]} {
    %c0_i32 = arith.constant 0 : i32
    %0 = arith.cmpi eq, %arg0, %c0_i32 : i32
    %1 = arith.extui %0 : i1 to i32
    %c0_i32_0 = arith.constant 0 : i32
    %2 = arith.cmpi ne, %1, %c0_i32_0 : i32
    scf.if %2 {
      %cst = arith.constant 0.000000e+00 : bf16
      %12 = vector.broadcast %cst : bf16 to vector<16x128xbf16>
      %c0 = arith.constant 0 : index
      %c0_6 = arith.constant 0 : index
      %13 = vector.load %arg14[%c0, %c0_6] : memref<16x128xbf16, #tpu.memory_space<vmem>>, vector<16x128xbf16>
      tpu.vector_store %arg14[%c0, %c0_6], %12 {strides = array<i32>} : memref<16x128xbf16, #tpu.memory_space<vmem>>, vector<16x128xbf16>,
      %cst_7 = arith.constant 0.000000e+00 : f32
      %14 = vector.broadcast %cst_7 : f32 to vector<16x128xf32>
      %c0_8 = arith.constant 0 : index
      %c0_9 = arith.constant 0 : index
      %15 = vector.load %arg15[%c0_8, %c0_9] : memref<16x128xf32, #tpu.memory_space<vmem>>, vector<16x128xf32>
      tpu.vector_store %arg15[%c0_8, %c0_9], %14 {strides = array<i32>} : memref<16x128xf32, #tpu.memory_space<vmem>>, vector<16x128xf32>,
    } else {
    }
    %c1_i32 = arith.constant 1 : i32
    %3 = arith.cmpi slt, %arg0, %c1_i32 : i32
    %4 = arith.extui %3 : i1 to i32
    %c0_i32_1 = arith.constant 0 : i32
    %5 = arith.cmpi ne, %4, %c0_i32_1 : i32
    scf.if %5 {
      %c2_i32 = arith.constant 2 : i32
      %c0_i32_6 = arith.constant 0 : i32
      %12 = arith.cmpi eq, %c2_i32, %c0_i32_6 : i32
      %c1_i32_7 = arith.constant 1 : i32
      %13 = arith.select %12, %c1_i32_7, %c2_i32 : i32
      %14 = arith.remsi %arg0, %13 : i32
      %c0_i32_8 = arith.constant 0 : i32
      %15 = arith.cmpi ne, %14, %c0_i32_8 : i32
      %c0_i32_9 = arith.constant 0 : i32
      %16 = arith.cmpi slt, %14, %c0_i32_9 : i32
      %c0_i32_10 = arith.constant 0 : i32
      %17 = arith.cmpi slt, %13, %c0_i32_10 : i32
      %18 = arith.xori %16, %17 : i1
      %19 = arith.andi %18, %15 : i1
      %20 = arith.addi %14, %13 : i32
      %21 = arith.select %19, %20, %14 : i32
      %c128_i32 = arith.constant 128 : i32
      %22 = arith.muli %21, %c128_i32 : i32
      %23 = tpu.assume_multiple %22, 128 : i32
      %c0 = arith.constant 0 : index
      %c0_11 = arith.constant 0 : index
      %24 = vector.load %arg1[%c0, %c0_11] : memref<128x128xbf16, #tpu.memory_space<vmem>>, vector<128x128xbf16>
      %c0_12 = arith.constant 0 : index
      %c0_13 = arith.constant 0 : index
      %25 = vector.load %arg3[%c0_12, %c0_13] : memref<128x512xbf16, #tpu.memory_space<vmem>>, vector<128x512xbf16>
      %cst = arith.constant dense<0.000000e+00> : vector<128x512xf32>
      %26 = tpu.matmul %24, %25, %cst {dimension_numbers = #tpu.dot_dimension_numbers<[1], [0], [0], [1], [0, 0, 1, 1], [], []>} : vector<128x128xbf16>, vector<128x512xbf16>, vector<128x512xf32> -> vector<128x512xf32>
      %27 = arith.truncf %26 : vector<128x512xf32> to vector<128x512xbf16>
      %28 = arith.index_cast %23 : i32 to index
      %c0_14 = arith.constant 0 : index
      %29 = vector.load %arg13[%28, %c0_14] : memref<256x512xbf16, #tpu.memory_space<vmem>>, vector<128x512xbf16>
      tpu.vector_store %arg13[%28, %c0_14], %27 {strides = array<i32>} : memref<256x512xbf16, #tpu.memory_space<vmem>>, vector<128x512xbf16>,
    } else {
    }
    %c0_i32_2 = arith.constant 0 : i32
    %6 = arith.cmpi sgt, %arg0, %c0_i32_2 : i32
    %7 = arith.extui %6 : i1 to i32
    %c0_i32_3 = arith.constant 0 : i32
    %8 = arith.cmpi ne, %7, %c0_i32_3 : i32
    scf.if %8 {
      %c0 = arith.constant 0 : index
      %c0_6 = arith.constant 0 : index
      %12 = vector.load %arg2[%c0, %c0_6] : memref<16x1xi32, #tpu.memory_space<vmem>>, vector<16x1xi32>
      %c0_7 = arith.constant 0 : index
      %c0_8 = arith.constant 0 : index
      %13 = vector.load %arg5[%c0_7, %c0_8] : memref<1x512xf32, #tpu.memory_space<vmem>>, vector<1x512xf32>
      %14 = vector.shape_cast %13 : vector<1x512xf32> to vector<1x512xf32>
      %15 = vector.broadcast %14 : vector<1x512xf32> to vector<16x512xf32>
      %c1_i32_9 = arith.constant 1 : i32
      %16 = arith.subi %arg0, %c1_i32_9 : i32
      %c8_i32 = arith.constant 8 : i32
      %17 = arith.muli %16, %c8_i32 : i32
      %c1_i32_10 = arith.constant 1 : i32
      %18 = arith.addi %arg0, %c1_i32_10 : i32
      %c2_i32 = arith.constant 2 : i32
      %c0_i32_11 = arith.constant 0 : i32
      %19 = arith.cmpi eq, %c2_i32, %c0_i32_11 : i32
      %c1_i32_12 = arith.constant 1 : i32
      %20 = arith.select %19, %c1_i32_12, %c2_i32 : i32
      %21 = arith.remsi %18, %20 : i32
      %c0_i32_13 = arith.constant 0 : i32
      %22 = arith.cmpi ne, %21, %c0_i32_13 : i32
      %c0_i32_14 = arith.constant 0 : i32
      %23 = arith.cmpi slt, %21, %c0_i32_14 : i32
      %c0_i32_15 = arith.constant 0 : i32
      %24 = arith.cmpi slt, %20, %c0_i32_15 : i32
      %25 = arith.xori %23, %24 : i1
      %26 = arith.andi %25, %22 : i1
      %27 = arith.addi %21, %20 : i32
      %28 = arith.select %26, %27, %21 : i32
      %c128_i32 = arith.constant 128 : i32
      %29 = arith.muli %28, %c128_i32 : i32
      %c0_16 = arith.constant 0 : index
      %c0_17 = arith.constant 0 : index
      %30 = vector.load %arg14[%c0_16, %c0_17] : memref<16x128xbf16, #tpu.memory_space<vmem>>, vector<16x128xbf16>
      %c0_18 = arith.constant 0 : index
      %c0_19 = arith.constant 0 : index
      %31 = vector.load %arg15[%c0_18, %c0_19] : memref<16x128xf32, #tpu.memory_space<vmem>>, vector<16x128xf32>
      %c0_i32_20 = arith.constant 0 : i32
      %c16_i32 = arith.constant 16 : i32
      %32 = arith.muli %c0_i32_20, %c16_i32 : i32
      %33 = arith.addi %29, %32 : i32
      %34 = tpu.assume_multiple %33, 16 : i32
      %35 = arith.index_cast %34 : i32 to index
      %c0_21 = arith.constant 0 : index
      %36 = vector.load %arg13[%35, %c0_21] : memref<256x512xbf16, #tpu.memory_space<vmem>>, vector<16x512xbf16>
      %37 = arith.extf %36 : vector<16x512xbf16> to vector<16x512xf32>
      %38 = arith.addf %37, %15 : vector<16x512xf32>
      %c0_22 = arith.constant 0 : index
      %c0_23 = arith.constant 0 : index
      %39 = vector.load %arg4[%c0_22, %c0_23] : memref<128x512xbf16, #tpu.memory_space<vmem>>, vector<128x512xbf16>
      %cst = arith.constant dense<0.000000e+00> : vector<16x512xf32>
      %40 = tpu.matmul %30, %39, %cst {dimension_numbers = #tpu.dot_dimension_numbers<[1], [0], [0], [1], [0, 0, 1, 1], [], []>} : vector<16x128xbf16>, vector<128x512xbf16>, vector<16x512xf32> -> vector<16x512xf32>
      %41 = arith.addf %38, %40 : vector<16x512xf32>
      %42 = arith.truncf %41 : vector<16x512xf32> to vector<16x512xbf16>
      %43 = vector.extract_strided_slice %42 {offsets = [0, 0], sizes = [16, 128], strides = [1, 1]} : vector<16x512xbf16> to vector<16x128xbf16>
      %44 = arith.negf %43 : vector<16x128xbf16>
      %45 = math.exp %44 : vector<16x128xbf16>
      %cst_24 = arith.constant 1.000000e+00 : bf16
      %46 = vector.broadcast %cst_24 : bf16 to vector<16x128xbf16>
      %47 = arith.addf %46, %45 : vector<16x128xbf16>
      %48 = arith.divf %46, %47 : vector<16x128xbf16>
      %49 = vector.extract_strided_slice %42 {offsets = [0, 128], sizes = [16, 128], strides = [1, 1]} : vector<16x512xbf16> to vector<16x128xbf16>
      %50 = arith.negf %49 : vector<16x128xbf16>
      %51 = math.exp %50 : vector<16x128xbf16>
      %cst_25 = arith.constant 1.000000e+00 : bf16
      %52 = vector.broadcast %cst_25 : bf16 to vector<16x128xbf16>
      %53 = arith.addf %52, %51 : vector<16x128xbf16>
      %54 = arith.divf %52, %53 : vector<16x128xbf16>
      %55 = vector.extract_strided_slice %42 {offsets = [0, 256], sizes = [16, 128], strides = [1, 1]} : vector<16x512xbf16> to vector<16x128xbf16>
      %56 = math.tanh %55 : vector<16x128xbf16>
      %57 = vector.extract_strided_slice %42 {offsets = [0, 384], sizes = [16, 128], strides = [1, 1]} : vector<16x512xbf16> to vector<16x128xbf16>
      %58 = arith.negf %57 : vector<16x128xbf16>
      %59 = math.exp %58 : vector<16x128xbf16>
      %cst_26 = arith.constant 1.000000e+00 : bf16
      %60 = vector.broadcast %cst_26 : bf16 to vector<16x128xbf16>
      %61 = arith.addf %60, %59 : vector<16x128xbf16>
      %62 = arith.divf %60, %61 : vector<16x128xbf16>
      %63 = arith.extf %54 : vector<16x128xbf16> to vector<16x128xf32>
      %64 = arith.mulf %63, %31 : vector<16x128xf32>
      %65 = arith.mulf %48, %56 : vector<16x128xbf16>
      %66 = arith.extf %65 : vector<16x128xbf16> to vector<16x128xf32>
      %67 = arith.addf %64, %66 : vector<16x128xf32>
      %68 = arith.truncf %67 : vector<16x128xf32> to vector<16x128xbf16>
      %69 = math.tanh %68 : vector<16x128xbf16>
      %70 = arith.mulf %62, %69 : vector<16x128xbf16>
      %71 = arith.addi %17, %c0_i32_20 : i32
      %72 = vector.broadcast %71 : i32 to vector<16x1xi32>
      %73 = arith.cmpi slt, %72, %12 : vector<16x1xi32>
      %74 = vector.shape_cast %73 : vector<16x1xi1> to vector<16x1xi1>
      %75 = vector.broadcast %74 : vector<16x1xi1> to vector<16x128xi1>
      %76 = arith.select %75, %70, %30 : vector<16x128xi1>, vector<16x128xbf16>
      %77 = vector.shape_cast %73 : vector<16x1xi1> to vector<16x1xi1>
      %78 = vector.broadcast %77 : vector<16x1xi1> to vector<16x128xi1>
      %79 = arith.select %78, %67, %31 : vector<16x128xi1>, vector<16x128xf32>
      %c1_i32_27 = arith.constant 1 : i32
      %c16_i32_28 = arith.constant 16 : i32
      %80 = arith.muli %c1_i32_27, %c16_i32_28 : i32
      %81 = arith.addi %29, %80 : i32
      %82 = tpu.assume_multiple %81, 16 : i32
      %83 = arith.index_cast %82 : i32 to index
      %c0_29 = arith.constant 0 : index
      %84 = vector.load %arg13[%83, %c0_29] : memref<256x512xbf16, #tpu.memory_space<vmem>>, vector<16x512xbf16>
      %85 = arith.extf %84 : vector<16x512xbf16> to vector<16x512xf32>
      %86 = arith.addf %85, %15 : vector<16x512xf32>
      %c0_30 = arith.constant 0 : index
      %c0_31 = arith.constant 0 : index
      %87 = vector.load %arg4[%c0_30, %c0_31] : memref<128x512xbf16, #tpu.memory_space<vmem>>, vector<128x512xbf16>
      %cst_32 = arith.constant dense<0.000000e+00> : vector<16x512xf32>
      %88 = tpu.matmul %76, %87, %cst_32 {dimension_numbers = #tpu.dot_dimension_numbers<[1], [0], [0], [1], [0, 0, 1, 1], [], []>} : vector<16x128xbf16>, vector<128x512xbf16>, vector<16x512xf32> -> vector<16x512xf32>
      %89 = arith.addf %86, %88 : vector<16x512xf32>
      %90 = arith.truncf %89 : vector<16x512xf32> to vector<16x512xbf16>
      %91 = vector.extract_strided_slice %90 {offsets = [0, 0], sizes = [16, 128], strides = [1, 1]} : vector<16x512xbf16> to vector<16x128xbf16>
      %92 = arith.negf %91 : vector<16x128xbf16>
      %93 = math.exp %92 : vector<16x128xbf16>
      %cst_33 = arith.constant 1.000000e+00 : bf16
      %94 = vector.broadcast %cst_33 : bf16 to vector<16x128xbf16>
      %95 = arith.addf %94, %93 : vector<16x128xbf16>
      %96 = arith.divf %94, %95 : vector<16x128xbf16>
      %97 = vector.extract_strided_slice %90 {offsets = [0, 128], sizes = [16, 128], strides = [1, 1]} : vector<16x512xbf16> to vector<16x128xbf16>
      %98 = arith.negf %97 : vector<16x128xbf16>
      %99 = math.exp %98 : vector<16x128xbf16>
      %cst_34 = arith.constant 1.000000e+00 : bf16
      %100 = vector.broadcast %cst_34 : bf16 to vector<16x128xbf16>
      %101 = arith.addf %100, %99 : vector<16x128xbf16>
      %102 = arith.divf %100, %101 : vector<16x128xbf16>
      %103 = vector.extract_strided_slice %90 {offsets = [0, 256], sizes = [16, 128], strides = [1, 1]} : vector<16x512xbf16> to vector<16x128xbf16>
      %104 = math.tanh %103 : vector<16x128xbf16>
      %105 = vector.extract_strided_slice %90 {offsets = [0, 384], sizes = [16, 128], strides = [1, 1]} : vector<16x512xbf16> to vector<16x128xbf16>
      %106 = arith.negf %105 : vector<16x128xbf16>
      %107 = math.exp %106 : vector<16x128xbf16>
      %cst_35 = arith.constant 1.000000e+00 : bf16
      %108 = vector.broadcast %cst_35 : bf16 to vector<16x128xbf16>
      %109 = arith.addf %108, %107 : vector<16x128xbf16>
      %110 = arith.divf %108, %109 : vector<16x128xbf16>
      %111 = arith.extf %102 : vector<16x128xbf16> to vector<16x128xf32>
      %112 = arith.mulf %111, %79 : vector<16x128xf32>
      %113 = arith.mulf %96, %104 : vector<16x128xbf16>
      %114 = arith.extf %113 : vector<16x128xbf16> to vector<16x128xf32>
      %115 = arith.addf %112, %114 : vector<16x128xf32>
      %116 = arith.truncf %115 : vector<16x128xf32> to vector<16x128xbf16>
      %117 = math.tanh %116 : vector<16x128xbf16>
      %118 = arith.mulf %110, %117 : vector<16x128xbf16>
      %119 = arith.addi %17, %c1_i32_27 : i32
      %120 = vector.broadcast %119 : i32 to vector<16x1xi32>
      %121 = arith.cmpi slt, %120, %12 : vector<16x1xi32>
      %122 = vector.shape_cast %121 : vector<16x1xi1> to vector<16x1xi1>
      %123 = vector.broadcast %122 : vector<16x1xi1> to vector<16x128xi1>
      %124 = arith.select %123, %118, %76 : vector<16x128xi1>, vector<16x128xbf16>
      %125 = vector.shape_cast %121 : vector<16x1xi1> to vector<16x1xi1>
      %126 = vector.broadcast %125 : vector<16x1xi1> to vector<16x128xi1>
      %127 = arith.select %126, %115, %79 : vector<16x128xi1>, vector<16x128xf32>
      %c2_i32_36 = arith.constant 2 : i32
      %c16_i32_37 = arith.constant 16 : i32
      %128 = arith.muli %c2_i32_36, %c16_i32_37 : i32
      %129 = arith.addi %29, %128 : i32
      %130 = tpu.assume_multiple %129, 16 : i32
      %131 = arith.index_cast %130 : i32 to index
      %c0_38 = arith.constant 0 : index
      %132 = vector.load %arg13[%131, %c0_38] : memref<256x512xbf16, #tpu.memory_space<vmem>>, vector<16x512xbf16>
      %133 = arith.extf %132 : vector<16x512xbf16> to vector<16x512xf32>
      %134 = arith.addf %133, %15 : vector<16x512xf32>
      %c0_39 = arith.constant 0 : index
      %c0_40 = arith.constant 0 : index
      %135 = vector.load %arg4[%c0_39, %c0_40] : memref<128x512xbf16, #tpu.memory_space<vmem>>, vector<128x512xbf16>
      %cst_41 = arith.constant dense<0.000000e+00> : vector<16x512xf32>
      %136 = tpu.matmul %124, %135, %cst_41 {dimension_numbers = #tpu.dot_dimension_numbers<[1], [0], [0], [1], [0, 0, 1, 1], [], []>} : vector<16x128xbf16>, vector<128x512xbf16>, vector<16x512xf32> -> vector<16x512xf32>
      %137 = arith.addf %134, %136 : vector<16x512xf32>
      %138 = arith.truncf %137 : vector<16x512xf32> to vector<16x512xbf16>
      %139 = vector.extract_strided_slice %138 {offsets = [0, 0], sizes = [16, 128], strides = [1, 1]} : vector<16x512xbf16> to vector<16x128xbf16>
      %140 = arith.negf %139 : vector<16x128xbf16>
      %141 = math.exp %140 : vector<16x128xbf16>
      %cst_42 = arith.constant 1.000000e+00 : bf16
      %142 = vector.broadcast %cst_42 : bf16 to vector<16x128xbf16>
      %143 = arith.addf %142, %141 : vector<16x128xbf16>
      %144 = arith.divf %142, %143 : vector<16x128xbf16>
      %145 = vector.extract_strided_slice %138 {offsets = [0, 128], sizes = [16, 128], strides = [1, 1]} : vector<16x512xbf16> to vector<16x128xbf16>
      %146 = arith.negf %145 : vector<16x128xbf16>
      %147 = math.exp %146 : vector<16x128xbf16>
      %cst_43 = arith.constant 1.000000e+00 : bf16
      %148 = vector.broadcast %cst_43 : bf16 to vector<16x128xbf16>
      %149 = arith.addf %148, %147 : vector<16x128xbf16>
      %150 = arith.divf %148, %149 : vector<16x128xbf16>
      %151 = vector.extract_strided_slice %138 {offsets = [0, 256], sizes = [16, 128], strides = [1, 1]} : vector<16x512xbf16> to vector<16x128xbf16>
      %152 = math.tanh %151 : vector<16x128xbf16>
      %153 = vector.extract_strided_slice %138 {offsets = [0, 384], sizes = [16, 128], strides = [1, 1]} : vector<16x512xbf16> to vector<16x128xbf16>
      %154 = arith.negf %153 : vector<16x128xbf16>
      %155 = math.exp %154 : vector<16x128xbf16>
      %cst_44 = arith.constant 1.000000e+00 : bf16
      %156 = vector.broadcast %cst_44 : bf16 to vector<16x128xbf16>
      %157 = arith.addf %156, %155 : vector<16x128xbf16>
      %158 = arith.divf %156, %157 : vector<16x128xbf16>
      %159 = arith.extf %150 : vector<16x128xbf16> to vector<16x128xf32>
      %160 = arith.mulf %159, %127 : vector<16x128xf32>
      %161 = arith.mulf %144, %152 : vector<16x128xbf16>
      %162 = arith.extf %161 : vector<16x128xbf16> to vector<16x128xf32>
      %163 = arith.addf %160, %162 : vector<16x128xf32>
      %164 = arith.truncf %163 : vector<16x128xf32> to vector<16x128xbf16>
      %165 = math.tanh %164 : vector<16x128xbf16>
      %166 = arith.mulf %158, %165 : vector<16x128xbf16>
      %167 = arith.addi %17, %c2_i32_36 : i32
      %168 = vector.broadcast %167 : i32 to vector<16x1xi32>
      %169 = arith.cmpi slt, %168, %12 : vector<16x1xi32>
      %170 = vector.shape_cast %169 : vector<16x1xi1> to vector<16x1xi1>
      %171 = vector.broadcast %170 : vector<16x1xi1> to vector<16x128xi1>
      %172 = arith.select %171, %166, %124 : vector<16x128xi1>, vector<16x128xbf16>
      %173 = vector.shape_cast %169 : vector<16x1xi1> to vector<16x1xi1>
      %174 = vector.broadcast %173 : vector<16x1xi1> to vector<16x128xi1>
      %175 = arith.select %174, %163, %127 : vector<16x128xi1>, vector<16x128xf32>
      %c3_i32 = arith.constant 3 : i32
      %c16_i32_45 = arith.constant 16 : i32
      %176 = arith.muli %c3_i32, %c16_i32_45 : i32
      %177 = arith.addi %29, %176 : i32
      %178 = tpu.assume_multiple %177, 16 : i32
      %179 = arith.index_cast %178 : i32 to index
      %c0_46 = arith.constant 0 : index
      %180 = vector.load %arg13[%179, %c0_46] : memref<256x512xbf16, #tpu.memory_space<vmem>>, vector<16x512xbf16>
      %181 = arith.extf %180 : vector<16x512xbf16> to vector<16x512xf32>
      %182 = arith.addf %181, %15 : vector<16x512xf32>
      %c0_47 = arith.constant 0 : index
      %c0_48 = arith.constant 0 : index
      %183 = vector.load %arg4[%c0_47, %c0_48] : memref<128x512xbf16, #tpu.memory_space<vmem>>, vector<128x512xbf16>
      %cst_49 = arith.constant dense<0.000000e+00> : vector<16x512xf32>
      %184 = tpu.matmul %172, %183, %cst_49 {dimension_numbers = #tpu.dot_dimension_numbers<[1], [0], [0], [1], [0, 0, 1, 1], [], []>} : vector<16x128xbf16>, vector<128x512xbf16>, vector<16x512xf32> -> vector<16x512xf32>
      %185 = arith.addf %182, %184 : vector<16x512xf32>
      %186 = arith.truncf %185 : vector<16x512xf32> to vector<16x512xbf16>
      %187 = vector.extract_strided_slice %186 {offsets = [0, 0], sizes = [16, 128], strides = [1, 1]} : vector<16x512xbf16> to vector<16x128xbf16>
      %188 = arith.negf %187 : vector<16x128xbf16>
      %189 = math.exp %188 : vector<16x128xbf16>
      %cst_50 = arith.constant 1.000000e+00 : bf16
      %190 = vector.broadcast %cst_50 : bf16 to vector<16x128xbf16>
      %191 = arith.addf %190, %189 : vector<16x128xbf16>
      %192 = arith.divf %190, %191 : vector<16x128xbf16>
      %193 = vector.extract_strided_slice %186 {offsets = [0, 128], sizes = [16, 128], strides = [1, 1]} : vector<16x512xbf16> to vector<16x128xbf16>
      %194 = arith.negf %193 : vector<16x128xbf16>
      %195 = math.exp %194 : vector<16x128xbf16>
      %cst_51 = arith.constant 1.000000e+00 : bf16
      %196 = vector.broadcast %cst_51 : bf16 to vector<16x128xbf16>
      %197 = arith.addf %196, %195 : vector<16x128xbf16>
      %198 = arith.divf %196, %197 : vector<16x128xbf16>
      %199 = vector.extract_strided_slice %186 {offsets = [0, 256], sizes = [16, 128], strides = [1, 1]} : vector<16x512xbf16> to vector<16x128xbf16>
      %200 = math.tanh %199 : vector<16x128xbf16>
      %201 = vector.extract_strided_slice %186 {offsets = [0, 384], sizes = [16, 128], strides = [1, 1]} : vector<16x512xbf16> to vector<16x128xbf16>
      %202 = arith.negf %201 : vector<16x128xbf16>
      %203 = math.exp %202 : vector<16x128xbf16>
      %cst_52 = arith.constant 1.000000e+00 : bf16
      %204 = vector.broadcast %cst_52 : bf16 to vector<16x128xbf16>
      %205 = arith.addf %204, %203 : vector<16x128xbf16>
      %206 = arith.divf %204, %205 : vector<16x128xbf16>
      %207 = arith.extf %198 : vector<16x128xbf16> to vector<16x128xf32>
      %208 = arith.mulf %207, %175 : vector<16x128xf32>
      %209 = arith.mulf %192, %200 : vector<16x128xbf16>
      %210 = arith.extf %209 : vector<16x128xbf16> to vector<16x128xf32>
      %211 = arith.addf %208, %210 : vector<16x128xf32>
      %212 = arith.truncf %211 : vector<16x128xf32> to vector<16x128xbf16>
      %213 = math.tanh %212 : vector<16x128xbf16>
      %214 = arith.mulf %206, %213 : vector<16x128xbf16>
      %215 = arith.addi %17, %c3_i32 : i32
      %216 = vector.broadcast %215 : i32 to vector<16x1xi32>
      %217 = arith.cmpi slt, %216, %12 : vector<16x1xi32>
      %218 = vector.shape_cast %217 : vector<16x1xi1> to vector<16x1xi1>
      %219 = vector.broadcast %218 : vector<16x1xi1> to vector<16x128xi1>
      %220 = arith.select %219, %214, %172 : vector<16x128xi1>, vector<16x128xbf16>
      %221 = vector.shape_cast %217 : vector<16x1xi1> to vector<16x1xi1>
      %222 = vector.broadcast %221 : vector<16x1xi1> to vector<16x128xi1>
      %223 = arith.select %222, %211, %175 : vector<16x128xi1>, vector<16x128xf32>
      %c4_i32 = arith.constant 4 : i32
      %c16_i32_53 = arith.constant 16 : i32
      %224 = arith.muli %c4_i32, %c16_i32_53 : i32
      %225 = arith.addi %29, %224 : i32
      %226 = tpu.assume_multiple %225, 16 : i32
      %227 = arith.index_cast %226 : i32 to index
      %c0_54 = arith.constant 0 : index
      %228 = vector.load %arg13[%227, %c0_54] : memref<256x512xbf16, #tpu.memory_space<vmem>>, vector<16x512xbf16>
      %229 = arith.extf %228 : vector<16x512xbf16> to vector<16x512xf32>
      %230 = arith.addf %229, %15 : vector<16x512xf32>
      %c0_55 = arith.constant 0 : index
      %c0_56 = arith.constant 0 : index
      %231 = vector.load %arg4[%c0_55, %c0_56] : memref<128x512xbf16, #tpu.memory_space<vmem>>, vector<128x512xbf16>
      %cst_57 = arith.constant dense<0.000000e+00> : vector<16x512xf32>
      %232 = tpu.matmul %220, %231, %cst_57 {dimension_numbers = #tpu.dot_dimension_numbers<[1], [0], [0], [1], [0, 0, 1, 1], [], []>} : vector<16x128xbf16>, vector<128x512xbf16>, vector<16x512xf32> -> vector<16x512xf32>
      %233 = arith.addf %230, %232 : vector<16x512xf32>
      %234 = arith.truncf %233 : vector<16x512xf32> to vector<16x512xbf16>
      %235 = vector.extract_strided_slice %234 {offsets = [0, 0], sizes = [16, 128], strides = [1, 1]} : vector<16x512xbf16> to vector<16x128xbf16>
      %236 = arith.negf %235 : vector<16x128xbf16>
      %237 = math.exp %236 : vector<16x128xbf16>
      %cst_58 = arith.constant 1.000000e+00 : bf16
      %238 = vector.broadcast %cst_58 : bf16 to vector<16x128xbf16>
      %239 = arith.addf %238, %237 : vector<16x128xbf16>
      %240 = arith.divf %238, %239 : vector<16x128xbf16>
      %241 = vector.extract_strided_slice %234 {offsets = [0, 128], sizes = [16, 128], strides = [1, 1]} : vector<16x512xbf16> to vector<16x128xbf16>
      %242 = arith.negf %241 : vector<16x128xbf16>
      %243 = math.exp %242 : vector<16x128xbf16>
      %cst_59 = arith.constant 1.000000e+00 : bf16
      %244 = vector.broadcast %cst_59 : bf16 to vector<16x128xbf16>
      %245 = arith.addf %244, %243 : vector<16x128xbf16>
      %246 = arith.divf %244, %245 : vector<16x128xbf16>
      %247 = vector.extract_strided_slice %234 {offsets = [0, 256], sizes = [16, 128], strides = [1, 1]} : vector<16x512xbf16> to vector<16x128xbf16>
      %248 = math.tanh %247 : vector<16x128xbf16>
      %249 = vector.extract_strided_slice %234 {offsets = [0, 384], sizes = [16, 128], strides = [1, 1]} : vector<16x512xbf16> to vector<16x128xbf16>
      %250 = arith.negf %249 : vector<16x128xbf16>
      %251 = math.exp %250 : vector<16x128xbf16>
      %cst_60 = arith.constant 1.000000e+00 : bf16
      %252 = vector.broadcast %cst_60 : bf16 to vector<16x128xbf16>
      %253 = arith.addf %252, %251 : vector<16x128xbf16>
      %254 = arith.divf %252, %253 : vector<16x128xbf16>
      %255 = arith.extf %246 : vector<16x128xbf16> to vector<16x128xf32>
      %256 = arith.mulf %255, %223 : vector<16x128xf32>
      %257 = arith.mulf %240, %248 : vector<16x128xbf16>
      %258 = arith.extf %257 : vector<16x128xbf16> to vector<16x128xf32>
      %259 = arith.addf %256, %258 : vector<16x128xf32>
      %260 = arith.truncf %259 : vector<16x128xf32> to vector<16x128xbf16>
      %261 = math.tanh %260 : vector<16x128xbf16>
      %262 = arith.mulf %254, %261 : vector<16x128xbf16>
      %263 = arith.addi %17, %c4_i32 : i32
      %264 = vector.broadcast %263 : i32 to vector<16x1xi32>
      %265 = arith.cmpi slt, %264, %12 : vector<16x1xi32>
      %266 = vector.shape_cast %265 : vector<16x1xi1> to vector<16x1xi1>
      %267 = vector.broadcast %266 : vector<16x1xi1> to vector<16x128xi1>
      %268 = arith.select %267, %262, %220 : vector<16x128xi1>, vector<16x128xbf16>
      %269 = vector.shape_cast %265 : vector<16x1xi1> to vector<16x1xi1>
      %270 = vector.broadcast %269 : vector<16x1xi1> to vector<16x128xi1>
      %271 = arith.select %270, %259, %223 : vector<16x128xi1>, vector<16x128xf32>
      %c5_i32 = arith.constant 5 : i32
      %c16_i32_61 = arith.constant 16 : i32
      %272 = arith.muli %c5_i32, %c16_i32_61 : i32
      %273 = arith.addi %29, %272 : i32
      %274 = tpu.assume_multiple %273, 16 : i32
      %275 = arith.index_cast %274 : i32 to index
      %c0_62 = arith.constant 0 : index
      %276 = vector.load %arg13[%275, %c0_62] : memref<256x512xbf16, #tpu.memory_space<vmem>>, vector<16x512xbf16>
      %277 = arith.extf %276 : vector<16x512xbf16> to vector<16x512xf32>
      %278 = arith.addf %277, %15 : vector<16x512xf32>
      %c0_63 = arith.constant 0 : index
      %c0_64 = arith.constant 0 : index
      %279 = vector.load %arg4[%c0_63, %c0_64] : memref<128x512xbf16, #tpu.memory_space<vmem>>, vector<128x512xbf16>
      %cst_65 = arith.constant dense<0.000000e+00> : vector<16x512xf32>
      %280 = tpu.matmul %268, %279, %cst_65 {dimension_numbers = #tpu.dot_dimension_numbers<[1], [0], [0], [1], [0, 0, 1, 1], [], []>} : vector<16x128xbf16>, vector<128x512xbf16>, vector<16x512xf32> -> vector<16x512xf32>
      %281 = arith.addf %278, %280 : vector<16x512xf32>
      %282 = arith.truncf %281 : vector<16x512xf32> to vector<16x512xbf16>
      %283 = vector.extract_strided_slice %282 {offsets = [0, 0], sizes = [16, 128], strides = [1, 1]} : vector<16x512xbf16> to vector<16x128xbf16>
      %284 = arith.negf %283 : vector<16x128xbf16>
      %285 = math.exp %284 : vector<16x128xbf16>
      %cst_66 = arith.constant 1.000000e+00 : bf16
      %286 = vector.broadcast %cst_66 : bf16 to vector<16x128xbf16>
      %287 = arith.addf %286, %285 : vector<16x128xbf16>
      %288 = arith.divf %286, %287 : vector<16x128xbf16>
      %289 = vector.extract_strided_slice %282 {offsets = [0, 128], sizes = [16, 128], strides = [1, 1]} : vector<16x512xbf16> to vector<16x128xbf16>
      %290 = arith.negf %289 : vector<16x128xbf16>
      %291 = math.exp %290 : vector<16x128xbf16>
      %cst_67 = arith.constant 1.000000e+00 : bf16
      %292 = vector.broadcast %cst_67 : bf16 to vector<16x128xbf16>
      %293 = arith.addf %292, %291 : vector<16x128xbf16>
      %294 = arith.divf %292, %293 : vector<16x128xbf16>
      %295 = vector.extract_strided_slice %282 {offsets = [0, 256], sizes = [16, 128], strides = [1, 1]} : vector<16x512xbf16> to vector<16x128xbf16>
      %296 = math.tanh %295 : vector<16x128xbf16>
      %297 = vector.extract_strided_slice %282 {offsets = [0, 384], sizes = [16, 128], strides = [1, 1]} : vector<16x512xbf16> to vector<16x128xbf16>
      %298 = arith.negf %297 : vector<16x128xbf16>
      %299 = math.exp %298 : vector<16x128xbf16>
      %cst_68 = arith.constant 1.000000e+00 : bf16
      %300 = vector.broadcast %cst_68 : bf16 to vector<16x128xbf16>
      %301 = arith.addf %300, %299 : vector<16x128xbf16>
      %302 = arith.divf %300, %301 : vector<16x128xbf16>
      %303 = arith.extf %294 : vector<16x128xbf16> to vector<16x128xf32>
      %304 = arith.mulf %303, %271 : vector<16x128xf32>
      %305 = arith.mulf %288, %296 : vector<16x128xbf16>
      %306 = arith.extf %305 : vector<16x128xbf16> to vector<16x128xf32>
      %307 = arith.addf %304, %306 : vector<16x128xf32>
      %308 = arith.truncf %307 : vector<16x128xf32> to vector<16x128xbf16>
      %309 = math.tanh %308 : vector<16x128xbf16>
      %310 = arith.mulf %302, %309 : vector<16x128xbf16>
      %311 = arith.addi %17, %c5_i32 : i32
      %312 = vector.broadcast %311 : i32 to vector<16x1xi32>
      %313 = arith.cmpi slt, %312, %12 : vector<16x1xi32>
      %314 = vector.shape_cast %313 : vector<16x1xi1> to vector<16x1xi1>
      %315 = vector.broadcast %314 : vector<16x1xi1> to vector<16x128xi1>
      %316 = arith.select %315, %310, %268 : vector<16x128xi1>, vector<16x128xbf16>
      %317 = vector.shape_cast %313 : vector<16x1xi1> to vector<16x1xi1>
      %318 = vector.broadcast %317 : vector<16x1xi1> to vector<16x128xi1>
      %319 = arith.select %318, %307, %271 : vector<16x128xi1>, vector<16x128xf32>
      %c6_i32 = arith.constant 6 : i32
      %c16_i32_69 = arith.constant 16 : i32
      %320 = arith.muli %c6_i32, %c16_i32_69 : i32
      %321 = arith.addi %29, %320 : i32
      %322 = tpu.assume_multiple %321, 16 : i32
      %323 = arith.index_cast %322 : i32 to index
      %c0_70 = arith.constant 0 : index
      %324 = vector.load %arg13[%323, %c0_70] : memref<256x512xbf16, #tpu.memory_space<vmem>>, vector<16x512xbf16>
      %325 = arith.extf %324 : vector<16x512xbf16> to vector<16x512xf32>
      %326 = arith.addf %325, %15 : vector<16x512xf32>
      %c0_71 = arith.constant 0 : index
      %c0_72 = arith.constant 0 : index
      %327 = vector.load %arg4[%c0_71, %c0_72] : memref<128x512xbf16, #tpu.memory_space<vmem>>, vector<128x512xbf16>
      %cst_73 = arith.constant dense<0.000000e+00> : vector<16x512xf32>
      %328 = tpu.matmul %316, %327, %cst_73 {dimension_numbers = #tpu.dot_dimension_numbers<[1], [0], [0], [1], [0, 0, 1, 1], [], []>} : vector<16x128xbf16>, vector<128x512xbf16>, vector<16x512xf32> -> vector<16x512xf32>
      %329 = arith.addf %326, %328 : vector<16x512xf32>
      %330 = arith.truncf %329 : vector<16x512xf32> to vector<16x512xbf16>
      %331 = vector.extract_strided_slice %330 {offsets = [0, 0], sizes = [16, 128], strides = [1, 1]} : vector<16x512xbf16> to vector<16x128xbf16>
      %332 = arith.negf %331 : vector<16x128xbf16>
      %333 = math.exp %332 : vector<16x128xbf16>
      %cst_74 = arith.constant 1.000000e+00 : bf16
      %334 = vector.broadcast %cst_74 : bf16 to vector<16x128xbf16>
      %335 = arith.addf %334, %333 : vector<16x128xbf16>
      %336 = arith.divf %334, %335 : vector<16x128xbf16>
      %337 = vector.extract_strided_slice %330 {offsets = [0, 128], sizes = [16, 128], strides = [1, 1]} : vector<16x512xbf16> to vector<16x128xbf16>
      %338 = arith.negf %337 : vector<16x128xbf16>
      %339 = math.exp %338 : vector<16x128xbf16>
      %cst_75 = arith.constant 1.000000e+00 : bf16
      %340 = vector.broadcast %cst_75 : bf16 to vector<16x128xbf16>
      %341 = arith.addf %340, %339 : vector<16x128xbf16>
      %342 = arith.divf %340, %341 : vector<16x128xbf16>
      %343 = vector.extract_strided_slice %330 {offsets = [0, 256], sizes = [16, 128], strides = [1, 1]} : vector<16x512xbf16> to vector<16x128xbf16>
      %344 = math.tanh %343 : vector<16x128xbf16>
      %345 = vector.extract_strided_slice %330 {offsets = [0, 384], sizes = [16, 128], strides = [1, 1]} : vector<16x512xbf16> to vector<16x128xbf16>
      %346 = arith.negf %345 : vector<16x128xbf16>
      %347 = math.exp %346 : vector<16x128xbf16>
      %cst_76 = arith.constant 1.000000e+00 : bf16
      %348 = vector.broadcast %cst_76 : bf16 to vector<16x128xbf16>
      %349 = arith.addf %348, %347 : vector<16x128xbf16>
      %350 = arith.divf %348, %349 : vector<16x128xbf16>
      %351 = arith.extf %342 : vector<16x128xbf16> to vector<16x128xf32>
      %352 = arith.mulf %351, %319 : vector<16x128xf32>
      %353 = arith.mulf %336, %344 : vector<16x128xbf16>
      %354 = arith.extf %353 : vector<16x128xbf16> to vector<16x128xf32>
      %355 = arith.addf %352, %354 : vector<16x128xf32>
      %356 = arith.truncf %355 : vector<16x128xf32> to vector<16x128xbf16>
      %357 = math.tanh %356 : vector<16x128xbf16>
      %358 = arith.mulf %350, %357 : vector<16x128xbf16>
      %359 = arith.addi %17, %c6_i32 : i32
      %360 = vector.broadcast %359 : i32 to vector<16x1xi32>
      %361 = arith.cmpi slt, %360, %12 : vector<16x1xi32>
      %362 = vector.shape_cast %361 : vector<16x1xi1> to vector<16x1xi1>
      %363 = vector.broadcast %362 : vector<16x1xi1> to vector<16x128xi1>
      %364 = arith.select %363, %358, %316 : vector<16x128xi1>, vector<16x128xbf16>
      %365 = vector.shape_cast %361 : vector<16x1xi1> to vector<16x1xi1>
      %366 = vector.broadcast %365 : vector<16x1xi1> to vector<16x128xi1>
      %367 = arith.select %366, %355, %319 : vector<16x128xi1>, vector<16x128xf32>
      %c7_i32 = arith.constant 7 : i32
      %c16_i32_77 = arith.constant 16 : i32
      %368 = arith.muli %c7_i32, %c16_i32_77 : i32
      %369 = arith.addi %29, %368 : i32
      %370 = tpu.assume_multiple %369, 16 : i32
      %371 = arith.index_cast %370 : i32 to index
      %c0_78 = arith.constant 0 : index
      %372 = vector.load %arg13[%371, %c0_78] : memref<256x512xbf16, #tpu.memory_space<vmem>>, vector<16x512xbf16>
      %373 = arith.extf %372 : vector<16x512xbf16> to vector<16x512xf32>
      %374 = arith.addf %373, %15 : vector<16x512xf32>
      %c0_79 = arith.constant 0 : index
      %c0_80 = arith.constant 0 : index
      %375 = vector.load %arg4[%c0_79, %c0_80] : memref<128x512xbf16, #tpu.memory_space<vmem>>, vector<128x512xbf16>
      %cst_81 = arith.constant dense<0.000000e+00> : vector<16x512xf32>
      %376 = tpu.matmul %364, %375, %cst_81 {dimension_numbers = #tpu.dot_dimension_numbers<[1], [0], [0], [1], [0, 0, 1, 1], [], []>} : vector<16x128xbf16>, vector<128x512xbf16>, vector<16x512xf32> -> vector<16x512xf32>
      %377 = arith.addf %374, %376 : vector<16x512xf32>
      %378 = arith.truncf %377 : vector<16x512xf32> to vector<16x512xbf16>
      %379 = vector.extract_strided_slice %378 {offsets = [0, 0], sizes = [16, 128], strides = [1, 1]} : vector<16x512xbf16> to vector<16x128xbf16>
      %380 = arith.negf %379 : vector<16x128xbf16>
      %381 = math.exp %380 : vector<16x128xbf16>
      %cst_82 = arith.constant 1.000000e+00 : bf16
      %382 = vector.broadcast %cst_82 : bf16 to vector<16x128xbf16>
      %383 = arith.addf %382, %381 : vector<16x128xbf16>
      %384 = arith.divf %382, %383 : vector<16x128xbf16>
      %385 = vector.extract_strided_slice %378 {offsets = [0, 128], sizes = [16, 128], strides = [1, 1]} : vector<16x512xbf16> to vector<16x128xbf16>
      %386 = arith.negf %385 : vector<16x128xbf16>
      %387 = math.exp %386 : vector<16x128xbf16>
      %cst_83 = arith.constant 1.000000e+00 : bf16
      %388 = vector.broadcast %cst_83 : bf16 to vector<16x128xbf16>
      %389 = arith.addf %388, %387 : vector<16x128xbf16>
      %390 = arith.divf %388, %389 : vector<16x128xbf16>
      %391 = vector.extract_strided_slice %378 {offsets = [0, 256], sizes = [16, 128], strides = [1, 1]} : vector<16x512xbf16> to vector<16x128xbf16>
      %392 = math.tanh %391 : vector<16x128xbf16>
      %393 = vector.extract_strided_slice %378 {offsets = [0, 384], sizes = [16, 128], strides = [1, 1]} : vector<16x512xbf16> to vector<16x128xbf16>
      %394 = arith.negf %393 : vector<16x128xbf16>
      %395 = math.exp %394 : vector<16x128xbf16>
      %cst_84 = arith.constant 1.000000e+00 : bf16
      %396 = vector.broadcast %cst_84 : bf16 to vector<16x128xbf16>
      %397 = arith.addf %396, %395 : vector<16x128xbf16>
      %398 = arith.divf %396, %397 : vector<16x128xbf16>
      %399 = arith.extf %390 : vector<16x128xbf16> to vector<16x128xf32>
      %400 = arith.mulf %399, %367 : vector<16x128xf32>
      %401 = arith.mulf %384, %392 : vector<16x128xbf16>
      %402 = arith.extf %401 : vector<16x128xbf16> to vector<16x128xf32>
      %403 = arith.addf %400, %402 : vector<16x128xf32>
      %404 = arith.truncf %403 : vector<16x128xf32> to vector<16x128xbf16>
      %405 = math.tanh %404 : vector<16x128xbf16>
      %406 = arith.mulf %398, %405 : vector<16x128xbf16>
      %407 = arith.addi %17, %c7_i32 : i32
      %408 = vector.broadcast %407 : i32 to vector<16x1xi32>
      %409 = arith.cmpi slt, %408, %12 : vector<16x1xi32>
      %410 = vector.shape_cast %409 : vector<16x1xi1> to vector<16x1xi1>
      %411 = vector.broadcast %410 : vector<16x1xi1> to vector<16x128xi1>
      %412 = arith.select %411, %406, %364 : vector<16x128xi1>, vector<16x128xbf16>
      %413 = vector.shape_cast %409 : vector<16x1xi1> to vector<16x1xi1>
      %414 = vector.broadcast %413 : vector<16x1xi1> to vector<16x128xi1>
      %415 = arith.select %414, %403, %367 : vector<16x128xi1>, vector<16x128xf32>
      %c8_i32_85 = arith.constant 8 : i32
      %c0_86 = arith.constant 0 : index
      %c0_87 = arith.constant 0 : index
      %416 = vector.load %arg14[%c0_86, %c0_87] : memref<16x128xbf16, #tpu.memory_space<vmem>>, vector<16x128xbf16>
      tpu.vector_store %arg14[%c0_86, %c0_87], %412 {strides = array<i32>} : memref<16x128xbf16, #tpu.memory_space<vmem>>, vector<16x128xbf16>,
      %c0_88 = arith.constant 0 : index
      %c0_89 = arith.constant 0 : index
      %417 = vector.load %arg15[%c0_88, %c0_89] : memref<16x128xf32, #tpu.memory_space<vmem>>, vector<16x128xf32>
      tpu.vector_store %arg15[%c0_88, %c0_89], %415 {strides = array<i32>} : memref<16x128xf32, #tpu.memory_space<vmem>>, vector<16x128xf32>,
    } else {
    }
    %c1_i32_4 = arith.constant 1 : i32
    %9 = arith.cmpi eq, %arg0, %c1_i32_4 : i32
    %10 = arith.extui %9 : i1 to i32
    %c0_i32_5 = arith.constant 0 : i32
    %11 = arith.cmpi ne, %10, %c0_i32_5 : i32
    scf.if %11 {
      %c0 = arith.constant 0 : index
      %c0_6 = arith.constant 0 : index
      %12 = vector.load %arg14[%c0, %c0_6] : memref<16x128xbf16, #tpu.memory_space<vmem>>, vector<16x128xbf16>
      %13 = arith.extf %12 : vector<16x128xbf16> to vector<16x128xf32>
      %14 = vector.extract_strided_slice %13 {offsets = [0, 0], sizes = [8, 128], strides = [1, 1]} : vector<16x128xf32> to vector<8x128xf32>
      %15 = vector.extract_strided_slice %13 {offsets = [8, 0], sizes = [8, 128], strides = [1, 1]} : vector<16x128xf32> to vector<8x128xf32>
      %16 = arith.truncf %14 : vector<8x128xf32> to vector<8x128xbf16>
      %17 = arith.truncf %15 : vector<8x128xf32> to vector<8x128xbf16>
      %18 = arith.subf %14, %15 : vector<8x128xf32>
      %19 = math.absf %18 : vector<8x128xf32>
      %20 = arith.truncf %19 : vector<8x128xf32> to vector<8x128xbf16>
      %21 = arith.mulf %14, %15 : vector<8x128xf32>
      %22 = arith.truncf %21 : vector<8x128xf32> to vector<8x128xbf16>
      %c0_7 = arith.constant 0 : index
      %c0_8 = arith.constant 0 : index
      %23 = vector.load %arg6[%c0_7, %c0_8] : memref<512x128xbf16, #tpu.memory_space<vmem>>, vector<128x128xbf16>
      %cst = arith.constant dense<0.000000e+00> : vector<8x128xf32>
      %24 = tpu.matmul %16, %23, %cst {dimension_numbers = #tpu.dot_dimension_numbers<[1], [0], [0], [1], [0, 0, 1, 1], [], []>} : vector<8x128xbf16>, vector<128x128xbf16>, vector<8x128xf32> -> vector<8x128xf32>
      %c128 = arith.constant 128 : index
      %c0_9 = arith.constant 0 : index
      %25 = vector.load %arg6[%c128, %c0_9] : memref<512x128xbf16, #tpu.memory_space<vmem>>, vector<128x128xbf16>
      %cst_10 = arith.constant dense<0.000000e+00> : vector<8x128xf32>
      %26 = tpu.matmul %17, %25, %cst_10 {dimension_numbers = #tpu.dot_dimension_numbers<[1], [0], [0], [1], [0, 0, 1, 1], [], []>} : vector<8x128xbf16>, vector<128x128xbf16>, vector<8x128xf32> -> vector<8x128xf32>
      %27 = arith.addf %24, %26 : vector<8x128xf32>
      %c256 = arith.constant 256 : index
      %c0_11 = arith.constant 0 : index
      %28 = vector.load %arg6[%c256, %c0_11] : memref<512x128xbf16, #tpu.memory_space<vmem>>, vector<128x128xbf16>
      %cst_12 = arith.constant dense<0.000000e+00> : vector<8x128xf32>
      %29 = tpu.matmul %20, %28, %cst_12 {dimension_numbers = #tpu.dot_dimension_numbers<[1], [0], [0], [1], [0, 0, 1, 1], [], []>} : vector<8x128xbf16>, vector<128x128xbf16>, vector<8x128xf32> -> vector<8x128xf32>
      %30 = arith.addf %27, %29 : vector<8x128xf32>
      %c384 = arith.constant 384 : index
      %c0_13 = arith.constant 0 : index
      %31 = vector.load %arg6[%c384, %c0_13] : memref<512x128xbf16, #tpu.memory_space<vmem>>, vector<128x128xbf16>
      %cst_14 = arith.constant dense<0.000000e+00> : vector<8x128xf32>
      %32 = tpu.matmul %22, %31, %cst_14 {dimension_numbers = #tpu.dot_dimension_numbers<[1], [0], [0], [1], [0, 0, 1, 1], [], []>} : vector<8x128xbf16>, vector<128x128xbf16>, vector<8x128xf32> -> vector<8x128xf32>
      %33 = arith.addf %30, %32 : vector<8x128xf32>
      %c0_15 = arith.constant 0 : index
      %c0_16 = arith.constant 0 : index
      %34 = vector.load %arg7[%c0_15, %c0_16] : memref<1x128xf32, #tpu.memory_space<vmem>>, vector<1x128xf32>
      %35 = vector.broadcast %34 : vector<1x128xf32> to vector<8x128xf32>
      %36 = arith.addf %33, %35 : vector<8x128xf32>
      %37 = arith.truncf %36 : vector<8x128xf32> to vector<8x128xbf16>
      %c0_17 = arith.constant 0 : index
      %c0_18 = arith.constant 0 : index
      %38 = vector.load %arg8[%c0_17, %c0_18] : memref<128x128xbf16, #tpu.memory_space<vmem>>, vector<128x128xbf16>
      %cst_19 = arith.constant dense<0.000000e+00> : vector<8x128xf32>
      %39 = tpu.matmul %37, %38, %cst_19 {dimension_numbers = #tpu.dot_dimension_numbers<[1], [0], [0], [1], [0, 0, 1, 1], [], []>} : vector<8x128xbf16>, vector<128x128xbf16>, vector<8x128xf32> -> vector<8x128xf32>
      %c0_20 = arith.constant 0 : index
      %c0_21 = arith.constant 0 : index
      %40 = vector.load %arg9[%c0_20, %c0_21] : memref<1x128xf32, #tpu.memory_space<vmem>>, vector<1x128xf32>
      %41 = vector.broadcast %40 : vector<1x128xf32> to vector<8x128xf32>
      %42 = arith.addf %39, %41 : vector<8x128xf32>
      %43 = arith.truncf %42 : vector<8x128xf32> to vector<8x128xbf16>
      %c0_22 = arith.constant 0 : index
      %c0_23 = arith.constant 0 : index
      %44 = vector.load %arg10[%c0_22, %c0_23] : memref<128x128xbf16, #tpu.memory_space<vmem>>, vector<128x128xbf16>
      %cst_24 = arith.constant dense<0.000000e+00> : vector<8x128xf32>
      %45 = tpu.matmul %43, %44, %cst_24 {dimension_numbers = #tpu.dot_dimension_numbers<[1], [0], [0], [1], [0, 0, 1, 1], [], []>} : vector<8x128xbf16>, vector<128x128xbf16>, vector<8x128xf32> -> vector<8x128xf32>
      %c0_25 = arith.constant 0 : index
      %c0_26 = arith.constant 0 : index
      %46 = vector.load %arg11[%c0_25, %c0_26] : memref<1x128xf32, #tpu.memory_space<vmem>>, vector<1x128xf32>
      %47 = vector.broadcast %46 : vector<1x128xf32> to vector<8x128xf32>
      %48 = arith.addf %45, %47 : vector<8x128xf32>
      %c0_27 = arith.constant 0 : index
      %c0_28 = arith.constant 0 : index
      %49 = vector.load %arg12[%c0_27, %c0_28] : memref<8x128xf32, #tpu.memory_space<vmem>>, vector<8x128xf32>
      tpu.vector_store %arg12[%c0_27, %c0_28], %48 {strides = array<i32>} : memref<8x128xf32, #tpu.memory_space<vmem>>, vector<8x128xf32>,
    } else {
    }
    return
  }
  func.func @transform_0(%arg0: i32) -> (i32, i32) {
    %c0_i32 = arith.constant 0 : i32
    %c0_i32_0 = arith.constant 0 : i32
    return %arg0, %c0_i32 : i32, i32
  }
  func.func @transform_1(%arg0: i32) -> (i32, i32) {
    %c0_i32 = arith.constant 0 : i32
    %c0_i32_0 = arith.constant 0 : i32
    %c0_i32_1 = arith.constant 0 : i32
    return %c0_i32, %c0_i32_0 : i32, i32
  }
  func.func @transform_2(%arg0: i32) -> (i32, i32) {
    %c0_i32 = arith.constant 0 : i32
    %c0_i32_0 = arith.constant 0 : i32
    %c0_i32_1 = arith.constant 0 : i32
    return %c0_i32, %c0_i32_0 : i32, i32
  }
  func.func @transform_3(%arg0: i32) -> (i32, i32) {
    %c0_i32 = arith.constant 0 : i32
    %c0_i32_0 = arith.constant 0 : i32
    %c0_i32_1 = arith.constant 0 : i32
    return %c0_i32, %c0_i32_0 : i32, i32
  }
  func.func @transform_4(%arg0: i32) -> (i32, i32) {
    %c0_i32 = arith.constant 0 : i32
    %c0_i32_0 = arith.constant 0 : i32
    %c0_i32_1 = arith.constant 0 : i32
    return %c0_i32, %c0_i32_0 : i32, i32
  }
  func.func @transform_5(%arg0: i32) -> (i32, i32) {
    %c0_i32 = arith.constant 0 : i32
    %c0_i32_0 = arith.constant 0 : i32
    %c0_i32_1 = arith.constant 0 : i32
    return %c0_i32, %c0_i32_0 : i32, i32
  }
  func.func @transform_6(%arg0: i32) -> (i32, i32) {
    %c0_i32 = arith.constant 0 : i32
    %c0_i32_0 = arith.constant 0 : i32
    %c0_i32_1 = arith.constant 0 : i32
    return %c0_i32, %c0_i32_0 : i32, i32
  }
  func.func @transform_7(%arg0: i32) -> (i32, i32) {
    %c0_i32 = arith.constant 0 : i32
    %c0_i32_0 = arith.constant 0 : i32
    %c0_i32_1 = arith.constant 0 : i32
    return %c0_i32, %c0_i32_0 : i32, i32
  }
  func.func @transform_8(%arg0: i32) -> (i32, i32) {
    %c0_i32 = arith.constant 0 : i32
    %c0_i32_0 = arith.constant 0 : i32
    %c0_i32_1 = arith.constant 0 : i32
    return %c0_i32, %c0_i32_0 : i32, i32
  }
  func.func @transform_9(%arg0: i32) -> (i32, i32) {
    %c0_i32 = arith.constant 0 : i32
    %c0_i32_0 = arith.constant 0 : i32
    %c0_i32_1 = arith.constant 0 : i32
    return %c0_i32, %c0_i32_0 : i32, i32
  }
  func.func @transform_10(%arg0: i32) -> (i32, i32) {
    %c0_i32 = arith.constant 0 : i32
    %c0_i32_0 = arith.constant 0 : i32
    %c0_i32_1 = arith.constant 0 : i32
    return %c0_i32, %c0_i32_0 : i32, i32
  }
  func.func @transform_11(%arg0: i32) -> (i32, i32) {
    %c0_i32 = arith.constant 0 : i32
    %c0_i32_0 = arith.constant 0 : i32
    %c0_i32_1 = arith.constant 0 : i32
    return %c0_i32, %c0_i32_0 : i32, i32
  }
}

</mosaic_0001>

<llo_original>
// kernel: tpu_custom_call.1
$region0: #{tpu_custom_call.1}
  #allocation0 [shape = 'u32[]', space=smem, size = 0x4, offset = 0x4, fixed_abs, tag = 'smem constant byte address 0x4 - core index']
  #allocation1 [shape = 'u32[144,128]{1,0:T(1,128)}', space=vmem, size = 0x12000, scoped, tag = 'internal scratch']
  #allocation2 [shape = 'bf16[256,512]{1,0:T(8,128)(2,1)}', space=vmem, size = 0x40000, scoped, tag = 'scratch operand']
  #allocation3 [shape = 'bf16[16,128]{1,0:T(8,128)(2,1)}', space=vmem, size = 0x1000, scoped, tag = 'scratch operand']
  #allocation4 [shape = 'f32[16,128]{1,0:T(8,128)}', space=vmem, size = 0x2000, scoped, tag = 'scratch operand']
  %s0 = inlined_call_operand.hbm [shape: bf16[256,128], index: 0, kind: input, shape index: {}]
  %s1 = inlined_call_operand.vmem [shape: s32[16,1], index: 1, kind: input, shape index: {}]
  %s2 = inlined_call_operand.hbm [shape: bf16[128,512], index: 2, kind: input, shape index: {}]
  %s3 = inlined_call_operand.hbm [shape: bf16[128,512], index: 3, kind: input, shape index: {}]
  %s4 = inlined_call_operand.vmem [shape: f32[1,512], index: 4, kind: input, shape index: {}]
  %s5 = inlined_call_operand.hbm [shape: bf16[512,128], index: 5, kind: input, shape index: {}]
  %s6 = inlined_call_operand.vmem [shape: f32[1,128], index: 6, kind: input, shape index: {}]
  %s7 = inlined_call_operand.hbm [shape: bf16[128,128], index: 7, kind: input, shape index: {}]
  %s8 = inlined_call_operand.vmem [shape: f32[1,128], index: 8, kind: input, shape index: {}]
  %s9 = inlined_call_operand.hbm [shape: bf16[128,128], index: 9, kind: input, shape index: {}]
  %s10 = inlined_call_operand.vmem [shape: f32[1,128], index: 10, kind: input, shape index: {}]
  %s11 = inlined_call_operand.hbm [shape: f32[8,128], index: 11, kind: output, shape index: {}]
  %s12 = sld [smem:[#allocation0]]
  $region117: #{tpu_custom_call.1} parent=0
    _
  %s14 = ssub.s32 1, %s12
  %s15 = scalar_select 0, %s14, %s12
  $region1: #{tpu_custom_call.1} parent=0
    #allocation5 [shape = 'u8[65536]{0}', space=vmem, size = 0x10000, scoped, tag = 'input window, operand 0']
    #allocation6 [shape = 's32[2]{0}', space=sflag, size = 0x8, scoped, tag = 'scoped memory for tpu_custom_call.1']
    #allocation7 [shape = 's32[2]{0}', space=sflag, size = 0x8, scoped, tag = 'scoped memory for tpu_custom_call.1']
    #allocation8 [shape = 'u8[131072]{0}', space=vmem, size = 0x20000, scoped, tag = 'input window, operand 2, single buffered']
    #allocation9 [shape = 's32[1]{0}', space=sflag, size = 0x4, scoped, tag = 'scoped memory for tpu_custom_call.1']
    #allocation10 [shape = 'u8[131072]{0}', space=vmem, size = 0x20000, scoped, tag = 'input window, operand 3, single buffered']
    #allocation11 [shape = 'u8[131072]{0}', space=vmem, size = 0x20000, scoped, tag = 'input window, operand 5, single buffered']
    #allocation12 [shape = 's32[1]{0}', space=sflag, size = 0x4, scoped, tag = 'scoped memory for tpu_custom_call.1']
    #allocation13 [shape = 'u8[32768]{0}', space=vmem, size = 0x8000, scoped, tag = 'input window, operand 7, single buffered']
    #allocation14 [shape = 'u8[32768]{0}', space=vmem, size = 0x8000, scoped, tag = 'input window, operand 9, single buffered']
    #allocation15 [shape = 's32[1]{0}', space=sflag, size = 0x4, scoped, tag = 'scoped memory for tpu_custom_call.1']
    #allocation16 [shape = 'u8[4096]{0}', space=vmem, size = 0x1000, scoped, tag = 'output window, operand 0, single buffered']
    %16 = vsyncpa [#allocation6], 0
    %s17 = scalar_lea.sflag [#allocation6], 1
    %18 = vsyncpa %s17, 0
    %19 = vsyncpa [#allocation9], 0
    %20 = vsyncpa [#allocation12], 0
    %21 = vsyncpa [#allocation15], 0
    %22 = vsyncpa [#allocation7], 0
    loop: start=0, step=1, limit=4
    $region2: #{tpu_custom_call.1} parent=1 // loop_pre_header
      _
    $region3: #{tpu_custom_call.1} parent=1 // loop_header
      %s24 = sphi 0, %s28
      %p25 = scmp.ge.s32.totalorder %s24, 4
      %s34 = sphi 0, %s36
      %s37 = sphi 0, %s34
      %s38 = sphi 0, %s37
      %s54 = sphi 0, %s38
      %s58 = sphi 0, %s58
      %s60 = sphi 0, %s58
      %s61 = sphi 0, %s60
      %s75 = sphi 0, %s61
      %s79 = sphi 0, %s79
      %s81 = sphi 0, %s79
      %s82 = sphi 0, %s81
      %s96 = sphi 0, %s82
      %s100 = sphi 0, %s100
      %s102 = sphi 0, %s100
      %s103 = sphi 0, %s102
      %s117 = sphi 0, %s103
      %s121 = sphi 0, %s121
      %s123 = sphi 0, %s121
      %s124 = sphi 0, %s123
      %s138 = sphi 0, %s124
      %s142 = sphi 0, %s142
      %s144 = sphi 0, %s142
      %s145 = sphi 0, %s144
      %s159 = sphi 0, %s145
      %s163 = sphi 0, %s163
      %s165 = sphi 0, %s163
      %s166 = sphi 0, %s165
      %s180 = sphi 0, %s166
      %s184 = sphi 0, %s184
      %s186 = sphi 0, %s184
      %s187 = sphi 0, %s186
      %s201 = sphi 0, %s187
      %s205 = sphi 0, %s205
      %s207 = sphi 0, %s205
      %s208 = sphi 0, %s207
      %s222 = sphi 0, %s208
      %s226 = sphi 0, %s226
      %s228 = sphi 0, %s226
      %s229 = sphi 0, %s228
      %s243 = sphi 0, %s229
      %s247 = sphi 0, %s247
      %s249 = sphi 0, %s247
      %s250 = sphi 0, %s249
      %s264 = sphi 0, %s250
      %s268 = sphi 0, %s268
      %s270 = sphi 0, %s268
      %s271 = sphi 0, %s270
      %s285 = sphi 0, %s271
    $region4: #{tpu_custom_call.1} parent=1 // loop_header_branch
      %27 = sbr.rel (%p25) target = $region8
    $region5: #{tpu_custom_call.1} parent=1 // loop_body
      %s29 = ssub.s32 %s24, 1
      %s30 = ssub.s32 %s24, 2
      %s31 = sadd.s32 %s24, 1
      %s32 = ssub.s32 %s24, %s31
      %p33 = scmp.eq.s32.totalorder %s32, 0
      %s35 = sadd.s32 %s34, 1
      %s36 = scalar_select %p33, %s34, %s35
      %p39 = pneg %p33
      %p40 = scmp.eq.s32.totalorder %s24, 1
      %p41 = por %p39, %p40
      %p42 = scmp.ne.s32.totalorder %s34, %s37
      %p43 = scmp.eq.s32.totalorder %s24, 0
      %p44 = por %p42, %p43
      %p45 = scmp.ne.s32.totalorder %s34, %s37
      %p46 = scmp.eq.s32.totalorder %s29, 1
      %p47 = por %p45, %p46
      %p48 = scmp.ne.s32.totalorder %s37, %s38
      %p49 = scmp.eq.s32.totalorder %s29, 0
      %p50 = por %p48, %p49
      %p51 = scmp.ne.s32.totalorder %s37, %s38
      %p52 = scmp.eq.s32.totalorder %s30, 1
      %p53 = por %p51, %p52
      %p55 = scmp.ne.s32.totalorder %s38, %s54
      %p56 = scmp.eq.s32.totalorder %s30, 0
      %p57 = por %p55, %p56
      %s59 = sadd.s32 %s58, 1
      %p62 = scmp.eq.s32.totalorder %s24, 1
      %p63 = scmp.ne.s32.totalorder %s58, %s60
      %p64 = scmp.eq.s32.totalorder %s24, 0
      %p65 = por %p63, %p64
      %p66 = scmp.ne.s32.totalorder %s58, %s60
      %p67 = scmp.eq.s32.totalorder %s29, 1
      %p68 = por %p66, %p67
      %p69 = scmp.ne.s32.totalorder %s60, %s61
      %p70 = scmp.eq.s32.totalorder %s29, 0
      %p71 = por %p69, %p70
      %p72 = scmp.ne.s32.totalorder %s60, %s61
      %p73 = scmp.eq.s32.totalorder %s30, 1
      %p74 = por %p72, %p73
      %p76 = scmp.ne.s32.totalorder %s61, %s75
      %p77 = scmp.eq.s32.totalorder %s30, 0
      %p78 = por %p76, %p77
      %s80 = sadd.s32 %s79, 1
      %p83 = scmp.eq.s32.totalorder %s24, 1
      %p84 = scmp.ne.s32.totalorder %s79, %s81
      %p85 = scmp.eq.s32.totalorder %s24, 0
      %p86 = por %p84, %p85
      %p87 = scmp.ne.s32.totalorder %s79, %s81
      %p88 = scmp.eq.s32.totalorder %s29, 1
      %p89 = por %p87, %p88
      %p90 = scmp.ne.s32.totalorder %s81, %s82
      %p91 = scmp.eq.s32.totalorder %s29, 0
      %p92 = por %p90, %p91
      %p93 = scmp.ne.s32.totalorder %s81, %s82
      %p94 = scmp.eq.s32.totalorder %s30, 1
      %p95 = por %p93, %p94
      %p97 = scmp.ne.s32.totalorder %s82, %s96
      %p98 = scmp.eq.s32.totalorder %s30, 0
      %p99 = por %p97, %p98
      %s101 = sadd.s32 %s100, 1
      %p104 = scmp.eq.s32.totalorder %s24, 1
      %p105 = scmp.ne.s32.totalorder %s100, %s102
      %p106 = scmp.eq.s32.totalorder %s24, 0
      %p107 = por %p105, %p106
      %p108 = scmp.ne.s32.totalorder %s100, %s102
      %p109 = scmp.eq.s32.totalorder %s29, 1
      %p110 = por %p108, %p109
      %p111 = scmp.ne.s32.totalorder %s102, %s103
      %p112 = scmp.eq.s32.totalorder %s29, 0
      %p113 = por %p111, %p112
      %p114 = scmp.ne.s32.totalorder %s102, %s103
      %p115 = scmp.eq.s32.totalorder %s30, 1
      %p116 = por %p114, %p115
      %p118 = scmp.ne.s32.totalorder %s103, %s117
      %p119 = scmp.eq.s32.totalorder %s30, 0
      %p120 = por %p118, %p119
      %s122 = sadd.s32 %s121, 1
      %p125 = scmp.eq.s32.totalorder %s24, 1
      %p126 = scmp.ne.s32.totalorder %s121, %s123
      %p127 = scmp.eq.s32.totalorder %s24, 0
      %p128 = por %p126, %p127
      %p129 = scmp.ne.s32.totalorder %s121, %s123
      %p130 = scmp.eq.s32.totalorder %s29, 1
      %p131 = por %p129, %p130
      %p132 = scmp.ne.s32.totalorder %s123, %s124
      %p133 = scmp.eq.s32.totalorder %s29, 0
      %p134 = por %p132, %p133
      %p135 = scmp.ne.s32.totalorder %s123, %s124
      %p136 = scmp.eq.s32.totalorder %s30, 1
      %p137 = por %p135, %p136
      %p139 = scmp.ne.s32.totalorder %s124, %s138
      %p140 = scmp.eq.s32.totalorder %s30, 0
      %p141 = por %p139, %p140
      %s143 = sadd.s32 %s142, 1
      %p146 = scmp.eq.s32.totalorder %s24, 1
      %p147 = scmp.ne.s32.totalorder %s142, %s144
      %p148 = scmp.eq.s32.totalorder %s24, 0
      %p149 = por %p147, %p148
      %p150 = scmp.ne.s32.totalorder %s142, %s144
      %p151 = scmp.eq.s32.totalorder %s29, 1
      %p152 = por %p150, %p151
      %p153 = scmp.ne.s32.totalorder %s144, %s145
      %p154 = scmp.eq.s32.totalorder %s29, 0
      %p155 = por %p153, %p154
      %p156 = scmp.ne.s32.totalorder %s144, %s145
      %p157 = scmp.eq.s32.totalorder %s30, 1
      %p158 = por %p156, %p157
      %p160 = scmp.ne.s32.totalorder %s145, %s159
      %p161 = scmp.eq.s32.totalorder %s30, 0
      %p162 = por %p160, %p161
      %s164 = sadd.s32 %s163, 1
      %p167 = scmp.eq.s32.totalorder %s24, 1
      %p168 = scmp.ne.s32.totalorder %s163, %s165
      %p169 = scmp.eq.s32.totalorder %s24, 0
      %p170 = por %p168, %p169
      %p171 = scmp.ne.s32.totalorder %s163, %s165
      %p172 = scmp.eq.s32.totalorder %s29, 1
      %p173 = por %p171, %p172
      %p174 = scmp.ne.s32.totalorder %s165, %s166
      %p175 = scmp.eq.s32.totalorder %s29, 0
      %p176 = por %p174, %p175
      %p177 = scmp.ne.s32.totalorder %s165, %s166
      %p178 = scmp.eq.s32.totalorder %s30, 1
      %p179 = por %p177, %p178
      %p181 = scmp.ne.s32.totalorder %s166, %s180
      %p182 = scmp.eq.s32.totalorder %s30, 0
      %p183 = por %p181, %p182
      %s185 = sadd.s32 %s184, 1
      %p188 = scmp.eq.s32.totalorder %s24, 1
      %p189 = scmp.ne.s32.totalorder %s184, %s186
      %p190 = scmp.eq.s32.totalorder %s24, 0
      %p191 = por %p189, %p190
      %p192 = scmp.ne.s32.totalorder %s184, %s186
      %p193 = scmp.eq.s32.totalorder %s29, 1
      %p194 = por %p192, %p193
      %p195 = scmp.ne.s32.totalorder %s186, %s187
      %p196 = scmp.eq.s32.totalorder %s29, 0
      %p197 = por %p195, %p196
      %p198 = scmp.ne.s32.totalorder %s186, %s187
      %p199 = scmp.eq.s32.totalorder %s30, 1
      %p200 = por %p198, %p199
      %p202 = scmp.ne.s32.totalorder %s187, %s201
      %p203 = scmp.eq.s32.totalorder %s30, 0
      %p204 = por %p202, %p203
      %s206 = sadd.s32 %s205, 1
      %p209 = scmp.eq.s32.totalorder %s24, 1
      %p210 = scmp.ne.s32.totalorder %s205, %s207
      %p211 = scmp.eq.s32.totalorder %s24, 0
      %p212 = por %p210, %p211
      %p213 = scmp.ne.s32.totalorder %s205, %s207
      %p214 = scmp.eq.s32.totalorder %s29, 1
      %p215 = por %p213, %p214
      %p216 = scmp.ne.s32.totalorder %s207, %s208
      %p217 = scmp.eq.s32.totalorder %s29, 0
      %p218 = por %p216, %p217
      %p219 = scmp.ne.s32.totalorder %s207, %s208
      %p220 = scmp.eq.s32.totalorder %s30, 1
      %p221 = por %p219, %p220
      %p223 = scmp.ne.s32.totalorder %s208, %s222
      %p224 = scmp.eq.s32.totalorder %s30, 0
      %p225 = por %p223, %p224
      %s227 = sadd.s32 %s226, 1
      %p230 = scmp.eq.s32.totalorder %s24, 1
      %p231 = scmp.ne.s32.totalorder %s226, %s228
      %p232 = scmp.eq.s32.totalorder %s24, 0
      %p233 = por %p231, %p232
      %p234 = scmp.ne.s32.totalorder %s226, %s228
      %p235 = scmp.eq.s32.totalorder %s29, 1
      %p236 = por %p234, %p235
      %p237 = scmp.ne.s32.totalorder %s228, %s229
      %p238 = scmp.eq.s32.totalorder %s29, 0
      %p239 = por %p237, %p238
      %p240 = scmp.ne.s32.totalorder %s228, %s229
      %p241 = scmp.eq.s32.totalorder %s30, 1
      %p242 = por %p240, %p241
      %p244 = scmp.ne.s32.totalorder %s229, %s243
      %p245 = scmp.eq.s32.totalorder %s30, 0
      %p246 = por %p244, %p245
      %s248 = sadd.s32 %s247, 1
      %p251 = scmp.eq.s32.totalorder %s24, 1
      %p252 = scmp.ne.s32.totalorder %s247, %s249
      %p253 = scmp.eq.s32.totalorder %s24, 0
      %p254 = por %p252, %p253
      %p255 = scmp.ne.s32.totalorder %s247, %s249
      %p256 = scmp.eq.s32.totalorder %s29, 1
      %p257 = por %p255, %p256
      %p258 = scmp.ne.s32.totalorder %s249, %s250
      %p259 = scmp.eq.s32.totalorder %s29, 0
      %p260 = por %p258, %p259
      %p261 = scmp.ne.s32.totalorder %s249, %s250
      %p262 = scmp.eq.s32.totalorder %s30, 1
      %p263 = por %p261, %p262
      %p265 = scmp.ne.s32.totalorder %s250, %s264
      %p266 = scmp.eq.s32.totalorder %s30, 0
      %p267 = por %p265, %p266
      %s269 = sadd.s32 %s268, 1
      %p272 = scmp.eq.s32.totalorder %s24, 1
      %p273 = scmp.ne.s32.totalorder %s268, %s270
      %p274 = scmp.eq.s32.totalorder %s24, 0
      %p275 = por %p273, %p274
      %p276 = scmp.ne.s32.totalorder %s268, %s270
      %p277 = scmp.eq.s32.totalorder %s29, 1
      %p278 = por %p276, %p277
      %p279 = scmp.ne.s32.totalorder %s270, %s271
      %p280 = scmp.eq.s32.totalorder %s29, 0
      %p281 = por %p279, %p280
      %p282 = scmp.ne.s32.totalorder %s270, %s271
      %p283 = scmp.eq.s32.totalorder %s30, 1
      %p284 = por %p282, %p283
      %p286 = scmp.ne.s32.totalorder %s271, %s285
      %p287 = scmp.eq.s32.totalorder %s30, 0
      %p288 = por %p286, %p287
      %p289 = scmp.le.s32.totalorder 1, %s24
      %p290 = scmp.lt.s32.totalorder %s24, 3
      %p291 = pnand %p289, %p290
      %p292 = pneg %p291
      // Predicated region
      $region9: #{tpu_custom_call.1} parent=5 // pred_check
        _
      $region10: #{tpu_custom_call.1} parent=5 // pred_check_branch
        %294 = sbr.rel (%p291) target = $region12
      $region11: #{tpu_custom_call.1} parent=5 // pred_region
        %s295 = ssub.s32 %s24, 1
        // Predicated region
        $region13: #{tpu_custom_call.1} parent=11 // pred_check
          %p296 = pneg %p71
        $region14: #{tpu_custom_call.1} parent=11 // pred_check_branch
          %298 = sbr.rel (%p296) target = $region16
        $region15: #{tpu_custom_call.1} parent=11 // pred_region
          _
        $region16: #{tpu_custom_call.1} parent=11 // pred_fallthru
          _
        // Predicated region
        $region17: #{tpu_custom_call.1} parent=11 // pred_check
          %p299 = pneg %p92
        $region18: #{tpu_custom_call.1} parent=11 // pred_check_branch
          %301 = sbr.rel (%p299) target = $region20
        $region19: #{tpu_custom_call.1} parent=11 // pred_region
          %s303 = ssub.s32 4096, 4096
          %304 = vsyncadd [#allocation9], %s303
          %s305 = sshll.u32 [#allocation8], 4
          %s306 = int_to_ptr.vmem [resolvable:$true] %s305
          %311 = dma.hbm_to_vmem [thread:$0]  %s2, 4096, %s306, [#allocation9], 256, 256, 16
        $region20: #{tpu_custom_call.1} parent=11 // pred_fallthru
          _
        // Predicated region
        $region21: #{tpu_custom_call.1} parent=11 // pred_check
          %p312 = pneg %p113
        $region22: #{tpu_custom_call.1} parent=11 // pred_check_branch
          %314 = sbr.rel (%p312) target = $region24
        $region23: #{tpu_custom_call.1} parent=11 // pred_region
          %s316 = ssub.s32 4096, 4096
          %317 = vsyncadd [#allocation9], %s316
          %s318 = sshll.u32 [#allocation10], 4
          %s319 = int_to_ptr.vmem [resolvable:$true] %s318
          %324 = dma.hbm_to_vmem [thread:$0]  %s3, 4096, %s319, [#allocation9], 256, 256, 16
        $region24: #{tpu_custom_call.1} parent=11 // pred_fallthru
          _
        // Predicated region
        $region25: #{tpu_custom_call.1} parent=11 // pred_check
          %p325 = pneg %p134
        $region26: #{tpu_custom_call.1} parent=11 // pred_check_branch
          %327 = sbr.rel (%p325) target = $region28
        $region27: #{tpu_custom_call.1} parent=11 // pred_region
          _
        $region28: #{tpu_custom_call.1} parent=11 // pred_fallthru
          _
        // Predicated region
        $region29: #{tpu_custom_call.1} parent=11 // pred_check
          %p328 = pneg %p155
        $region30: #{tpu_custom_call.1} parent=11 // pred_check_branch
          %330 = sbr.rel (%p328) target = $region32
        $region31: #{tpu_custom_call.1} parent=11 // pred_region
          %s332 = ssub.s32 4096, 4096
          %333 = vsyncadd [#allocation12], %s332
          %s334 = sshll.u32 [#allocation11], 4
          %s335 = int_to_ptr.vmem [resolvable:$true] %s334
          %340 = dma.hbm_to_vmem [thread:$0]  %s5, 4096, %s335, [#allocation12], 64, 64, 4
        $region32: #{tpu_custom_call.1} parent=11 // pred_fallthru
          _
        // Predicated region
        $region33: #{tpu_custom_call.1} parent=11 // pred_check
          %p341 = pneg %p176
        $region34: #{tpu_custom_call.1} parent=11 // pred_check_branch
          %343 = sbr.rel (%p341) target = $region36
        $region35: #{tpu_custom_call.1} parent=11 // pred_region
          _
        $region36: #{tpu_custom_call.1} parent=11 // pred_fallthru
          _
        // Predicated region
        $region37: #{tpu_custom_call.1} parent=11 // pred_check
          %p344 = pneg %p197
        $region38: #{tpu_custom_call.1} parent=11 // pred_check_branch
          %346 = sbr.rel (%p344) target = $region40
        $region39: #{tpu_custom_call.1} parent=11 // pred_region
          %s348 = ssub.s32 1024, 1024
          %349 = vsyncadd [#allocation12], %s348
          %s350 = sshll.u32 [#allocation13], 4
          %s351 = int_to_ptr.vmem [resolvable:$true] %s350
          %356 = dma.hbm_to_vmem [thread:$0]  %s7, 1024, %s351, [#allocation12], 64, 64, 4
        $region40: #{tpu_custom_call.1} parent=11 // pred_fallthru
          _
        // Predicated region
        $region41: #{tpu_custom_call.1} parent=11 // pred_check
          %p357 = pneg %p218
        $region42: #{tpu_custom_call.1} parent=11 // pred_check_branch
          %359 = sbr.rel (%p357) target = $region44
        $region43: #{tpu_custom_call.1} parent=11 // pred_region
          _
        $region44: #{tpu_custom_call.1} parent=11 // pred_fallthru
          _
        // Predicated region
        $region45: #{tpu_custom_call.1} parent=11 // pred_check
          %p360 = pneg %p239
        $region46: #{tpu_custom_call.1} parent=11 // pred_check_branch
          %362 = sbr.rel (%p360) target = $region48
        $region47: #{tpu_custom_call.1} parent=11 // pred_region
          %s364 = ssub.s32 1024, 1024
          %365 = vsyncadd [#allocation15], %s364
          %s366 = sshll.u32 [#allocation14], 4
          %s367 = int_to_ptr.vmem [resolvable:$true] %s366
          %372 = dma.hbm_to_vmem [thread:$0]  %s9, 1024, %s367, [#allocation15], 64, 64, 4
        $region48: #{tpu_custom_call.1} parent=11 // pred_fallthru
          _
        // Predicated region
        $region49: #{tpu_custom_call.1} parent=11 // pred_check
          %p373 = pneg %p260
        $region50: #{tpu_custom_call.1} parent=11 // pred_check_branch
          %375 = sbr.rel (%p373) target = $region52
        $region51: #{tpu_custom_call.1} parent=11 // pred_region
          _
        $region52: #{tpu_custom_call.1} parent=11 // pred_fallthru
          _
      $region12: #{tpu_custom_call.1} parent=5 // pred_fallthru
        _
      %p376 = scmp.lt.s32.totalorder %s24, 2
      // Predicated region
      $region53: #{tpu_custom_call.1} parent=5 // pred_check
        %p377 = pneg %p376
      $region54: #{tpu_custom_call.1} parent=5 // pred_check_branch
        %379 = sbr.rel (%p377) target = $region56
      $region55: #{tpu_custom_call.1} parent=5 // pred_region
        // Predicated region
        $region57: #{tpu_custom_call.1} parent=55 // pred_check
          %p380 = pneg %p44
        $region58: #{tpu_custom_call.1} parent=55 // pred_check_branch
          %382 = sbr.rel (%p380) target = $region60
        $region59: #{tpu_custom_call.1} parent=55 // pred_region
          %s383 = sand.u32 %s34, 1
          %s384 = scalar_lea.sflag [#allocation6], %s383
          %s385 = sand.u32 %s34, 1
          %s386 = smul.addr %s385, 64
          %s387 = scalar_lea.vmem [#allocation5], %s386
          %s388 = smul.u32 16, %s24
          %s390 = ssub.s32 1024, 1024
          %391 = vsyncadd %s384, %s390
          %s392 = smul.addr %s388, 64
          %s393 = scalar_lea.hbm %s0, %s392
          %s394 = sshll.u32 %s387, 4
          %s395 = int_to_ptr.vmem [resolvable:$true] %s394
          %400 = dma.hbm_to_vmem [thread:$0]  %s393, 1024, %s395, %s384, 64, 64, 4
        $region60: #{tpu_custom_call.1} parent=55 // pred_fallthru
          _
      $region56: #{tpu_custom_call.1} parent=5 // pred_fallthru
        _
      %p401 = scmp.le.s32.totalorder 1, %s24
      %p402 = scmp.lt.s32.totalorder %s24, 3
      %p403 = pnand %p401, %p402
      %p404 = pneg %p403
      // Predicated region
      $region61: #{tpu_custom_call.1} parent=5 // pred_check
        _
      $region62: #{tpu_custom_call.1} parent=5 // pred_check_branch
        %406 = sbr.rel (%p403) target = $region64
      $region63: #{tpu_custom_call.1} parent=5 // pred_region
        %s407 = ssub.s32 %s24, 1
        %s408 = sand.u32 %s37, 1
        %s409 = scalar_lea.sflag [#allocation6], %s408
        %s410 = sand.u32 %s37, 1
        %s411 = smul.addr %s410, 64
        %s412 = scalar_lea.vmem [#allocation5], %s411
        // Predicated region
        $region65: #{tpu_custom_call.1} parent=63 // pred_check
          %p413 = pneg %p50
        $region66: #{tpu_custom_call.1} parent=63 // pred_check_branch
          %415 = sbr.rel (%p413) target = $region68
        $region67: #{tpu_custom_call.1} parent=63 // pred_region
          %416 = dma.done %s409, 1024
        $region68: #{tpu_custom_call.1} parent=63 // pred_fallthru
          _
        // Predicated region
        $region69: #{tpu_custom_call.1} parent=63 // pred_check
          %p417 = pneg %p92
        $region70: #{tpu_custom_call.1} parent=63 // pred_check_branch
          %419 = sbr.rel (%p417) target = $region72
        $region71: #{tpu_custom_call.1} parent=63 // pred_region
          %420 = dma.done [#allocation9], 4096
        $region72: #{tpu_custom_call.1} parent=63 // pred_fallthru
          _
        // Predicated region
        $region73: #{tpu_custom_call.1} parent=63 // pred_check
          %p421 = pneg %p113
        $region74: #{tpu_custom_call.1} parent=63 // pred_check_branch
          %423 = sbr.rel (%p421) target = $region76
        $region75: #{tpu_custom_call.1} parent=63 // pred_region
          %424 = dma.done [#allocation9], 4096
        $region76: #{tpu_custom_call.1} parent=63 // pred_fallthru
          _
        // Predicated region
        $region77: #{tpu_custom_call.1} parent=63 // pred_check
          %p425 = pneg %p155
        $region78: #{tpu_custom_call.1} parent=63 // pred_check_branch
          %427 = sbr.rel (%p425) target = $region80
        $region79: #{tpu_custom_call.1} parent=63 // pred_region
          %428 = dma.done [#allocation12], 4096
        $region80: #{tpu_custom_call.1} parent=63 // pred_fallthru
          _
        // Predicated region
        $region81: #{tpu_custom_call.1} parent=63 // pred_check
          %p429 = pneg %p197
        $region82: #{tpu_custom_call.1} parent=63 // pred_check_branch
          %431 = sbr.rel (%p429) target = $region84
        $region83: #{tpu_custom_call.1} parent=63 // pred_region
          %432 = dma.done [#allocation12], 1024
        $region84: #{tpu_custom_call.1} parent=63 // pred_fallthru
          _
        // Predicated region
        $region85: #{tpu_custom_call.1} parent=63 // pred_check
          %p433 = pneg %p239
        $region86: #{tpu_custom_call.1} parent=63 // pred_check_branch
          %435 = sbr.rel (%p433) target = $region88
        $region87: #{tpu_custom_call.1} parent=63 // pred_region
          %436 = dma.done [#allocation15], 1024
        $region88: #{tpu_custom_call.1} parent=63 // pred_fallthru
          _
        %s437 = sand.u32 %s37, 1
        %s438 = scalar_lea.sflag [#allocation6], %s437
        %s439 = sand.u32 %s37, 1
        %s440 = smul.addr %s439, 64
        %s441 = scalar_lea.vmem [#allocation5], %s440
        %p442 = pneg %p50
        %p443 = pneg %p47
        %p444 = pneg %p71
        %p445 = pneg %p68
        %p446 = pneg %p92
        %p447 = pneg %p89
        %p448 = pneg %p113
        %p449 = pneg %p110
        %p450 = pneg %p134
        %p451 = pneg %p131
        %p452 = pneg %p155
        %p453 = pneg %p152
        %p454 = pneg %p176
        %p455 = pneg %p173
        %p456 = pneg %p197
        %p457 = pneg %p194
        %p458 = pneg %p218
        %p459 = pneg %p215
        %p460 = pneg %p239
        %p461 = pneg %p236
        %p462 = pneg %p260
        %p463 = pneg %p257
        %p464 = pneg %p281
        %p465 = pneg %p278
        %s466 = smul.u32 16, %s29
        %p471 = scmp.eq.s32.totalorder %s29, 0
        // Predicated region
        $region89: #{tpu_custom_call.1} parent=63 // pred_check
          %p472 = pneg %p471
        $region90: #{tpu_custom_call.1} parent=63 // pred_check_branch
          %474 = sbr.rel (%p472) target = $region92
        $region91: #{tpu_custom_call.1} parent=63 // pred_region
          %475 = vst [vmem:[#allocation3] sm:$0xf] 0
          %476 = vst [vmem:[#allocation3 + $0x4] sm:$0xf] 0
          %477 = vst [vmem:[#allocation4] sm:$0xff] 0.0
          %478 = vst [vmem:[#allocation4 + $0x8] sm:$0xff] 0.0
        $region92: #{tpu_custom_call.1} parent=63 // pred_fallthru
          _
        %p479 = scmp.lt.s32.totalorder %s29, 1
        // Predicated region
        $region93: #{tpu_custom_call.1} parent=63 // pred_check
          %p480 = pneg %p479
        $region94: #{tpu_custom_call.1} parent=63 // pred_check_branch
          %482 = sbr.rel (%p480) target = $region96
        $region95: #{tpu_custom_call.1} parent=63 // pred_region
          %p483 = scmp.lt.s32.totalorder %s29, 0
          %s484 = ssub.s32 0, %s29
          %s485 = scalar_select %p483, %s484, %s29
          %s486 = sand.u32 %s485, 1
          %s487 = ssub.s32 0, %s486
          %s488 = scalar_select %p483, %s487, %s486
          %p489 = scmp.ne.s32.totalorder %s488, 0
          %p490 = scmp.lt.s32.totalorder %s488, 0
          %p491 = pnand %p490, %p489
          %p492 = pneg %p491
          %s493 = sadd.s32 %s488, 2
          %s494 = scalar_select %p492, %s493, %s488
          %s495 = smul.u32 %s494, 128
          %v496 = vld [vmem:[%s412] sm:$0xf]
          %v497 = vld [vmem:[%s412 + $0x4] sm:$0xf]
          %v498 = vld [vmem:[%s412 + $0x8] sm:$0xf]
          %v499 = vld [vmem:[%s412 + $0xc] sm:$0xf]
          %v500 = vld [vmem:[%s412 + $0x10] sm:$0xf]
          %v501 = vld [vmem:[%s412 + $0x14] sm:$0xf]
          %v502 = vld [vmem:[%s412 + $0x18] sm:$0xf]
          %v503 = vld [vmem:[%s412 + $0x1c] sm:$0xf]
          %v504 = vld [vmem:[%s412 + $0x20] sm:$0xf]
          %v505 = vld [vmem:[%s412 + $0x24] sm:$0xf]
          %v506 = vld [vmem:[%s412 + $0x28] sm:$0xf]
          %v507 = vld [vmem:[%s412 + $0x2c] sm:$0xf]
          %v508 = vld [vmem:[%s412 + $0x30] sm:$0xf]
          %v509 = vld [vmem:[%s412 + $0x34] sm:$0xf]
          %v510 = vld [vmem:[%s412 + $0x38] sm:$0xf]
          %v511 = vld [vmem:[%s412 + $0x3c] sm:$0xf]
          %v512 = vld [vmem:[#allocation8] sm:$0xff]
          %v513 = vld [vmem:[#allocation8 + $0x8] sm:$0xff]
          %v514 = vld [vmem:[#allocation8 + $0x10] sm:$0xff]
          %v515 = vld [vmem:[#allocation8 + $0x18] sm:$0xff]
          %v516 = vld [vmem:[#allocation8 + $0x20] sm:$0xff]
          %v517 = vld [vmem:[#allocation8 + $0x28] sm:$0xff]
          %v518 = vld [vmem:[#allocation8 + $0x30] sm:$0xff]
          %v519 = vld [vmem:[#allocation8 + $0x38] sm:$0xff]
          %v520 = vld [vmem:[#allocation8 + $0x40] sm:$0xff]
          %v521 = vld [vmem:[#allocation8 + $0x48] sm:$0xff]
          %v522 = vld [vmem:[#allocation8 + $0x50] sm:$0xff]
          %v523 = vld [vmem:[#allocation8 + $0x58] sm:$0xff]
          %v524 = vld [vmem:[#allocation8 + $0x60] sm:$0xff]
          %v525 = vld [vmem:[#allocation8 + $0x68] sm:$0xff]
          %v526 = vld [vmem:[#allocation8 + $0x70] sm:$0xff]
          %v527 = vld [vmem:[#allocation8 + $0x78] sm:$0xff]
          %v528 = vld [vmem:[#allocation8 + $0x80] sm:$0xff]
          %v529 = vld [vmem:[#allocation8 + $0x88] sm:$0xff]
          %v530 = vld [vmem:[#allocation8 + $0x90] sm:$0xff]
          %v531 = vld [vmem:[#allocation8 + $0x98] sm:$0xff]
          %v532 = vld [vmem:[#allocation8 + $0xa0] sm:$0xff]
          %v533 = vld [vmem:[#allocation8 + $0xa8] sm:$0xff]
          %v534 = vld [vmem:[#allocation8 + $0xb0] sm:$0xff]
          %v535 = vld [vmem:[#allocation8 + $0xb8] sm:$0xff]
          %v536 = vld [vmem:[#allocation8 + $0xc0] sm:$0xff]
          %v537 = vld [vmem:[#allocation8 + $0xc8] sm:$0xff]
          %v538 = vld [vmem:[#allocation8 + $0xd0] sm:$0xff]
          %v539 = vld [vmem:[#allocation8 + $0xd8] sm:$0xff]
          %v540 = vld [vmem:[#allocation8 + $0xe0] sm:$0xff]
          %v541 = vld [vmem:[#allocation8 + $0xe8] sm:$0xff]
          %v542 = vld [vmem:[#allocation8 + $0xf0] sm:$0xff]
          %v543 = vld [vmem:[#allocation8 + $0xf8] sm:$0xff]
          %v560 = vunpack.c.l.b16 %v496
          %v561 = vunpack.c.l.b16 %v497
          %v562 = vunpack.c.l.b16 %v498
          %v563 = vunpack.c.l.b16 %v499
          %v564 = vunpack.c.l.b16 %v500
          %v565 = vunpack.c.l.b16 %v501
          %v566 = vunpack.c.l.b16 %v502
          %v567 = vunpack.c.l.b16 %v503
          %v568 = vunpack.c.l.b16 %v504
          %v569 = vunpack.c.l.b16 %v505
          %v570 = vunpack.c.l.b16 %v506
          %v571 = vunpack.c.l.b16 %v507
          %v572 = vunpack.c.l.b16 %v508
          %v573 = vunpack.c.l.b16 %v509
          %v574 = vunpack.c.l.b16 %v510
          %v575 = vunpack.c.l.b16 %v511
          %v576 = vpack.c.b16 %v561, %v560
          %v577 = vpack.c.b16 %v563, %v562
          %v578 = vpack.c.b16 %v565, %v564
          %v579 = vpack.c.b16 %v567, %v566
          %v580 = vpack.c.b16 %v569, %v568
          %v581 = vpack.c.b16 %v571, %v570
          %v582 = vpack.c.b16 %v573, %v572
          %v583 = vpack.c.b16 %v575, %v574
          %v624 = vunpack.c.l.b16 %v512
          %v625 = vunpack.c.h.b16 %v512
          %v626 = vunpack.c.l.b16 %v513
          %v627 = vunpack.c.h.b16 %v513
          %v628 = vunpack.c.l.b16 %v514
          %v629 = vunpack.c.h.b16 %v514
          %v630 = vunpack.c.l.b16 %v515
          %v631 = vunpack.c.h.b16 %v515
          %v632 = vunpack.c.l.b16 %v516
          %v633 = vunpack.c.h.b16 %v516
          %v634 = vunpack.c.l.b16 %v517
          %v635 = vunpack.c.h.b16 %v517
          %v636 = vunpack.c.l.b16 %v518
          %v637 = vunpack.c.h.b16 %v518
          %v638 = vunpack.c.l.b16 %v519
          %v639 = vunpack.c.h.b16 %v519
          %v640 = vunpack.c.l.b16 %v520
          %v641 = vunpack.c.h.b16 %v520
          %v642 = vunpack.c.l.b16 %v521
          %v643 = vunpack.c.h.b16 %v521
          %v644 = vunpack.c.l.b16 %v522
          %v645 = vunpack.c.h.b16 %v522
          %v646 = vunpack.c.l.b16 %v523
          %v647 = vunpack.c.h.b16 %v523
          %v648 = vunpack.c.l.b16 %v524
          %v649 = vunpack.c.h.b16 %v524
          %v650 = vunpack.c.l.b16 %v525
          %v651 = vunpack.c.h.b16 %v525
          %v652 = vunpack.c.l.b16 %v526
          %v653 = vunpack.c.h.b16 %v526
          %v654 = vunpack.c.l.b16 %v527
          %v655 = vunpack.c.h.b16 %v527
          %v656 = vunpack.c.l.b16 %v528
          %v657 = vunpack.c.h.b16 %v528
          %v658 = vunpack.c.l.b16 %v529
          %v659 = vunpack.c.h.b16 %v529
          %v660 = vunpack.c.l.b16 %v530
          %v661 = vunpack.c.h.b16 %v530
          %v662 = vunpack.c.l.b16 %v531
          %v663 = vunpack.c.h.b16 %v531
          %v664 = vunpack.c.l.b16 %v532
          %v665 = vunpack.c.h.b16 %v532
          %v666 = vunpack.c.l.b16 %v533
          %v667 = vunpack.c.h.b16 %v533
          %v668 = vunpack.c.l.b16 %v534
          %v669 = vunpack.c.h.b16 %v534
          %v670 = vunpack.c.l.b16 %v535
          %v671 = vunpack.c.h.b16 %v535
          %v672 = vunpack.c.l.b16 %v536
          %v673 = vunpack.c.h.b16 %v536
          %v674 = vunpack.c.l.b16 %v537
          %v675 = vunpack.c.h.b16 %v537
          %v676 = vunpack.c.l.b16 %v538
          %v677 = vunpack.c.h.b16 %v538
          %v678 = vunpack.c.l.b16 %v539
          %v679 = vunpack.c.h.b16 %v539
          %v680 = vunpack.c.l.b16 %v540
          %v681 = vunpack.c.h.b16 %v540
          %v682 = vunpack.c.l.b16 %v541
          %v683 = vunpack.c.h.b16 %v541
          %v684 = vunpack.c.l.b16 %v542
          %v685 = vunpack.c.h.b16 %v542
          %v686 = vunpack.c.l.b16 %v543
          %v687 = vunpack.c.h.b16 %v543
          %v688 = vpack.c.b16 %v628, %v624
          %v689 = vpack.c.b16 %v629, %v625
          %v690 = vpack.c.b16 %v630, %v626
          %v691 = vpack.c.b16 %v631, %v627
          %v692 = vpack.c.b16 %v636, %v632
          %v693 = vpack.c.b16 %v637, %v633
          %v694 = vpack.c.b16 %v638, %v634
          %v695 = vpack.c.b16 %v639, %v635
          %v696 = vpack.c.b16 %v644, %v640
          %v697 = vpack.c.b16 %v645, %v641
          %v698 = vpack.c.b16 %v646, %v642
          %v699 = vpack.c.b16 %v647, %v643
          %v700 = vpack.c.b16 %v652, %v648
          %v701 = vpack.c.b16 %v653, %v649
          %v702 = vpack.c.b16 %v654, %v650
          %v703 = vpack.c.b16 %v655, %v651
          %v704 = vpack.c.b16 %v660, %v656
          %v705 = vpack.c.b16 %v661, %v657
          %v706 = vpack.c.b16 %v662, %v658
          %v707 = vpack.c.b16 %v663, %v659
          %v708 = vpack.c.b16 %v668, %v664
          %v709 = vpack.c.b16 %v669, %v665
          %v710 = vpack.c.b16 %v670, %v666
          %v711 = vpack.c.b16 %v671, %v667
          %v712 = vpack.c.b16 %v676, %v672
          %v713 = vpack.c.b16 %v677, %v673
          %v714 = vpack.c.b16 %v678, %v674
          %v715 = vpack.c.b16 %v679, %v675
          %v716 = vpack.c.b16 %v684, %v680
          %v717 = vpack.c.b16 %v685, %v681
          %v718 = vpack.c.b16 %v686, %v682
          %v719 = vpack.c.b16 %v687, %v683
          %752 = vmatprep.subr.bf16.mxu0 %v717
          %753 = vmatpush1.bf16.msra.mxu0 %v716
          %754 = vmatprep.subr.bf16.mxu0 %v713
          %755 = vmatpush1.bf16.msra.mxu0 %v712
          %756 = vmatprep.subr.bf16.mxu0 %v709
          %757 = vmatpush1.bf16.msra.mxu0 %v708
          %758 = vmatprep.subr.bf16.mxu0 %v705
          %759 = vmatpush1.bf16.msra.mxu0 %v704
          %760 = vmatprep.subr.bf16.mxu0 %v701
          %761 = vmatpush1.bf16.msra.mxu0 %v700
          %762 = vmatprep.subr.bf16.mxu0 %v697
          %763 = vmatpush1.bf16.msra.mxu0 %v696
          %764 = vmatprep.subr.bf16.mxu0 %v693
          %765 = vmatpush1.bf16.msra.mxu0 %v692
          %766 = vmatprep.subr.bf16.mxu0 %v689
          %767 = vmatpush1.bf16.msra.mxu0 %v688
          %768 = vmatprep.subr.bf16.mxu0 0
          %769 = vmatpush2.bf16.msra.mxu0 0
          %770 = vmatprep.subr.bf16.mxu0 0
          %771 = vmatpush2.bf16.msra.mxu0 0
          %772 = vmatprep.subr.bf16.mxu0 0
          %773 = vmatpush2.bf16.msra.mxu0 0
          %774 = vmatprep.subr.bf16.mxu0 0
          %775 = vmatpush2.bf16.msra.mxu0 0
          %776 = vmatprep.subr.bf16.mxu0 0
          %777 = vmatpush2.bf16.msra.mxu0 0
          %778 = vmatprep.subr.bf16.mxu0 0
          %779 = vmatpush2.bf16.msra.mxu0 0
          %780 = vmatprep.subr.bf16.mxu0 0
          %781 = vmatpush2.bf16.msra.mxu0 0
          %782 = vmatprep.subr.bf16.mxu0 0
          %783 = vmatpush2.bf16.msra.mxu0 0
          %784 = vmatprep.mubr.bf16.mxu0 0
          %785 = vmatmul.mubr.bf16.gmra.mxu0 %v576
          %v786 = vpop.f32.mrf.mxu0
          %v787 = vadd.f32 0.0, %v786
          %v788 = vpop.f32.mrf.mxu0
          %v789 = vadd.f32 0.0, %v788
          %v790 = vpop.f32.mrf.mxu0
          %v791 = vadd.f32 0.0, %v790
          %v792 = vpop.f32.mrf.mxu0
          %v793 = vadd.f32 0.0, %v792
          %794 = vmatprep.mubr.bf16.mxu0 0
          %795 = vmatmul.mubr.bf16.gmra.mxu0 %v577
          %v796 = vpop.f32.mrf.mxu0
          %v797 = vadd.f32 0.0, %v796
          %v798 = vpop.f32.mrf.mxu0
          %v799 = vadd.f32 0.0, %v798
          %v800 = vpop.f32.mrf.mxu0
          %v801 = vadd.f32 0.0, %v800
          %v802 = vpop.f32.mrf.mxu0
          %v803 = vadd.f32 0.0, %v802
          %804 = vmatprep.mubr.bf16.mxu0 0
          %805 = vmatmul.mubr.bf16.gmra.mxu0 %v578
          %v806 = vpop.f32.mrf.mxu0
          %v807 = vadd.f32 0.0, %v806
          %v808 = vpop.f32.mrf.mxu0
          %v809 = vadd.f32 0.0, %v808
          %v810 = vpop.f32.mrf.mxu0
          %v811 = vadd.f32 0.0, %v810
          %v812 = vpop.f32.mrf.mxu0
          %v813 = vadd.f32 0.0, %v812
          %814 = vmatprep.mubr.bf16.mxu0 0
          %815 = vmatmul.mubr.bf16.gmra.mxu0 %v579
          %v816 = vpop.f32.mrf.mxu0
          %v817 = vadd.f32 0.0, %v816
          %v818 = vpop.f32.mrf.mxu0
          %v819 = vadd.f32 0.0, %v818
          %v820 = vpop.f32.mrf.mxu0
          %v821 = vadd.f32 0.0, %v820
          %v822 = vpop.f32.mrf.mxu0
          %v823 = vadd.f32 0.0, %v822
          %824 = vmatprep.mubr.bf16.mxu0 0
          %825 = vmatmul.mubr.bf16.gmra.mxu0 %v580
          %v826 = vpop.f32.mrf.mxu0
          %v827 = vadd.f32 0.0, %v826
          %v828 = vpop.f32.mrf.mxu0
          %v829 = vadd.f32 0.0, %v828
          %v830 = vpop.f32.mrf.mxu0
          %v831 = vadd.f32 0.0, %v830
          %v832 = vpop.f32.mrf.mxu0
          %v833 = vadd.f32 0.0, %v832
          %834 = vmatprep.mubr.bf16.mxu0 0
          %835 = vmatmul.mubr.bf16.gmra.mxu0 %v581
          %v836 = vpop.f32.mrf.mxu0
          %v837 = vadd.f32 0.0, %v836
          %v838 = vpop.f32.mrf.mxu0
          %v839 = vadd.f32 0.0, %v838
          %v840 = vpop.f32.mrf.mxu0
          %v841 = vadd.f32 0.0, %v840
          %v842 = vpop.f32.mrf.mxu0
          %v843 = vadd.f32 0.0, %v842
          %844 = vmatprep.mubr.bf16.mxu0 0
          %845 = vmatmul.mubr.bf16.gmra.mxu0 %v582
          %v846 = vpop.f32.mrf.mxu0
          %v847 = vadd.f32 0.0, %v846
          %v848 = vpop.f32.mrf.mxu0
          %v849 = vadd.f32 0.0, %v848
          %v850 = vpop.f32.mrf.mxu0
          %v851 = vadd.f32 0.0, %v850
          %v852 = vpop.f32.mrf.mxu0
          %v853 = vadd.f32 0.0, %v852
          %854 = vmatprep.mubr.bf16.mxu0 0
          %855 = vmatmul.mubr.bf16.gmra.mxu0 %v583
          %v856 = vpop.f32.mrf.mxu0
          %v857 = vadd.f32 0.0, %v856
          %v858 = vpop.f32.mrf.mxu0
          %v859 = vadd.f32 0.0, %v858
          %v860 = vpop.f32.mrf.mxu0
          %v861 = vadd.f32 0.0, %v860
          %v862 = vpop.f32.mrf.mxu0
          %v863 = vadd.f32 0.0, %v862
          %864 = vdwg.mxu0
          %865 = vmatprep.subr.bf16.mxu0 %v719
          %866 = vmatpush1.bf16.msra.mxu0 %v718
          %867 = vmatprep.subr.bf16.mxu0 %v715
          %868 = vmatpush1.bf16.msra.mxu0 %v714
          %869 = vmatprep.subr.bf16.mxu0 %v711
          %870 = vmatpush1.bf16.msra.mxu0 %v710
          %871 = vmatprep.subr.bf16.mxu0 %v707
          %872 = vmatpush1.bf16.msra.mxu0 %v706
          %873 = vmatprep.subr.bf16.mxu0 %v703
          %874 = vmatpush1.bf16.msra.mxu0 %v702
          %875 = vmatprep.subr.bf16.mxu0 %v699
          %876 = vmatpush1.bf16.msra.mxu0 %v698
          %877 = vmatprep.subr.bf16.mxu0 %v695
          %878 = vmatpush1.bf16.msra.mxu0 %v694
          %879 = vmatprep.subr.bf16.mxu0 %v691
          %880 = vmatpush1.bf16.msra.mxu0 %v690
          %881 = vmatprep.subr.bf16.mxu0 0
          %882 = vmatpush2.bf16.msra.mxu0 0
          %883 = vmatprep.subr.bf16.mxu0 0
          %884 = vmatpush2.bf16.msra.mxu0 0
          %885 = vmatprep.subr.bf16.mxu0 0
          %886 = vmatpush2.bf16.msra.mxu0 0
          %887 = vmatprep.subr.bf16.mxu0 0
          %888 = vmatpush2.bf16.msra.mxu0 0
          %889 = vmatprep.subr.bf16.mxu0 0
          %890 = vmatpush2.bf16.msra.mxu0 0
          %891 = vmatprep.subr.bf16.mxu0 0
          %892 = vmatpush2.bf16.msra.mxu0 0
          %893 = vmatprep.subr.bf16.mxu0 0
          %894 = vmatpush2.bf16.msra.mxu0 0
          %895 = vmatprep.subr.bf16.mxu0 0
          %896 = vmatpush2.bf16.msra.mxu0 0
          %897 = vmatprep.mubr.bf16.mxu0 0
          %898 = vmatmul.mubr.bf16.gmra.mxu0 %v576
          %v899 = vpop.f32.mrf.mxu0
          %v900 = vadd.f32 0.0, %v899
          %v901 = vpop.f32.mrf.mxu0
          %v902 = vadd.f32 0.0, %v901
          %v903 = vpop.f32.mrf.mxu0
          %v904 = vadd.f32 0.0, %v903
          %v905 = vpop.f32.mrf.mxu0
          %v906 = vadd.f32 0.0, %v905
          %907 = vmatprep.mubr.bf16.mxu0 0
          %908 = vmatmul.mubr.bf16.gmra.mxu0 %v577
          %v909 = vpop.f32.mrf.mxu0
          %v910 = vadd.f32 0.0, %v909
          %v911 = vpop.f32.mrf.mxu0
          %v912 = vadd.f32 0.0, %v911
          %v913 = vpop.f32.mrf.mxu0
          %v914 = vadd.f32 0.0, %v913
          %v915 = vpop.f32.mrf.mxu0
          %v916 = vadd.f32 0.0, %v915
          %917 = vmatprep.mubr.bf16.mxu0 0
          %918 = vmatmul.mubr.bf16.gmra.mxu0 %v578
          %v919 = vpop.f32.mrf.mxu0
          %v920 = vadd.f32 0.0, %v919
          %v921 = vpop.f32.mrf.mxu0
          %v922 = vadd.f32 0.0, %v921
          %v923 = vpop.f32.mrf.mxu0
          %v924 = vadd.f32 0.0, %v923
          %v925 = vpop.f32.mrf.mxu0
          %v926 = vadd.f32 0.0, %v925
          %927 = vmatprep.mubr.bf16.mxu0 0
          %928 = vmatmul.mubr.bf16.gmra.mxu0 %v579
          %v929 = vpop.f32.mrf.mxu0
          %v930 = vadd.f32 0.0, %v929
          %v931 = vpop.f32.mrf.mxu0
          %v932 = vadd.f32 0.0, %v931
          %v933 = vpop.f32.mrf.mxu0
          %v934 = vadd.f32 0.0, %v933
          %v935 = vpop.f32.mrf.mxu0
          %v936 = vadd.f32 0.0, %v935
          %937 = vmatprep.mubr.bf16.mxu0 0
          %938 = vmatmul.mubr.bf16.gmra.mxu0 %v580
          %v939 = vpop.f32.mrf.mxu0
          %v940 = vadd.f32 0.0, %v939
          %v941 = vpop.f32.mrf.mxu0
          %v942 = vadd.f32 0.0, %v941
          %v943 = vpop.f32.mrf.mxu0
          %v944 = vadd.f32 0.0, %v943
          %v945 = vpop.f32.mrf.mxu0
          %v946 = vadd.f32 0.0, %v945
          %947 = vmatprep.mubr.bf16.mxu0 0
          %948 = vmatmul.mubr.bf16.gmra.mxu0 %v581
          %v949 = vpop.f32.mrf.mxu0
          %v950 = vadd.f32 0.0, %v949
          %v951 = vpop.f32.mrf.mxu0
          %v952 = vadd.f32 0.0, %v951
          %v953 = vpop.f32.mrf.mxu0
          %v954 = vadd.f32 0.0, %v953
          %v955 = vpop.f32.mrf.mxu0
          %v956 = vadd.f32 0.0, %v955
          %957 = vmatprep.mubr.bf16.mxu0 0
          %958 = vmatmul.mubr.bf16.gmra.mxu0 %v582
          %v959 = vpop.f32.mrf.mxu0
          %v960 = vadd.f32 0.0, %v959
          %v961 = vpop.f32.mrf.mxu0
          %v962 = vadd.f32 0.0, %v961
          %v963 = vpop.f32.mrf.mxu0
          %v964 = vadd.f32 0.0, %v963
          %v965 = vpop.f32.mrf.mxu0
          %v966 = vadd.f32 0.0, %v965
          %967 = vmatprep.mubr.bf16.mxu0 0
          %968 = vmatmul.mubr.bf16.gmra.mxu0 %v583
          %v969 = vpop.f32.mrf.mxu0
          %v970 = vadd.f32 0.0, %v969
          %v971 = vpop.f32.mrf.mxu0
          %v972 = vadd.f32 0.0, %v971
          %v973 = vpop.f32.mrf.mxu0
          %v974 = vadd.f32 0.0, %v973
          %v975 = vpop.f32.mrf.mxu0
          %v976 = vadd.f32 0.0, %v975
          %977 = vdwg.mxu0
          %v978 = vpack.c.bf16 %v791, %v787
          %v979 = vpack.c.bf16 %v793, %v789
          %v980 = vpack.c.bf16 %v904, %v900
          %v981 = vpack.c.bf16 %v906, %v902
          %v982 = vpack.c.bf16 %v801, %v797
          %v983 = vpack.c.bf16 %v803, %v799
          %v984 = vpack.c.bf16 %v914, %v910
          %v985 = vpack.c.bf16 %v916, %v912
          %v986 = vpack.c.bf16 %v811, %v807
          %v987 = vpack.c.bf16 %v813, %v809
          %v988 = vpack.c.bf16 %v924, %v920
          %v989 = vpack.c.bf16 %v926, %v922
          %v990 = vpack.c.bf16 %v821, %v817
          %v991 = vpack.c.bf16 %v823, %v819
          %v992 = vpack.c.bf16 %v934, %v930
          %v993 = vpack.c.bf16 %v936, %v932
          %v994 = vpack.c.bf16 %v831, %v827
          %v995 = vpack.c.bf16 %v833, %v829
          %v996 = vpack.c.bf16 %v944, %v940
          %v997 = vpack.c.bf16 %v946, %v942
          %v998 = vpack.c.bf16 %v841, %v837
          %v999 = vpack.c.bf16 %v843, %v839
          %v1000 = vpack.c.bf16 %v954, %v950
          %v1001 = vpack.c.bf16 %v956, %v952
          %v1002 = vpack.c.bf16 %v851, %v847
          %v1003 = vpack.c.bf16 %v853, %v849
          %v1004 = vpack.c.bf16 %v964, %v960
          %v1005 = vpack.c.bf16 %v966, %v962
          %v1006 = vpack.c.bf16 %v861, %v857
          %v1007 = vpack.c.bf16 %v863, %v859
          %v1008 = vpack.c.bf16 %v974, %v970
          %v1009 = vpack.c.bf16 %v976, %v972
          %v1042 = vunpack.c.l.b16 %v978
          %v1043 = vunpack.c.l.b16 %v979
          %v1044 = vunpack.c.l.b16 %v980
          %v1045 = vunpack.c.l.b16 %v981
          %v1046 = vunpack.c.h.b16 %v978
          %v1047 = vunpack.c.h.b16 %v979
          %v1048 = vunpack.c.h.b16 %v980
          %v1049 = vunpack.c.h.b16 %v981
          %v1050 = vunpack.c.l.b16 %v982
          %v1051 = vunpack.c.l.b16 %v983
          %v1052 = vunpack.c.l.b16 %v984
          %v1053 = vunpack.c.l.b16 %v985
          %v1054 = vunpack.c.h.b16 %v982
          %v1055 = vunpack.c.h.b16 %v983
          %v1056 = vunpack.c.h.b16 %v984
          %v1057 = vunpack.c.h.b16 %v985
          %v1058 = vunpack.c.l.b16 %v986
          %v1059 = vunpack.c.l.b16 %v987
          %v1060 = vunpack.c.l.b16 %v988
          %v1061 = vunpack.c.l.b16 %v989
          %v1062 = vunpack.c.h.b16 %v986
          %v1063 = vunpack.c.h.b16 %v987
          %v1064 = vunpack.c.h.b16 %v988
          %v1065 = vunpack.c.h.b16 %v989
          %v1066 = vunpack.c.l.b16 %v990
          %v1067 = vunpack.c.l.b16 %v991
          %v1068 = vunpack.c.l.b16 %v992
          %v1069 = vunpack.c.l.b16 %v993
          %v1070 = vunpack.c.h.b16 %v990
          %v1071 = vunpack.c.h.b16 %v991
          %v1072 = vunpack.c.h.b16 %v992
          %v1073 = vunpack.c.h.b16 %v993
          %v1074 = vunpack.c.l.b16 %v994
          %v1075 = vunpack.c.l.b16 %v995
          %v1076 = vunpack.c.l.b16 %v996
          %v1077 = vunpack.c.l.b16 %v997
          %v1078 = vunpack.c.h.b16 %v994
          %v1079 = vunpack.c.h.b16 %v995
          %v1080 = vunpack.c.h.b16 %v996
          %v1081 = vunpack.c.h.b16 %v997
          %v1082 = vunpack.c.l.b16 %v998
          %v1083 = vunpack.c.l.b16 %v999
          %v1084 = vunpack.c.l.b16 %v1000
          %v1085 = vunpack.c.l.b16 %v1001
          %v1086 = vunpack.c.h.b16 %v998
          %v1087 = vunpack.c.h.b16 %v999
          %v1088 = vunpack.c.h.b16 %v1000
          %v1089 = vunpack.c.h.b16 %v1001
          %v1090 = vunpack.c.l.b16 %v1002
          %v1091 = vunpack.c.l.b16 %v1003
          %v1092 = vunpack.c.l.b16 %v1004
          %v1093 = vunpack.c.l.b16 %v1005
          %v1094 = vunpack.c.h.b16 %v1002
          %v1095 = vunpack.c.h.b16 %v1003
          %v1096 = vunpack.c.h.b16 %v1004
          %v1097 = vunpack.c.h.b16 %v1005
          %v1098 = vunpack.c.l.b16 %v1006
          %v1099 = vunpack.c.l.b16 %v1007
          %v1100 = vunpack.c.l.b16 %v1008
          %v1101 = vunpack.c.l.b16 %v1009
          %v1102 = vunpack.c.h.b16 %v1006
          %v1103 = vunpack.c.h.b16 %v1007
          %v1104 = vunpack.c.h.b16 %v1008
          %v1105 = vunpack.c.h.b16 %v1009
          %v1106 = vpack.c.b16 %v1043, %v1042
          %v1107 = vpack.c.b16 %v1045, %v1044
          %v1108 = vpack.c.b16 %v1047, %v1046
          %v1109 = vpack.c.b16 %v1049, %v1048
          %v1110 = vpack.c.b16 %v1051, %v1050
          %v1111 = vpack.c.b16 %v1053, %v1052
          %v1112 = vpack.c.b16 %v1055, %v1054
          %v1113 = vpack.c.b16 %v1057, %v1056
          %v1114 = vpack.c.b16 %v1059, %v1058
          %v1115 = vpack.c.b16 %v1061, %v1060
          %v1116 = vpack.c.b16 %v1063, %v1062
          %v1117 = vpack.c.b16 %v1065, %v1064
          %v1118 = vpack.c.b16 %v1067, %v1066
          %v1119 = vpack.c.b16 %v1069, %v1068
          %v1120 = vpack.c.b16 %v1071, %v1070
          %v1121 = vpack.c.b16 %v1073, %v1072
          %v1122 = vpack.c.b16 %v1075, %v1074
          %v1123 = vpack.c.b16 %v1077, %v1076
          %v1124 = vpack.c.b16 %v1079, %v1078
          %v1125 = vpack.c.b16 %v1081, %v1080
          %v1126 = vpack.c.b16 %v1083, %v1082
          %v1127 = vpack.c.b16 %v1085, %v1084
          %v1128 = vpack.c.b16 %v1087, %v1086
          %v1129 = vpack.c.b16 %v1089, %v1088
          %v1130 = vpack.c.b16 %v1091, %v1090
          %v1131 = vpack.c.b16 %v1093, %v1092
          %v1132 = vpack.c.b16 %v1095, %v1094
          %v1133 = vpack.c.b16 %v1097, %v1096
          %v1134 = vpack.c.b16 %v1099, %v1098
          %v1135 = vpack.c.b16 %v1101, %v1100
          %v1136 = vpack.c.b16 %v1103, %v1102
          %v1137 = vpack.c.b16 %v1105, %v1104
          %s1170 = sshra.s32 %s495, 3
          %s1171 = sand.u32 %s495, 7
          %s1172 = smul.u32 %s1170, 4
          %s1173 = smul.addr %s1172, 4
          %s1174 = scalar_lea.vmem [#allocation2], %s1173
          %1175 = vst [vmem:[%s1174] sm:$0xff] %v1106
          %1176 = vst [vmem:[%s1174 + $0x8] sm:$0xff] %v1107
          %1177 = vst [vmem:[%s1174 + $0x10] sm:$0xff] %v1108
          %1178 = vst [vmem:[%s1174 + $0x18] sm:$0xff] %v1109
          %1179 = vst [vmem:[%s1174 + $0x20] sm:$0xff] %v1110
          %1180 = vst [vmem:[%s1174 + $0x28] sm:$0xff] %v1111
          %1181 = vst [vmem:[%s1174 + $0x30] sm:$0xff] %v1112
          %1182 = vst [vmem:[%s1174 + $0x38] sm:$0xff] %v1113
          %1183 = vst [vmem:[%s1174 + $0x40] sm:$0xff] %v1114
          %1184 = vst [vmem:[%s1174 + $0x48] sm:$0xff] %v1115
          %1185 = vst [vmem:[%s1174 + $0x50] sm:$0xff] %v1116
          %1186 = vst [vmem:[%s1174 + $0x58] sm:$0xff] %v1117
          %1187 = vst [vmem:[%s1174 + $0x60] sm:$0xff] %v1118
          %1188 = vst [vmem:[%s1174 + $0x68] sm:$0xff] %v1119
          %1189 = vst [vmem:[%s1174 + $0x70] sm:$0xff] %v1120
          %1190 = vst [vmem:[%s1174 + $0x78] sm:$0xff] %v1121
          %1191 = vst [vmem:[%s1174 + $0x80] sm:$0xff] %v1122
          %1192 = vst [vmem:[%s1174 + $0x88] sm:$0xff] %v1123
          %1193 = vst [vmem:[%s1174 + $0x90] sm:$0xff] %v1124
          %1194 = vst [vmem:[%s1174 + $0x98] sm:$0xff] %v1125
          %1195 = vst [vmem:[%s1174 + $0xa0] sm:$0xff] %v1126
          %1196 = vst [vmem:[%s1174 + $0xa8] sm:$0xff] %v1127
          %1197 = vst [vmem:[%s1174 + $0xb0] sm:$0xff] %v1128
          %1198 = vst [vmem:[%s1174 + $0xb8] sm:$0xff] %v1129
          %1199 = vst [vmem:[%s1174 + $0xc0] sm:$0xff] %v1130
          %1200 = vst [vmem:[%s1174 + $0xc8] sm:$0xff] %v1131
          %1201 = vst [vmem:[%s1174 + $0xd0] sm:$0xff] %v1132
          %1202 = vst [vmem:[%s1174 + $0xd8] sm:$0xff] %v1133
          %1203 = vst [vmem:[%s1174 + $0xe0] sm:$0xff] %v1134
          %1204 = vst [vmem:[%s1174 + $0xe8] sm:$0xff] %v1135
          %1205 = vst [vmem:[%s1174 + $0xf0] sm:$0xff] %v1136
          %1206 = vst [vmem:[%s1174 + $0xf8] sm:$0xff] %v1137
        $region96: #{tpu_custom_call.1} parent=63 // pred_fallthru
          _
        %p1207 = scmp.gt.s32.totalorder %s29, 0
        // Predicated region
        $region97: #{tpu_custom_call.1} parent=63 // pred_check
          %p1208 = pneg %p1207
        $region98: #{tpu_custom_call.1} parent=63 // pred_check_branch
          %1210 = sbr.rel (%p1208) target = $region100
        $region99: #{tpu_custom_call.1} parent=63 // pred_region
          %v1211 = vld [vmem:[%s1] sm:$0xff]
          %v1212 = vld [vmem:[%s1 + $0x8] sm:$0xff]
          %v1213 = vld [vmem:[%s4] sm:$0xf]
          %v1215 = vlaneseq
          %v1216 = vshrl.u32 %v1215, 7
          %v1217 = vsub.s32 0, %v1216
          %v1218 = vrot.slane %v1213, %v1217
          %v1219 = vlaneseq
          %v1220 = vshrl.u32 %v1219, 7
          %v1221 = vsub.s32 1, %v1220
          %v1222 = vrot.slane %v1213, %v1221
          %v1223 = vlaneseq
          %v1224 = vshrl.u32 %v1223, 7
          %v1225 = vsub.s32 2, %v1224
          %v1226 = vrot.slane %v1213, %v1225
          %v1227 = vlaneseq
          %v1228 = vshrl.u32 %v1227, 7
          %v1229 = vsub.s32 3, %v1228
          %v1230 = vrot.slane %v1213, %v1229
          %s1235 = ssub.s32 %s29, 1
          %s1236 = smul.u32 %s1235, 8
          %s1237 = sadd.s32 %s29, 1
          %p1238 = scmp.lt.s32.totalorder %s1237, 0
          %s1239 = ssub.s32 0, %s1237
          %s1240 = scalar_select %p1238, %s1239, %s1237
          %s1241 = sand.u32 %s1240, 1
          %s1242 = ssub.s32 0, %s1241
          %s1243 = scalar_select %p1238, %s1242, %s1241
          %p1244 = scmp.ne.s32.totalorder %s1243, 0
          %p1245 = scmp.lt.s32.totalorder %s1243, 0
          %p1246 = pnand %p1245, %p1244
          %p1247 = pneg %p1246
          %s1248 = sadd.s32 %s1243, 2
          %s1249 = scalar_select %p1247, %s1248, %s1243
          %s1250 = smul.u32 %s1249, 128
          %v1251 = vld [vmem:[#allocation3] sm:$0xf]
          %v1252 = vld [vmem:[#allocation3 + $0x4] sm:$0xf]
          %v1253 = vld [vmem:[#allocation4] sm:$0xff]
          %v1254 = vld [vmem:[#allocation4 + $0x8] sm:$0xff]
          %s1255 = sshra.s32 %s1250, 3
          %s1256 = sand.u32 %s1250, 7
          %s1257 = smul.u32 %s1255, 4
          %s1258 = smul.addr %s1257, 4
          %s1259 = scalar_lea.vmem [#allocation2], %s1258
          %v1260 = vld [vmem:[%s1259] sm:$0xff]
          %v1261 = vld [vmem:[%s1259 + $0x8] sm:$0xff]
          %v1262 = vld [vmem:[%s1259 + $0x10] sm:$0xff]
          %v1263 = vld [vmem:[%s1259 + $0x18] sm:$0xff]
          %v1264 = vunpack.c.l.bf16 %v1260
          %v1265 = vunpack.c.h.bf16 %v1260
          %v1266 = vunpack.c.l.bf16 %v1261
          %v1267 = vunpack.c.h.bf16 %v1261
          %v1268 = vunpack.c.l.bf16 %v1262
          %v1269 = vunpack.c.h.bf16 %v1262
          %v1270 = vunpack.c.l.bf16 %v1263
          %v1271 = vunpack.c.h.bf16 %v1263
          %v1272 = vadd.f32 %v1264, %v1218
          %v1273 = vadd.f32 %v1265, %v1222
          %v1274 = vadd.f32 %v1266, %v1226
          %v1275 = vadd.f32 %v1267, %v1230
          %v1276 = vadd.f32 %v1268, %v1218
          %v1277 = vadd.f32 %v1269, %v1222
          %v1278 = vadd.f32 %v1270, %v1226
          %v1279 = vadd.f32 %v1271, %v1230
          %v1280 = vld [vmem:[#allocation10] sm:$0xff]
          %v1281 = vld [vmem:[#allocation10 + $0x8] sm:$0xff]
          %v1282 = vld [vmem:[#allocation10 + $0x10] sm:$0xff]
          %v1283 = vld [vmem:[#allocation10 + $0x18] sm:$0xff]
          %v1284 = vld [vmem:[#allocation10 + $0x20] sm:$0xff]
          %v1285 = vld [vmem:[#allocation10 + $0x28] sm:$0xff]
          %v1286 = vld [vmem:[#allocation10 + $0x30] sm:$0xff]
          %v1287 = vld [vmem:[#allocation10 + $0x38] sm:$0xff]
          %v1288 = vld [vmem:[#allocation10 + $0x40] sm:$0xff]
          %v1289 = vld [vmem:[#allocation10 + $0x48] sm:$0xff]
          %v1290 = vld [vmem:[#allocation10 + $0x50] sm:$0xff]
          %v1291 = vld [vmem:[#allocation10 + $0x58] sm:$0xff]
          %v1292 = vld [vmem:[#allocation10 + $0x60] sm:$0xff]
          %v1293 = vld [vmem:[#allocation10 + $0x68] sm:$0xff]
          %v1294 = vld [vmem:[#allocation10 + $0x70] sm:$0xff]
          %v1295 = vld [vmem:[#allocation10 + $0x78] sm:$0xff]
          %v1296 = vld [vmem:[#allocation10 + $0x80] sm:$0xff]
          %v1297 = vld [vmem:[#allocation10 + $0x88] sm:$0xff]
          %v1298 = vld [vmem:[#allocation10 + $0x90] sm:$0xff]
          %v1299 = vld [vmem:[#allocation10 + $0x98] sm:$0xff]
          %v1300 = vld [vmem:[#allocation10 + $0xa0] sm:$0xff]
          %v1301 = vld [vmem:[#allocation10 + $0xa8] sm:$0xff]
          %v1302 = vld [vmem:[#allocation10 + $0xb0] sm:$0xff]
          %v1303 = vld [vmem:[#allocation10 + $0xb8] sm:$0xff]
          %v1304 = vld [vmem:[#allocation10 + $0xc0] sm:$0xff]
          %v1305 = vld [vmem:[#allocation10 + $0xc8] sm:$0xff]
          %v1306 = vld [vmem:[#allocation10 + $0xd0] sm:$0xff]
          %v1307 = vld [vmem:[#allocation10 + $0xd8] sm:$0xff]
          %v1308 = vld [vmem:[#allocation10 + $0xe0] sm:$0xff]
          %v1309 = vld [vmem:[#allocation10 + $0xe8] sm:$0xff]
          %v1310 = vld [vmem:[#allocation10 + $0xf0] sm:$0xff]
          %v1311 = vld [vmem:[#allocation10 + $0xf8] sm:$0xff]
          %v1314 = vunpack.c.l.b16 %v1251
          %v1315 = vunpack.c.l.b16 %v1252
          %v1316 = vpack.c.b16 %v1315, %v1314
          %v1350 = vunpack.c.l.b16 %v1280
          %v1351 = vunpack.c.h.b16 %v1280
          %v1352 = vunpack.c.l.b16 %v1281
          %v1353 = vunpack.c.h.b16 %v1281
          %v1354 = vunpack.c.l.b16 %v1282
          %v1355 = vunpack.c.h.b16 %v1282
          %v1356 = vunpack.c.l.b16 %v1283
          %v1357 = vunpack.c.h.b16 %v1283
          %v1358 = vunpack.c.l.b16 %v1284
          %v1359 = vunpack.c.h.b16 %v1284
          %v1360 = vunpack.c.l.b16 %v1285
          %v1361 = vunpack.c.h.b16 %v1285
          %v1362 = vunpack.c.l.b16 %v1286
          %v1363 = vunpack.c.h.b16 %v1286
          %v1364 = vunpack.c.l.b16 %v1287
          %v1365 = vunpack.c.h.b16 %v1287
          %v1366 = vunpack.c.l.b16 %v1288
          %v1367 = vunpack.c.h.b16 %v1288
          %v1368 = vunpack.c.l.b16 %v1289
          %v1369 = vunpack.c.h.b16 %v1289
          %v1370 = vunpack.c.l.b16 %v1290
          %v1371 = vunpack.c.h.b16 %v1290
          %v1372 = vunpack.c.l.b16 %v1291
          %v1373 = vunpack.c.h.b16 %v1291
          %v1374 = vunpack.c.l.b16 %v1292
          %v1375 = vunpack.c.h.b16 %v1292
          %v1376 = vunpack.c.l.b16 %v1293
          %v1377 = vunpack.c.h.b16 %v1293
          %v1378 = vunpack.c.l.b16 %v1294
          %v1379 = vunpack.c.h.b16 %v1294
          %v1380 = vunpack.c.l.b16 %v1295
          %v1381 = vunpack.c.h.b16 %v1295
          %v1382 = vunpack.c.l.b16 %v1296
          %v1383 = vunpack.c.h.b16 %v1296
          %v1384 = vunpack.c.l.b16 %v1297
          %v1385 = vunpack.c.h.b16 %v1297
          %v1386 = vunpack.c.l.b16 %v1298
          %v1387 = vunpack.c.h.b16 %v1298
          %v1388 = vunpack.c.l.b16 %v1299
          %v1389 = vunpack.c.h.b16 %v1299
          %v1390 = vunpack.c.l.b16 %v1300
          %v1391 = vunpack.c.h.b16 %v1300
          %v1392 = vunpack.c.l.b16 %v1301
          %v1393 = vunpack.c.h.b16 %v1301
          %v1394 = vunpack.c.l.b16 %v1302
          %v1395 = vunpack.c.h.b16 %v1302
          %v1396 = vunpack.c.l.b16 %v1303
          %v1397 = vunpack.c.h.b16 %v1303
          %v1398 = vunpack.c.l.b16 %v1304
          %v1399 = vunpack.c.h.b16 %v1304
          %v1400 = vunpack.c.l.b16 %v1305
          %v1401 = vunpack.c.h.b16 %v1305
          %v1402 = vunpack.c.l.b16 %v1306
          %v1403 = vunpack.c.h.b16 %v1306
          %v1404 = vunpack.c.l.b16 %v1307
          %v1405 = vunpack.c.h.b16 %v1307
          %v1406 = vunpack.c.l.b16 %v1308
          %v1407 = vunpack.c.h.b16 %v1308
          %v1408 = vunpack.c.l.b16 %v1309
          %v1409 = vunpack.c.h.b16 %v1309
          %v1410 = vunpack.c.l.b16 %v1310
          %v1411 = vunpack.c.h.b16 %v1310
          %v1412 = vunpack.c.l.b16 %v1311
          %v1413 = vunpack.c.h.b16 %v1311
          %v1414 = vpack.c.b16 %v1354, %v1350
          %v1415 = vpack.c.b16 %v1355, %v1351
          %v1416 = vpack.c.b16 %v1356, %v1352
          %v1417 = vpack.c.b16 %v1357, %v1353
          %v1418 = vpack.c.b16 %v1362, %v1358
          %v1419 = vpack.c.b16 %v1363, %v1359
          %v1420 = vpack.c.b16 %v1364, %v1360
          %v1421 = vpack.c.b16 %v1365, %v1361
          %v1422 = vpack.c.b16 %v1370, %v1366
          %v1423 = vpack.c.b16 %v1371, %v1367
          %v1424 = vpack.c.b16 %v1372, %v1368
          %v1425 = vpack.c.b16 %v1373, %v1369
          %v1426 = vpack.c.b16 %v1378, %v1374
          %v1427 = vpack.c.b16 %v1379, %v1375
          %v1428 = vpack.c.b16 %v1380, %v1376
          %v1429 = vpack.c.b16 %v1381, %v1377
          %v1430 = vpack.c.b16 %v1386, %v1382
          %v1431 = vpack.c.b16 %v1387, %v1383
          %v1432 = vpack.c.b16 %v1388, %v1384
          %v1433 = vpack.c.b16 %v1389, %v1385
          %v1434 = vpack.c.b16 %v1394, %v1390
          %v1435 = vpack.c.b16 %v1395, %v1391
          %v1436 = vpack.c.b16 %v1396, %v1392
          %v1437 = vpack.c.b16 %v1397, %v1393
          %v1438 = vpack.c.b16 %v1402, %v1398
          %v1439 = vpack.c.b16 %v1403, %v1399
          %v1440 = vpack.c.b16 %v1404, %v1400
          %v1441 = vpack.c.b16 %v1405, %v1401
          %v1442 = vpack.c.b16 %v1410, %v1406
          %v1443 = vpack.c.b16 %v1411, %v1407
          %v1444 = vpack.c.b16 %v1412, %v1408
          %v1445 = vpack.c.b16 %v1413, %v1409
          %1478 = vmatprep.subr.bf16.mxu0 %v1443
          %1479 = vmatpush1.bf16.msra.mxu0 %v1442
          %1480 = vmatprep.subr.bf16.mxu0 %v1439
          %1481 = vmatpush1.bf16.msra.mxu0 %v1438
          %1482 = vmatprep.subr.bf16.mxu0 %v1435
          %1483 = vmatpush1.bf16.msra.mxu0 %v1434
          %1484 = vmatprep.subr.bf16.mxu0 %v1431
          %1485 = vmatpush1.bf16.msra.mxu0 %v1430
          %1486 = vmatprep.subr.bf16.mxu0 %v1427
          %1487 = vmatpush1.bf16.msra.mxu0 %v1426
          %1488 = vmatprep.subr.bf16.mxu0 %v1423
          %1489 = vmatpush1.bf16.msra.mxu0 %v1422
          %1490 = vmatprep.subr.bf16.mxu0 %v1419
          %1491 = vmatpush1.bf16.msra.mxu0 %v1418
          %1492 = vmatprep.subr.bf16.mxu0 %v1415
          %1493 = vmatpush1.bf16.msra.mxu0 %v1414
          %1494 = vmatprep.subr.bf16.mxu0 0
          %1495 = vmatpush2.bf16.msra.mxu0 0
          %1496 = vmatprep.subr.bf16.mxu0 0
          %1497 = vmatpush2.bf16.msra.mxu0 0
          %1498 = vmatprep.subr.bf16.mxu0 0
          %1499 = vmatpush2.bf16.msra.mxu0 0
          %1500 = vmatprep.subr.bf16.mxu0 0
          %1501 = vmatpush2.bf16.msra.mxu0 0
          %1502 = vmatprep.subr.bf16.mxu0 0
          %1503 = vmatpush2.bf16.msra.mxu0 0
          %1504 = vmatprep.subr.bf16.mxu0 0
          %1505 = vmatpush2.bf16.msra.mxu0 0
          %1506 = vmatprep.subr.bf16.mxu0 0
          %1507 = vmatpush2.bf16.msra.mxu0 0
          %1508 = vmatprep.subr.bf16.mxu0 0
          %1509 = vmatpush2.bf16.msra.mxu0 0
          %1510 = vmatprep.mubr.bf16.mxu0 0
          %1511 = vmatmul.mubr.bf16.gmra.mxu0 %v1316
          %v1512 = vpop.f32.mrf.mxu0
          %v1513 = vadd.f32 0.0, %v1512
          %v1514 = vpop.f32.mrf.mxu0
          %v1515 = vadd.f32 0.0, %v1514
          %v1516 = vpop.f32.mrf.mxu0
          %v1517 = vadd.f32 0.0, %v1516
          %v1518 = vpop.f32.mrf.mxu0
          %v1519 = vadd.f32 0.0, %v1518
          %1520 = vdwg.mxu0
          %1521 = vmatprep.subr.bf16.mxu0 %v1445
          %1522 = vmatpush1.bf16.msra.mxu0 %v1444
          %1523 = vmatprep.subr.bf16.mxu0 %v1441
          %1524 = vmatpush1.bf16.msra.mxu0 %v1440
          %1525 = vmatprep.subr.bf16.mxu0 %v1437
          %1526 = vmatpush1.bf16.msra.mxu0 %v1436
          %1527 = vmatprep.subr.bf16.mxu0 %v1433
          %1528 = vmatpush1.bf16.msra.mxu0 %v1432
          %1529 = vmatprep.subr.bf16.mxu0 %v1429
          %1530 = vmatpush1.bf16.msra.mxu0 %v1428
          %1531 = vmatprep.subr.bf16.mxu0 %v1425
          %1532 = vmatpush1.bf16.msra.mxu0 %v1424
          %1533 = vmatprep.subr.bf16.mxu0 %v1421
          %1534 = vmatpush1.bf16.msra.mxu0 %v1420
          %1535 = vmatprep.subr.bf16.mxu0 %v1417
          %1536 = vmatpush1.bf16.msra.mxu0 %v1416
          %1537 = vmatprep.subr.bf16.mxu0 0
          %1538 = vmatpush2.bf16.msra.mxu0 0
          %1539 = vmatprep.subr.bf16.mxu0 0
          %1540 = vmatpush2.bf16.msra.mxu0 0
          %1541 = vmatprep.subr.bf16.mxu0 0
          %1542 = vmatpush2.bf16.msra.mxu0 0
          %1543 = vmatprep.subr.bf16.mxu0 0
          %1544 = vmatpush2.bf16.msra.mxu0 0
          %1545 = vmatprep.subr.bf16.mxu0 0
          %1546 = vmatpush2.bf16.msra.mxu0 0
          %1547 = vmatprep.subr.bf16.mxu0 0
          %1548 = vmatpush2.bf16.msra.mxu0 0
          %1549 = vmatprep.subr.bf16.mxu0 0
          %1550 = vmatpush2.bf16.msra.mxu0 0
          %1551 = vmatprep.subr.bf16.mxu0 0
          %1552 = vmatpush2.bf16.msra.mxu0 0
          %1553 = vmatprep.mubr.bf16.mxu0 0
          %1554 = vmatmul.mubr.bf16.gmra.mxu0 %v1316
          %v1555 = vpop.f32.mrf.mxu0
          %v1556 = vadd.f32 0.0, %v1555
          %v1557 = vpop.f32.mrf.mxu0
          %v1558 = vadd.f32 0.0, %v1557
          %v1559 = vpop.f32.mrf.mxu0
          %v1560 = vadd.f32 0.0, %v1559
          %v1561 = vpop.f32.mrf.mxu0
          %v1562 = vadd.f32 0.0, %v1561
          %1563 = vdwg.mxu0
          %v1564 = vadd.f32 %v1272, %v1513
          %v1565 = vadd.f32 %v1273, %v1515
          %v1566 = vadd.f32 %v1274, %v1556
          %v1567 = vadd.f32 %v1275, %v1558
          %v1568 = vadd.f32 %v1276, %v1517
          %v1569 = vadd.f32 %v1277, %v1519
          %v1570 = vadd.f32 %v1278, %v1560
          %v1571 = vadd.f32 %v1279, %v1562
          %v1572 = vpack.c.bf16 %v1568, %v1564
          %v1573 = vpack.c.bf16 %v1569, %v1565
          %v1574 = vpack.c.bf16 %v1570, %v1566
          %v1575 = vpack.c.bf16 %v1571, %v1567
          %v1576 = vxor.u32 %v1572, 2147516416
          %v1578 = vmul.bf16 %v1576, 1069105081
          %v1579 = vpow.bf16.pop %v1578
          %v1580 = vadd.bf16 %v1579, 1065369472
          %v1581 = vrcp.bf16.pop %v1580
          %v1582 = vmul.bf16 1065369472, %v1581
          %v1583 = vxor.u32 %v1573, 2147516416
          %v1585 = vmul.bf16 %v1583, 1069105081
          %v1586 = vpow.bf16.pop %v1585
          %v1587 = vadd.bf16 %v1586, 1065369472
          %v1588 = vrcp.bf16.pop %v1587
          %v1589 = vmul.bf16 1065369472, %v1588
          %v1590 = vtanh.bf16.pop %v1574
          %v1591 = vxor.u32 %v1575, 2147516416
          %v1593 = vmul.bf16 %v1591, 1069105081
          %v1594 = vpow.bf16.pop %v1593
          %v1595 = vadd.bf16 %v1594, 1065369472
          %v1596 = vrcp.bf16.pop %v1595
          %v1597 = vmul.bf16 1065369472, %v1596
          %v1598 = vunpack.c.l.bf16 %v1589
          %v1599 = vunpack.c.h.bf16 %v1589
          %v1600 = vmul.f32 %v1598, %v1253
          %v1601 = vmul.f32 %v1599, %v1254
          %v1602 = vmul.bf16 %v1582, %v1590
          %v1603 = vunpack.c.l.bf16 %v1602
          %v1604 = vunpack.c.h.bf16 %v1602
          %v1605 = vadd.f32 %v1600, %v1603
          %v1606 = vadd.f32 %v1601, %v1604
          %v1607 = vpack.c.bf16 %v1606, %v1605
          %v1608 = vtanh.bf16.pop %v1607
          %v1609 = vmul.bf16 %v1597, %v1608
          %v1610 = vstv %s1236
          %vm1611 = vcmp.lt.s32.totalorder %v1610, %v1211
          %vm1612 = vcmp.lt.s32.totalorder %v1610, %v1212
          %v1613 = vsel %vm1611, 1, 0
          %v1614 = vsel %vm1612, 1, 0
          %1615 = vset.pattern.permute.xlu0 0
          %1616 = vperm.xlu0 %1615, %v1613
          %v1617 = vpop.permute.xlu0 %1616
          %1618 = vset.pattern.permute.xlu0 0
          %1619 = vperm.xlu0 %1618, %v1614
          %v1620 = vpop.permute.xlu0 %1619
          %vm1621 = vcmp.eq.s32.totalorder %v1617, 1
          %vm1622 = vcmp.eq.s32.totalorder %v1620, 1
          %vm1623 = vmpackc.low %vm1621, %vm1621
          %vm1624 = vmpackc.low %vm1622, %vm1622
          %v1625 = vsel %vm1623, 65537, 0
          %v1626 = vsel %vm1624, 65537, 0
          %v1627 = vunpack.c.l.b16 %v1625
          %v1628 = vunpack.c.l.b16 %v1626
          %v1629 = vpack.c.b16 %v1628, %v1627
          %vm1630 = vcmp.ne.s16.totalorder %v1629, 0
          %v1631 = vsel %vm1630, %v1609, %v1316
          %v1632 = vsel %vm1621, %v1605, %v1253
          %v1633 = vsel %vm1622, %v1606, %v1254
          %s1634 = sadd.s32 %s1250, 16
          %s1635 = sshra.s32 %s1634, 3
          %s1636 = sand.u32 %s1634, 7
          %s1637 = smul.u32 %s1635, 4
          %s1638 = smul.addr %s1637, 4
          %s1639 = scalar_lea.vmem [#allocation2], %s1638
          %v1640 = vld [vmem:[%s1639] sm:$0xff]
          %v1641 = vld [vmem:[%s1639 + $0x8] sm:$0xff]
          %v1642 = vld [vmem:[%s1639 + $0x10] sm:$0xff]
          %v1643 = vld [vmem:[%s1639 + $0x18] sm:$0xff]
          %v1644 = vunpack.c.l.bf16 %v1640
          %v1645 = vunpack.c.h.bf16 %v1640
          %v1646 = vunpack.c.l.bf16 %v1641
          %v1647 = vunpack.c.h.bf16 %v1641
          %v1648 = vunpack.c.l.bf16 %v1642
          %v1649 = vunpack.c.h.bf16 %v1642
          %v1650 = vunpack.c.l.bf16 %v1643
          %v1651 = vunpack.c.h.bf16 %v1643
          %v1652 = vadd.f32 %v1644, %v1218
          %v1653 = vadd.f32 %v1645, %v1222
          %v1654 = vadd.f32 %v1646, %v1226
          %v1655 = vadd.f32 %v1647, %v1230
          %v1656 = vadd.f32 %v1648, %v1218
          %v1657 = vadd.f32 %v1649, %v1222
          %v1658 = vadd.f32 %v1650, %v1226
          %v1659 = vadd.f32 %v1651, %v1230
          %1660 = vmatprep.subr.bf16.mxu0 %v1443
          %1661 = vmatpush1.bf16.msra.mxu0 %v1442
          %1662 = vmatprep.subr.bf16.mxu0 %v1439
          %1663 = vmatpush1.bf16.msra.mxu0 %v1438
          %1664 = vmatprep.subr.bf16.mxu0 %v1435
          %1665 = vmatpush1.bf16.msra.mxu0 %v1434
          %1666 = vmatprep.subr.bf16.mxu0 %v1431
          %1667 = vmatpush1.bf16.msra.mxu0 %v1430
          %1668 = vmatprep.subr.bf16.mxu0 %v1427
          %1669 = vmatpush1.bf16.msra.mxu0 %v1426
          %1670 = vmatprep.subr.bf16.mxu0 %v1423
          %1671 = vmatpush1.bf16.msra.mxu0 %v1422
          %1672 = vmatprep.subr.bf16.mxu0 %v1419
          %1673 = vmatpush1.bf16.msra.mxu0 %v1418
          %1674 = vmatprep.subr.bf16.mxu0 %v1415
          %1675 = vmatpush1.bf16.msra.mxu0 %v1414
          %1676 = vmatprep.subr.bf16.mxu0 0
          %1677 = vmatpush2.bf16.msra.mxu0 0
          %1678 = vmatprep.subr.bf16.mxu0 0
          %1679 = vmatpush2.bf16.msra.mxu0 0
          %1680 = vmatprep.subr.bf16.mxu0 0
          %1681 = vmatpush2.bf16.msra.mxu0 0
          %1682 = vmatprep.subr.bf16.mxu0 0
          %1683 = vmatpush2.bf16.msra.mxu0 0
          %1684 = vmatprep.subr.bf16.mxu0 0
          %1685 = vmatpush2.bf16.msra.mxu0 0
          %1686 = vmatprep.subr.bf16.mxu0 0
          %1687 = vmatpush2.bf16.msra.mxu0 0
          %1688 = vmatprep.subr.bf16.mxu0 0
          %1689 = vmatpush2.bf16.msra.mxu0 0
          %1690 = vmatprep.subr.bf16.mxu0 0
          %1691 = vmatpush2.bf16.msra.mxu0 0
          %1692 = vmatprep.mubr.bf16.mxu0 0
          %1693 = vmatmul.mubr.bf16.gmra.mxu0 %v1631
          %v1694 = vpop.f32.mrf.mxu0
          %v1695 = vadd.f32 0.0, %v1694
          %v1696 = vpop.f32.mrf.mxu0
          %v1697 = vadd.f32 0.0, %v1696
          %v1698 = vpop.f32.mrf.mxu0
          %v1699 = vadd.f32 0.0, %v1698
          %v1700 = vpop.f32.mrf.mxu0
          %v1701 = vadd.f32 0.0, %v1700
          %1702 = vdwg.mxu0
          %1703 = vmatprep.subr.bf16.mxu0 %v1445
          %1704 = vmatpush1.bf16.msra.mxu0 %v1444
          %1705 = vmatprep.subr.bf16.mxu0 %v1441
          %1706 = vmatpush1.bf16.msra.mxu0 %v1440
          %1707 = vmatprep.subr.bf16.mxu0 %v1437
          %1708 = vmatpush1.bf16.msra.mxu0 %v1436
          %1709 = vmatprep.subr.bf16.mxu0 %v1433
          %1710 = vmatpush1.bf16.msra.mxu0 %v1432
          %1711 = vmatprep.subr.bf16.mxu0 %v1429
          %1712 = vmatpush1.bf16.msra.mxu0 %v1428
          %1713 = vmatprep.subr.bf16.mxu0 %v1425
          %1714 = vmatpush1.bf16.msra.mxu0 %v1424
          %1715 = vmatprep.subr.bf16.mxu0 %v1421
          %1716 = vmatpush1.bf16.msra.mxu0 %v1420
          %1717 = vmatprep.subr.bf16.mxu0 %v1417
          %1718 = vmatpush1.bf16.msra.mxu0 %v1416
          %1719 = vmatprep.subr.bf16.mxu0 0
          %1720 = vmatpush2.bf16.msra.mxu0 0
          %1721 = vmatprep.subr.bf16.mxu0 0
          %1722 = vmatpush2.bf16.msra.mxu0 0
          %1723 = vmatprep.subr.bf16.mxu0 0
          %1724 = vmatpush2.bf16.msra.mxu0 0
          %1725 = vmatprep.subr.bf16.mxu0 0
          %1726 = vmatpush2.bf16.msra.mxu0 0
          %1727 = vmatprep.subr.bf16.mxu0 0
          %1728 = vmatpush2.bf16.msra.mxu0 0
          %1729 = vmatprep.subr.bf16.mxu0 0
          %1730 = vmatpush2.bf16.msra.mxu0 0
          %1731 = vmatprep.subr.bf16.mxu0 0
          %1732 = vmatpush2.bf16.msra.mxu0 0
          %1733 = vmatprep.subr.bf16.mxu0 0
          %1734 = vmatpush2.bf16.msra.mxu0 0
          %1735 = vmatprep.mubr.bf16.mxu0 0
          %1736 = vmatmul.mubr.bf16.gmra.mxu0 %v1631
          %v1737 = vpop.f32.mrf.mxu0
          %v1738 = vadd.f32 0.0, %v1737
          %v1739 = vpop.f32.mrf.mxu0
          %v1740 = vadd.f32 0.0, %v1739
          %v1741 = vpop.f32.mrf.mxu0
          %v1742 = vadd.f32 0.0, %v1741
          %v1743 = vpop.f32.mrf.mxu0
          %v1744 = vadd.f32 0.0, %v1743
          %1745 = vdwg.mxu0
          %v1746 = vadd.f32 %v1652, %v1695
          %v1747 = vadd.f32 %v1653, %v1697
          %v1748 = vadd.f32 %v1654, %v1738
          %v1749 = vadd.f32 %v1655, %v1740
          %v1750 = vadd.f32 %v1656, %v1699
          %v1751 = vadd.f32 %v1657, %v1701
          %v1752 = vadd.f32 %v1658, %v1742
          %v1753 = vadd.f32 %v1659, %v1744
          %v1754 = vpack.c.bf16 %v1750, %v1746
          %v1755 = vpack.c.bf16 %v1751, %v1747
          %v1756 = vpack.c.bf16 %v1752, %v1748
          %v1757 = vpack.c.bf16 %v1753, %v1749
          %v1758 = vxor.u32 %v1754, 2147516416
          %v1760 = vmul.bf16 %v1758, 1069105081
          %v1761 = vpow.bf16.pop %v1760
          %v1762 = vadd.bf16 %v1761, 1065369472
          %v1763 = vrcp.bf16.pop %v1762
          %v1764 = vmul.bf16 1065369472, %v1763
          %v1765 = vxor.u32 %v1755, 2147516416
          %v1767 = vmul.bf16 %v1765, 1069105081
          %v1768 = vpow.bf16.pop %v1767
          %v1769 = vadd.bf16 %v1768, 1065369472
          %v1770 = vrcp.bf16.pop %v1769
          %v1771 = vmul.bf16 1065369472, %v1770
          %v1772 = vtanh.bf16.pop %v1756
          %v1773 = vxor.u32 %v1757, 2147516416
          %v1775 = vmul.bf16 %v1773, 1069105081
          %v1776 = vpow.bf16.pop %v1775
          %v1777 = vadd.bf16 %v1776, 1065369472
          %v1778 = vrcp.bf16.pop %v1777
          %v1779 = vmul.bf16 1065369472, %v1778
          %v1780 = vunpack.c.l.bf16 %v1771
          %v1781 = vunpack.c.h.bf16 %v1771
          %v1782 = vmul.f32 %v1780, %v1632
          %v1783 = vmul.f32 %v1781, %v1633
          %v1784 = vmul.bf16 %v1764, %v1772
          %v1785 = vunpack.c.l.bf16 %v1784
          %v1786 = vunpack.c.h.bf16 %v1784
          %v1787 = vadd.f32 %v1782, %v1785
          %v1788 = vadd.f32 %v1783, %v1786
          %v1789 = vpack.c.bf16 %v1788, %v1787
          %v1790 = vtanh.bf16.pop %v1789
          %v1791 = vmul.bf16 %v1779, %v1790
          %s1792 = sadd.s32 %s1236, 1
          %v1793 = vstv %s1792
          %vm1794 = vcmp.lt.s32.totalorder %v1793, %v1211
          %vm1795 = vcmp.lt.s32.totalorder %v1793, %v1212
          %v1796 = vsel %vm1794, 1, 0
          %v1797 = vsel %vm1795, 1, 0
          %1798 = vset.pattern.permute.xlu0 0
          %1799 = vperm.xlu0 %1798, %v1796
          %v1800 = vpop.permute.xlu0 %1799
          %1801 = vset.pattern.permute.xlu0 0
          %1802 = vperm.xlu0 %1801, %v1797
          %v1803 = vpop.permute.xlu0 %1802
          %vm1804 = vcmp.eq.s32.totalorder %v1800, 1
          %vm1805 = vcmp.eq.s32.totalorder %v1803, 1
          %vm1806 = vmpackc.low %vm1804, %vm1804
          %vm1807 = vmpackc.low %vm1805, %vm1805
          %v1808 = vsel %vm1806, 65537, 0
          %v1809 = vsel %vm1807, 65537, 0
          %v1810 = vunpack.c.l.b16 %v1808
          %v1811 = vunpack.c.l.b16 %v1809
          %v1812 = vpack.c.b16 %v1811, %v1810
          %vm1813 = vcmp.ne.s16.totalorder %v1812, 0
          %v1814 = vsel %vm1813, %v1791, %v1631
          %v1815 = vsel %vm1804, %v1787, %v1632
          %v1816 = vsel %vm1805, %v1788, %v1633
          %s1817 = sadd.s32 %s1250, 32
          %s1818 = sshra.s32 %s1817, 3
          %s1819 = sand.u32 %s1817, 7
          %s1820 = smul.u32 %s1818, 4
          %s1821 = smul.addr %s1820, 4
          %s1822 = scalar_lea.vmem [#allocation2], %s1821
          %v1823 = vld [vmem:[%s1822] sm:$0xff]
          %v1824 = vld [vmem:[%s1822 + $0x8] sm:$0xff]
          %v1825 = vld [vmem:[%s1822 + $0x10] sm:$0xff]
          %v1826 = vld [vmem:[%s1822 + $0x18] sm:$0xff]
          %v1827 = vunpack.c.l.bf16 %v1823
          %v1828 = vunpack.c.h.bf16 %v1823
          %v1829 = vunpack.c.l.bf16 %v1824
          %v1830 = vunpack.c.h.bf16 %v1824
          %v1831 = vunpack.c.l.bf16 %v1825
          %v1832 = vunpack.c.h.bf16 %v1825
          %v1833 = vunpack.c.l.bf16 %v1826
          %v1834 = vunpack.c.h.bf16 %v1826
          %v1835 = vadd.f32 %v1827, %v1218
          %v1836 = vadd.f32 %v1828, %v1222
          %v1837 = vadd.f32 %v1829, %v1226
          %v1838 = vadd.f32 %v1830, %v1230
          %v1839 = vadd.f32 %v1831, %v1218
          %v1840 = vadd.f32 %v1832, %v1222
          %v1841 = vadd.f32 %v1833, %v1226
          %v1842 = vadd.f32 %v1834, %v1230
          %1843 = vmatprep.subr.bf16.mxu0 %v1443
          %1844 = vmatpush1.bf16.msra.mxu0 %v1442
          %1845 = vmatprep.subr.bf16.mxu0 %v1439
          %1846 = vmatpush1.bf16.msra.mxu0 %v1438
          %1847 = vmatprep.subr.bf16.mxu0 %v1435
          %1848 = vmatpush1.bf16.msra.mxu0 %v1434
          %1849 = vmatprep.subr.bf16.mxu0 %v1431
          %1850 = vmatpush1.bf16.msra.mxu0 %v1430
          %1851 = vmatprep.subr.bf16.mxu0 %v1427
          %1852 = vmatpush1.bf16.msra.mxu0 %v1426
          %1853 = vmatprep.subr.bf16.mxu0 %v1423
          %1854 = vmatpush1.bf16.msra.mxu0 %v1422
          %1855 = vmatprep.subr.bf16.mxu0 %v1419
          %1856 = vmatpush1.bf16.msra.mxu0 %v1418
          %1857 = vmatprep.subr.bf16.mxu0 %v1415
          %1858 = vmatpush1.bf16.msra.mxu0 %v1414
          %1859 = vmatprep.subr.bf16.mxu0 0
          %1860 = vmatpush2.bf16.msra.mxu0 0
          %1861 = vmatprep.subr.bf16.mxu0 0
          %1862 = vmatpush2.bf16.msra.mxu0 0
          %1863 = vmatprep.subr.bf16.mxu0 0
          %1864 = vmatpush2.bf16.msra.mxu0 0
          %1865 = vmatprep.subr.bf16.mxu0 0
          %1866 = vmatpush2.bf16.msra.mxu0 0
          %1867 = vmatprep.subr.bf16.mxu0 0
          %1868 = vmatpush2.bf16.msra.mxu0 0
          %1869 = vmatprep.subr.bf16.mxu0 0
          %1870 = vmatpush2.bf16.msra.mxu0 0
          %1871 = vmatprep.subr.bf16.mxu0 0
          %1872 = vmatpush2.bf16.msra.mxu0 0
          %1873 = vmatprep.subr.bf16.mxu0 0
          %1874 = vmatpush2.bf16.msra.mxu0 0
          %1875 = vmatprep.mubr.bf16.mxu0 0
          %1876 = vmatmul.mubr.bf16.gmra.mxu0 %v1814
          %v1877 = vpop.f32.mrf.mxu0
          %v1878 = vadd.f32 0.0, %v1877
          %v1879 = vpop.f32.mrf.mxu0
          %v1880 = vadd.f32 0.0, %v1879
          %v1881 = vpop.f32.mrf.mxu0
          %v1882 = vadd.f32 0.0, %v1881
          %v1883 = vpop.f32.mrf.mxu0
          %v1884 = vadd.f32 0.0, %v1883
          %1885 = vdwg.mxu0
          %1886 = vmatprep.subr.bf16.mxu0 %v1445
          %1887 = vmatpush1.bf16.msra.mxu0 %v1444
          %1888 = vmatprep.subr.bf16.mxu0 %v1441
          %1889 = vmatpush1.bf16.msra.mxu0 %v1440
          %1890 = vmatprep.subr.bf16.mxu0 %v1437
          %1891 = vmatpush1.bf16.msra.mxu0 %v1436
          %1892 = vmatprep.subr.bf16.mxu0 %v1433
          %1893 = vmatpush1.bf16.msra.mxu0 %v1432
          %1894 = vmatprep.subr.bf16.mxu0 %v1429
          %1895 = vmatpush1.bf16.msra.mxu0 %v1428
          %1896 = vmatprep.subr.bf16.mxu0 %v1425
          %1897 = vmatpush1.bf16.msra.mxu0 %v1424
          %1898 = vmatprep.subr.bf16.mxu0 %v1421
          %1899 = vmatpush1.bf16.msra.mxu0 %v1420
          %1900 = vmatprep.subr.bf16.mxu0 %v1417
          %1901 = vmatpush1.bf16.msra.mxu0 %v1416
          %1902 = vmatprep.subr.bf16.mxu0 0
          %1903 = vmatpush2.bf16.msra.mxu0 0
          %1904 = vmatprep.subr.bf16.mxu0 0
          %1905 = vmatpush2.bf16.msra.mxu0 0
          %1906 = vmatprep.subr.bf16.mxu0 0
          %1907 = vmatpush2.bf16.msra.mxu0 0
          %1908 = vmatprep.subr.bf16.mxu0 0
          %1909 = vmatpush2.bf16.msra.mxu0 0
          %1910 = vmatprep.subr.bf16.mxu0 0
          %1911 = vmatpush2.bf16.msra.mxu0 0
          %1912 = vmatprep.subr.bf16.mxu0 0
          %1913 = vmatpush2.bf16.msra.mxu0 0
          %1914 = vmatprep.subr.bf16.mxu0 0
          %1915 = vmatpush2.bf16.msra.mxu0 0
          %1916 = vmatprep.subr.bf16.mxu0 0
          %1917 = vmatpush2.bf16.msra.mxu0 0
          %1918 = vmatprep.mubr.bf16.mxu0 0
          %1919 = vmatmul.mubr.bf16.gmra.mxu0 %v1814
          %v1920 = vpop.f32.mrf.mxu0
          %v1921 = vadd.f32 0.0, %v1920
          %v1922 = vpop.f32.mrf.mxu0
          %v1923 = vadd.f32 0.0, %v1922
          %v1924 = vpop.f32.mrf.mxu0
          %v1925 = vadd.f32 0.0, %v1924
          %v1926 = vpop.f32.mrf.mxu0
          %v1927 = vadd.f32 0.0, %v1926
          %1928 = vdwg.mxu0
          %v1929 = vadd.f32 %v1835, %v1878
          %v1930 = vadd.f32 %v1836, %v1880
          %v1931 = vadd.f32 %v1837, %v1921
          %v1932 = vadd.f32 %v1838, %v1923
          %v1933 = vadd.f32 %v1839, %v1882
          %v1934 = vadd.f32 %v1840, %v1884
          %v1935 = vadd.f32 %v1841, %v1925
          %v1936 = vadd.f32 %v1842, %v1927
          %v1937 = vpack.c.bf16 %v1933, %v1929
          %v1938 = vpack.c.bf16 %v1934, %v1930
          %v1939 = vpack.c.bf16 %v1935, %v1931
          %v1940 = vpack.c.bf16 %v1936, %v1932
          %v1941 = vxor.u32 %v1937, 2147516416
          %v1943 = vmul.bf16 %v1941, 1069105081
          %v1944 = vpow.bf16.pop %v1943
          %v1945 = vadd.bf16 %v1944, 1065369472
          %v1946 = vrcp.bf16.pop %v1945
          %v1947 = vmul.bf16 1065369472, %v1946
          %v1948 = vxor.u32 %v1938, 2147516416
          %v1950 = vmul.bf16 %v1948, 1069105081
          %v1951 = vpow.bf16.pop %v1950
          %v1952 = vadd.bf16 %v1951, 1065369472
          %v1953 = vrcp.bf16.pop %v1952
          %v1954 = vmul.bf16 1065369472, %v1953
          %v1955 = vtanh.bf16.pop %v1939
          %v1956 = vxor.u32 %v1940, 2147516416
          %v1958 = vmul.bf16 %v1956, 1069105081
          %v1959 = vpow.bf16.pop %v1958
          %v1960 = vadd.bf16 %v1959, 1065369472
          %v1961 = vrcp.bf16.pop %v1960
          %v1962 = vmul.bf16 1065369472, %v1961
          %v1963 = vunpack.c.l.bf16 %v1954
          %v1964 = vunpack.c.h.bf16 %v1954
          %v1965 = vmul.f32 %v1963, %v1815
          %v1966 = vmul.f32 %v1964, %v1816
          %v1967 = vmul.bf16 %v1947, %v1955
          %v1968 = vunpack.c.l.bf16 %v1967
          %v1969 = vunpack.c.h.bf16 %v1967
          %v1970 = vadd.f32 %v1965, %v1968
          %v1971 = vadd.f32 %v1966, %v1969
          %v1972 = vpack.c.bf16 %v1971, %v1970
          %v1973 = vtanh.bf16.pop %v1972
          %v1974 = vmul.bf16 %v1962, %v1973
          %s1975 = sadd.s32 %s1236, 2
          %v1976 = vstv %s1975
          %vm1977 = vcmp.lt.s32.totalorder %v1976, %v1211
          %vm1978 = vcmp.lt.s32.totalorder %v1976, %v1212
          %v1979 = vsel %vm1977, 1, 0
          %v1980 = vsel %vm1978, 1, 0
          %1981 = vset.pattern.permute.xlu0 0
          %1982 = vperm.xlu0 %1981, %v1979
          %v1983 = vpop.permute.xlu0 %1982
          %1984 = vset.pattern.permute.xlu0 0
          %1985 = vperm.xlu0 %1984, %v1980
          %v1986 = vpop.permute.xlu0 %1985
          %vm1987 = vcmp.eq.s32.totalorder %v1983, 1
          %vm1988 = vcmp.eq.s32.totalorder %v1986, 1
          %vm1989 = vmpackc.low %vm1987, %vm1987
          %vm1990 = vmpackc.low %vm1988, %vm1988
          %v1991 = vsel %vm1989, 65537, 0
          %v1992 = vsel %vm1990, 65537, 0
          %v1993 = vunpack.c.l.b16 %v1991
          %v1994 = vunpack.c.l.b16 %v1992
          %v1995 = vpack.c.b16 %v1994, %v1993
          %vm1996 = vcmp.ne.s16.totalorder %v1995, 0
          %v1997 = vsel %vm1996, %v1974, %v1814
          %v1998 = vsel %vm1987, %v1970, %v1815
          %v1999 = vsel %vm1988, %v1971, %v1816
          %s2000 = sadd.s32 %s1250, 48
          %s2001 = sshra.s32 %s2000, 3
          %s2002 = sand.u32 %s2000, 7
          %s2003 = smul.u32 %s2001, 4
          %s2004 = smul.addr %s2003, 4
          %s2005 = scalar_lea.vmem [#allocation2], %s2004
          %v2006 = vld [vmem:[%s2005] sm:$0xff]
          %v2007 = vld [vmem:[%s2005 + $0x8] sm:$0xff]
          %v2008 = vld [vmem:[%s2005 + $0x10] sm:$0xff]
          %v2009 = vld [vmem:[%s2005 + $0x18] sm:$0xff]
          %v2010 = vunpack.c.l.bf16 %v2006
          %v2011 = vunpack.c.h.bf16 %v2006
          %v2012 = vunpack.c.l.bf16 %v2007
          %v2013 = vunpack.c.h.bf16 %v2007
          %v2014 = vunpack.c.l.bf16 %v2008
          %v2015 = vunpack.c.h.bf16 %v2008
          %v2016 = vunpack.c.l.bf16 %v2009
          %v2017 = vunpack.c.h.bf16 %v2009
          %v2018 = vadd.f32 %v2010, %v1218
          %v2019 = vadd.f32 %v2011, %v1222
          %v2020 = vadd.f32 %v2012, %v1226
          %v2021 = vadd.f32 %v2013, %v1230
          %v2022 = vadd.f32 %v2014, %v1218
          %v2023 = vadd.f32 %v2015, %v1222
          %v2024 = vadd.f32 %v2016, %v1226
          %v2025 = vadd.f32 %v2017, %v1230
          %2026 = vmatprep.subr.bf16.mxu0 %v1443
          %2027 = vmatpush1.bf16.msra.mxu0 %v1442
          %2028 = vmatprep.subr.bf16.mxu0 %v1439
          %2029 = vmatpush1.bf16.msra.mxu0 %v1438
          %2030 = vmatprep.subr.bf16.mxu0 %v1435
          %2031 = vmatpush1.bf16.msra.mxu0 %v1434
          %2032 = vmatprep.subr.bf16.mxu0 %v1431
          %2033 = vmatpush1.bf16.msra.mxu0 %v1430
          %2034 = vmatprep.subr.bf16.mxu0 %v1427
          %2035 = vmatpush1.bf16.msra.mxu0 %v1426
          %2036 = vmatprep.subr.bf16.mxu0 %v1423
          %2037 = vmatpush1.bf16.msra.mxu0 %v1422
          %2038 = vmatprep.subr.bf16.mxu0 %v1419
          %2039 = vmatpush1.bf16.msra.mxu0 %v1418
          %2040 = vmatprep.subr.bf16.mxu0 %v1415
          %2041 = vmatpush1.bf16.msra.mxu0 %v1414
          %2042 = vmatprep.subr.bf16.mxu0 0
          %2043 = vmatpush2.bf16.msra.mxu0 0
          %2044 = vmatprep.subr.bf16.mxu0 0
          %2045 = vmatpush2.bf16.msra.mxu0 0
          %2046 = vmatprep.subr.bf16.mxu0 0
          %2047 = vmatpush2.bf16.msra.mxu0 0
          %2048 = vmatprep.subr.bf16.mxu0 0
          %2049 = vmatpush2.bf16.msra.mxu0 0
          %2050 = vmatprep.subr.bf16.mxu0 0
          %2051 = vmatpush2.bf16.msra.mxu0 0
          %2052 = vmatprep.subr.bf16.mxu0 0
          %2053 = vmatpush2.bf16.msra.mxu0 0
          %2054 = vmatprep.subr.bf16.mxu0 0
          %2055 = vmatpush2.bf16.msra.mxu0 0
          %2056 = vmatprep.subr.bf16.mxu0 0
          %2057 = vmatpush2.bf16.msra.mxu0 0
          %2058 = vmatprep.mubr.bf16.mxu0 0
          %2059 = vmatmul.mubr.bf16.gmra.mxu0 %v1997
          %v2060 = vpop.f32.mrf.mxu0
          %v2061 = vadd.f32 0.0, %v2060
          %v2062 = vpop.f32.mrf.mxu0
          %v2063 = vadd.f32 0.0, %v2062
          %v2064 = vpop.f32.mrf.mxu0
          %v2065 = vadd.f32 0.0, %v2064
          %v2066 = vpop.f32.mrf.mxu0
          %v2067 = vadd.f32 0.0, %v2066
          %2068 = vdwg.mxu0
          %2069 = vmatprep.subr.bf16.mxu0 %v1445
          %2070 = vmatpush1.bf16.msra.mxu0 %v1444
          %2071 = vmatprep.subr.bf16.mxu0 %v1441
          %2072 = vmatpush1.bf16.msra.mxu0 %v1440
          %2073 = vmatprep.subr.bf16.mxu0 %v1437
          %2074 = vmatpush1.bf16.msra.mxu0 %v1436
          %2075 = vmatprep.subr.bf16.mxu0 %v1433
          %2076 = vmatpush1.bf16.msra.mxu0 %v1432
          %2077 = vmatprep.subr.bf16.mxu0 %v1429
          %2078 = vmatpush1.bf16.msra.mxu0 %v1428
          %2079 = vmatprep.subr.bf16.mxu0 %v1425
          %2080 = vmatpush1.bf16.msra.mxu0 %v1424
          %2081 = vmatprep.subr.bf16.mxu0 %v1421
          %2082 = vmatpush1.bf16.msra.mxu0 %v1420
          %2083 = vmatprep.subr.bf16.mxu0 %v1417
          %2084 = vmatpush1.bf16.msra.mxu0 %v1416
          %2085 = vmatprep.subr.bf16.mxu0 0
          %2086 = vmatpush2.bf16.msra.mxu0 0
          %2087 = vmatprep.subr.bf16.mxu0 0
          %2088 = vmatpush2.bf16.msra.mxu0 0
          %2089 = vmatprep.subr.bf16.mxu0 0
          %2090 = vmatpush2.bf16.msra.mxu0 0
          %2091 = vmatprep.subr.bf16.mxu0 0
          %2092 = vmatpush2.bf16.msra.mxu0 0
          %2093 = vmatprep.subr.bf16.mxu0 0
          %2094 = vmatpush2.bf16.msra.mxu0 0
          %2095 = vmatprep.subr.bf16.mxu0 0
          %2096 = vmatpush2.bf16.msra.mxu0 0
          %2097 = vmatprep.subr.bf16.mxu0 0
          %2098 = vmatpush2.bf16.msra.mxu0 0
          %2099 = vmatprep.subr.bf16.mxu0 0
          %2100 = vmatpush2.bf16.msra.mxu0 0
          %2101 = vmatprep.mubr.bf16.mxu0 0
          %2102 = vmatmul.mubr.bf16.gmra.mxu0 %v1997
          %v2103 = vpop.f32.mrf.mxu0
          %v2104 = vadd.f32 0.0, %v2103
          %v2105 = vpop.f32.mrf.mxu0
          %v2106 = vadd.f32 0.0, %v2105
          %v2107 = vpop.f32.mrf.mxu0
          %v2108 = vadd.f32 0.0, %v2107
          %v2109 = vpop.f32.mrf.mxu0
          %v2110 = vadd.f32 0.0, %v2109
          %2111 = vdwg.mxu0
          %v2112 = vadd.f32 %v2018, %v2061
          %v2113 = vadd.f32 %v2019, %v2063
          %v2114 = vadd.f32 %v2020, %v2104
          %v2115 = vadd.f32 %v2021, %v2106
          %v2116 = vadd.f32 %v2022, %v2065
          %v2117 = vadd.f32 %v2023, %v2067
          %v2118 = vadd.f32 %v2024, %v2108
          %v2119 = vadd.f32 %v2025, %v2110
          %v2120 = vpack.c.bf16 %v2116, %v2112
          %v2121 = vpack.c.bf16 %v2117, %v2113
          %v2122 = vpack.c.bf16 %v2118, %v2114
          %v2123 = vpack.c.bf16 %v2119, %v2115
          %v2124 = vxor.u32 %v2120, 2147516416
          %v2126 = vmul.bf16 %v2124, 1069105081
          %v2127 = vpow.bf16.pop %v2126
          %v2128 = vadd.bf16 %v2127, 1065369472
          %v2129 = vrcp.bf16.pop %v2128
          %v2130 = vmul.bf16 1065369472, %v2129
          %v2131 = vxor.u32 %v2121, 2147516416
          %v2133 = vmul.bf16 %v2131, 1069105081
          %v2134 = vpow.bf16.pop %v2133
          %v2135 = vadd.bf16 %v2134, 1065369472
          %v2136 = vrcp.bf16.pop %v2135
          %v2137 = vmul.bf16 1065369472, %v2136
          %v2138 = vtanh.bf16.pop %v2122
          %v2139 = vxor.u32 %v2123, 2147516416
          %v2141 = vmul.bf16 %v2139, 1069105081
          %v2142 = vpow.bf16.pop %v2141
          %v2143 = vadd.bf16 %v2142, 1065369472
          %v2144 = vrcp.bf16.pop %v2143
          %v2145 = vmul.bf16 1065369472, %v2144
          %v2146 = vunpack.c.l.bf16 %v2137
          %v2147 = vunpack.c.h.bf16 %v2137
          %v2148 = vmul.f32 %v2146, %v1998
          %v2149 = vmul.f32 %v2147, %v1999
          %v2150 = vmul.bf16 %v2130, %v2138
          %v2151 = vunpack.c.l.bf16 %v2150
          %v2152 = vunpack.c.h.bf16 %v2150
          %v2153 = vadd.f32 %v2148, %v2151
          %v2154 = vadd.f32 %v2149, %v2152
          %v2155 = vpack.c.bf16 %v2154, %v2153
          %v2156 = vtanh.bf16.pop %v2155
          %v2157 = vmul.bf16 %v2145, %v2156
          %s2158 = sadd.s32 %s1236, 3
          %v2159 = vstv %s2158
          %vm2160 = vcmp.lt.s32.totalorder %v2159, %v1211
          %vm2161 = vcmp.lt.s32.totalorder %v2159, %v1212
          %v2162 = vsel %vm2160, 1, 0
          %v2163 = vsel %vm2161, 1, 0
          %2164 = vset.pattern.permute.xlu0 0
          %2165 = vperm.xlu0 %2164, %v2162
          %v2166 = vpop.permute.xlu0 %2165
          %2167 = vset.pattern.permute.xlu0 0
          %2168 = vperm.xlu0 %2167, %v2163
          %v2169 = vpop.permute.xlu0 %2168
          %vm2170 = vcmp.eq.s32.totalorder %v2166, 1
          %vm2171 = vcmp.eq.s32.totalorder %v2169, 1
          %vm2172 = vmpackc.low %vm2170, %vm2170
          %vm2173 = vmpackc.low %vm2171, %vm2171
          %v2174 = vsel %vm2172, 65537, 0
          %v2175 = vsel %vm2173, 65537, 0
          %v2176 = vunpack.c.l.b16 %v2174
          %v2177 = vunpack.c.l.b16 %v2175
          %v2178 = vpack.c.b16 %v2177, %v2176
          %vm2179 = vcmp.ne.s16.totalorder %v2178, 0
          %v2180 = vsel %vm2179, %v2157, %v1997
          %v2181 = vsel %vm2170, %v2153, %v1998
          %v2182 = vsel %vm2171, %v2154, %v1999
          %s2183 = sadd.s32 %s1250, 64
          %s2184 = sshra.s32 %s2183, 3
          %s2185 = sand.u32 %s2183, 7
          %s2186 = smul.u32 %s2184, 4
          %s2187 = smul.addr %s2186, 4
          %s2188 = scalar_lea.vmem [#allocation2], %s2187
          %v2189 = vld [vmem:[%s2188] sm:$0xff]
          %v2190 = vld [vmem:[%s2188 + $0x8] sm:$0xff]
          %v2191 = vld [vmem:[%s2188 + $0x10] sm:$0xff]
          %v2192 = vld [vmem:[%s2188 + $0x18] sm:$0xff]
          %v2193 = vunpack.c.l.bf16 %v2189
          %v2194 = vunpack.c.h.bf16 %v2189
          %v2195 = vunpack.c.l.bf16 %v2190
          %v2196 = vunpack.c.h.bf16 %v2190
          %v2197 = vunpack.c.l.bf16 %v2191
          %v2198 = vunpack.c.h.bf16 %v2191
          %v2199 = vunpack.c.l.bf16 %v2192
          %v2200 = vunpack.c.h.bf16 %v2192
          %v2201 = vadd.f32 %v2193, %v1218
          %v2202 = vadd.f32 %v2194, %v1222
          %v2203 = vadd.f32 %v2195, %v1226
          %v2204 = vadd.f32 %v2196, %v1230
          %v2205 = vadd.f32 %v2197, %v1218
          %v2206 = vadd.f32 %v2198, %v1222
          %v2207 = vadd.f32 %v2199, %v1226
          %v2208 = vadd.f32 %v2200, %v1230
          %2209 = vmatprep.subr.bf16.mxu0 %v1443
          %2210 = vmatpush1.bf16.msra.mxu0 %v1442
          %2211 = vmatprep.subr.bf16.mxu0 %v1439
          %2212 = vmatpush1.bf16.msra.mxu0 %v1438
          %2213 = vmatprep.subr.bf16.mxu0 %v1435
          %2214 = vmatpush1.bf16.msra.mxu0 %v1434
          %2215 = vmatprep.subr.bf16.mxu0 %v1431
          %2216 = vmatpush1.bf16.msra.mxu0 %v1430
          %2217 = vmatprep.subr.bf16.mxu0 %v1427
          %2218 = vmatpush1.bf16.msra.mxu0 %v1426
          %2219 = vmatprep.subr.bf16.mxu0 %v1423
          %2220 = vmatpush1.bf16.msra.mxu0 %v1422
          %2221 = vmatprep.subr.bf16.mxu0 %v1419
          %2222 = vmatpush1.bf16.msra.mxu0 %v1418
          %2223 = vmatprep.subr.bf16.mxu0 %v1415
          %2224 = vmatpush1.bf16.msra.mxu0 %v1414
          %2225 = vmatprep.subr.bf16.mxu0 0
          %2226 = vmatpush2.bf16.msra.mxu0 0
          %2227 = vmatprep.subr.bf16.mxu0 0
          %2228 = vmatpush2.bf16.msra.mxu0 0
          %2229 = vmatprep.subr.bf16.mxu0 0
          %2230 = vmatpush2.bf16.msra.mxu0 0
          %2231 = vmatprep.subr.bf16.mxu0 0
          %2232 = vmatpush2.bf16.msra.mxu0 0
          %2233 = vmatprep.subr.bf16.mxu0 0
          %2234 = vmatpush2.bf16.msra.mxu0 0
          %2235 = vmatprep.subr.bf16.mxu0 0
          %2236 = vmatpush2.bf16.msra.mxu0 0
          %2237 = vmatprep.subr.bf16.mxu0 0
          %2238 = vmatpush2.bf16.msra.mxu0 0
          %2239 = vmatprep.subr.bf16.mxu0 0
          %2240 = vmatpush2.bf16.msra.mxu0 0
          %2241 = vmatprep.mubr.bf16.mxu0 0
          %2242 = vmatmul.mubr.bf16.gmra.mxu0 %v2180
          %v2243 = vpop.f32.mrf.mxu0
          %v2244 = vadd.f32 0.0, %v2243
          %v2245 = vpop.f32.mrf.mxu0
          %v2246 = vadd.f32 0.0, %v2245
          %v2247 = vpop.f32.mrf.mxu0
          %v2248 = vadd.f32 0.0, %v2247
          %v2249 = vpop.f32.mrf.mxu0
          %v2250 = vadd.f32 0.0, %v2249
          %2251 = vdwg.mxu0
          %2252 = vmatprep.subr.bf16.mxu0 %v1445
          %2253 = vmatpush1.bf16.msra.mxu0 %v1444
          %2254 = vmatprep.subr.bf16.mxu0 %v1441
          %2255 = vmatpush1.bf16.msra.mxu0 %v1440
          %2256 = vmatprep.subr.bf16.mxu0 %v1437
          %2257 = vmatpush1.bf16.msra.mxu0 %v1436
          %2258 = vmatprep.subr.bf16.mxu0 %v1433
          %2259 = vmatpush1.bf16.msra.mxu0 %v1432
          %2260 = vmatprep.subr.bf16.mxu0 %v1429
          %2261 = vmatpush1.bf16.msra.mxu0 %v1428
          %2262 = vmatprep.subr.bf16.mxu0 %v1425
          %2263 = vmatpush1.bf16.msra.mxu0 %v1424
          %2264 = vmatprep.subr.bf16.mxu0 %v1421
          %2265 = vmatpush1.bf16.msra.mxu0 %v1420
          %2266 = vmatprep.subr.bf16.mxu0 %v1417
          %2267 = vmatpush1.bf16.msra.mxu0 %v1416
          %2268 = vmatprep.subr.bf16.mxu0 0
          %2269 = vmatpush2.bf16.msra.mxu0 0
          %2270 = vmatprep.subr.bf16.mxu0 0
          %2271 = vmatpush2.bf16.msra.mxu0 0
          %2272 = vmatprep.subr.bf16.mxu0 0
          %2273 = vmatpush2.bf16.msra.mxu0 0
          %2274 = vmatprep.subr.bf16.mxu0 0
          %2275 = vmatpush2.bf16.msra.mxu0 0
          %2276 = vmatprep.subr.bf16.mxu0 0
          %2277 = vmatpush2.bf16.msra.mxu0 0
          %2278 = vmatprep.subr.bf16.mxu0 0
          %2279 = vmatpush2.bf16.msra.mxu0 0
          %2280 = vmatprep.subr.bf16.mxu0 0
          %2281 = vmatpush2.bf16.msra.mxu0 0
          %2282 = vmatprep.subr.bf16.mxu0 0
          %2283 = vmatpush2.bf16.msra.mxu0 0
          %2284 = vmatprep.mubr.bf16.mxu0 0
          %2285 = vmatmul.mubr.bf16.gmra.mxu0 %v2180
          %v2286 = vpop.f32.mrf.mxu0
          %v2287 = vadd.f32 0.0, %v2286
          %v2288 = vpop.f32.mrf.mxu0
          %v2289 = vadd.f32 0.0, %v2288
          %v2290 = vpop.f32.mrf.mxu0
          %v2291 = vadd.f32 0.0, %v2290
          %v2292 = vpop.f32.mrf.mxu0
          %v2293 = vadd.f32 0.0, %v2292
          %2294 = vdwg.mxu0
          %v2295 = vadd.f32 %v2201, %v2244
          %v2296 = vadd.f32 %v2202, %v2246
          %v2297 = vadd.f32 %v2203, %v2287
          %v2298 = vadd.f32 %v2204, %v2289
          %v2299 = vadd.f32 %v2205, %v2248
          %v2300 = vadd.f32 %v2206, %v2250
          %v2301 = vadd.f32 %v2207, %v2291
          %v2302 = vadd.f32 %v2208, %v2293
          %v2303 = vpack.c.bf16 %v2299, %v2295
          %v2304 = vpack.c.bf16 %v2300, %v2296
          %v2305 = vpack.c.bf16 %v2301, %v2297
          %v2306 = vpack.c.bf16 %v2302, %v2298
          %v2307 = vxor.u32 %v2303, 2147516416
          %v2309 = vmul.bf16 %v2307, 1069105081
          %v2310 = vpow.bf16.pop %v2309
          %v2311 = vadd.bf16 %v2310, 1065369472
          %v2312 = vrcp.bf16.pop %v2311
          %v2313 = vmul.bf16 1065369472, %v2312
          %v2314 = vxor.u32 %v2304, 2147516416
          %v2316 = vmul.bf16 %v2314, 1069105081
          %v2317 = vpow.bf16.pop %v2316
          %v2318 = vadd.bf16 %v2317, 1065369472
          %v2319 = vrcp.bf16.pop %v2318
          %v2320 = vmul.bf16 1065369472, %v2319
          %v2321 = vtanh.bf16.pop %v2305
          %v2322 = vxor.u32 %v2306, 2147516416
          %v2324 = vmul.bf16 %v2322, 1069105081
          %v2325 = vpow.bf16.pop %v2324
          %v2326 = vadd.bf16 %v2325, 1065369472
          %v2327 = vrcp.bf16.pop %v2326
          %v2328 = vmul.bf16 1065369472, %v2327
          %v2329 = vunpack.c.l.bf16 %v2320
          %v2330 = vunpack.c.h.bf16 %v2320
          %v2331 = vmul.f32 %v2329, %v2181
          %v2332 = vmul.f32 %v2330, %v2182
          %v2333 = vmul.bf16 %v2313, %v2321
          %v2334 = vunpack.c.l.bf16 %v2333
          %v2335 = vunpack.c.h.bf16 %v2333
          %v2336 = vadd.f32 %v2331, %v2334
          %v2337 = vadd.f32 %v2332, %v2335
          %v2338 = vpack.c.bf16 %v2337, %v2336
          %v2339 = vtanh.bf16.pop %v2338
          %v2340 = vmul.bf16 %v2328, %v2339
          %s2341 = sadd.s32 %s1236, 4
          %v2342 = vstv %s2341
          %vm2343 = vcmp.lt.s32.totalorder %v2342, %v1211
          %vm2344 = vcmp.lt.s32.totalorder %v2342, %v1212
          %v2345 = vsel %vm2343, 1, 0
          %v2346 = vsel %vm2344, 1, 0
          %2347 = vset.pattern.permute.xlu0 0
          %2348 = vperm.xlu0 %2347, %v2345
          %v2349 = vpop.permute.xlu0 %2348
          %2350 = vset.pattern.permute.xlu0 0
          %2351 = vperm.xlu0 %2350, %v2346
          %v2352 = vpop.permute.xlu0 %2351
          %vm2353 = vcmp.eq.s32.totalorder %v2349, 1
          %vm2354 = vcmp.eq.s32.totalorder %v2352, 1
          %vm2355 = vmpackc.low %vm2353, %vm2353
          %vm2356 = vmpackc.low %vm2354, %vm2354
          %v2357 = vsel %vm2355, 65537, 0
          %v2358 = vsel %vm2356, 65537, 0
          %v2359 = vunpack.c.l.b16 %v2357
          %v2360 = vunpack.c.l.b16 %v2358
          %v2361 = vpack.c.b16 %v2360, %v2359
          %vm2362 = vcmp.ne.s16.totalorder %v2361, 0
          %v2363 = vsel %vm2362, %v2340, %v2180
          %v2364 = vsel %vm2353, %v2336, %v2181
          %v2365 = vsel %vm2354, %v2337, %v2182
          %s2366 = sadd.s32 %s1250, 80
          %s2367 = sshra.s32 %s2366, 3
          %s2368 = sand.u32 %s2366, 7
          %s2369 = smul.u32 %s2367, 4
          %s2370 = smul.addr %s2369, 4
          %s2371 = scalar_lea.vmem [#allocation2], %s2370
          %v2372 = vld [vmem:[%s2371] sm:$0xff]
          %v2373 = vld [vmem:[%s2371 + $0x8] sm:$0xff]
          %v2374 = vld [vmem:[%s2371 + $0x10] sm:$0xff]
          %v2375 = vld [vmem:[%s2371 + $0x18] sm:$0xff]
          %v2376 = vunpack.c.l.bf16 %v2372
          %v2377 = vunpack.c.h.bf16 %v2372
          %v2378 = vunpack.c.l.bf16 %v2373
          %v2379 = vunpack.c.h.bf16 %v2373
          %v2380 = vunpack.c.l.bf16 %v2374
          %v2381 = vunpack.c.h.bf16 %v2374
          %v2382 = vunpack.c.l.bf16 %v2375
          %v2383 = vunpack.c.h.bf16 %v2375
          %v2384 = vadd.f32 %v2376, %v1218
          %v2385 = vadd.f32 %v2377, %v1222
          %v2386 = vadd.f32 %v2378, %v1226
          %v2387 = vadd.f32 %v2379, %v1230
          %v2388 = vadd.f32 %v2380, %v1218
          %v2389 = vadd.f32 %v2381, %v1222
          %v2390 = vadd.f32 %v2382, %v1226
          %v2391 = vadd.f32 %v2383, %v1230
          %2392 = vmatprep.subr.bf16.mxu0 %v1443
          %2393 = vmatpush1.bf16.msra.mxu0 %v1442
          %2394 = vmatprep.subr.bf16.mxu0 %v1439
          %2395 = vmatpush1.bf16.msra.mxu0 %v1438
          %2396 = vmatprep.subr.bf16.mxu0 %v1435
          %2397 = vmatpush1.bf16.msra.mxu0 %v1434
          %2398 = vmatprep.subr.bf16.mxu0 %v1431
          %2399 = vmatpush1.bf16.msra.mxu0 %v1430
          %2400 = vmatprep.subr.bf16.mxu0 %v1427
          %2401 = vmatpush1.bf16.msra.mxu0 %v1426
          %2402 = vmatprep.subr.bf16.mxu0 %v1423
          %2403 = vmatpush1.bf16.msra.mxu0 %v1422
          %2404 = vmatprep.subr.bf16.mxu0 %v1419
          %2405 = vmatpush1.bf16.msra.mxu0 %v1418
          %2406 = vmatprep.subr.bf16.mxu0 %v1415
          %2407 = vmatpush1.bf16.msra.mxu0 %v1414
          %2408 = vmatprep.subr.bf16.mxu0 0
          %2409 = vmatpush2.bf16.msra.mxu0 0
          %2410 = vmatprep.subr.bf16.mxu0 0
          %2411 = vmatpush2.bf16.msra.mxu0 0
          %2412 = vmatprep.subr.bf16.mxu0 0
          %2413 = vmatpush2.bf16.msra.mxu0 0
          %2414 = vmatprep.subr.bf16.mxu0 0
          %2415 = vmatpush2.bf16.msra.mxu0 0
          %2416 = vmatprep.subr.bf16.mxu0 0
          %2417 = vmatpush2.bf16.msra.mxu0 0
          %2418 = vmatprep.subr.bf16.mxu0 0
          %2419 = vmatpush2.bf16.msra.mxu0 0
          %2420 = vmatprep.subr.bf16.mxu0 0
          %2421 = vmatpush2.bf16.msra.mxu0 0
          %2422 = vmatprep.subr.bf16.mxu0 0
          %2423 = vmatpush2.bf16.msra.mxu0 0
          %2424 = vmatprep.mubr.bf16.mxu0 0
          %2425 = vmatmul.mubr.bf16.gmra.mxu0 %v2363
          %v2426 = vpop.f32.mrf.mxu0
          %v2427 = vadd.f32 0.0, %v2426
          %v2428 = vpop.f32.mrf.mxu0
          %v2429 = vadd.f32 0.0, %v2428
          %v2430 = vpop.f32.mrf.mxu0
          %v2431 = vadd.f32 0.0, %v2430
          %v2432 = vpop.f32.mrf.mxu0
          %v2433 = vadd.f32 0.0, %v2432
          %2434 = vdwg.mxu0
          %2435 = vmatprep.subr.bf16.mxu0 %v1445
          %2436 = vmatpush1.bf16.msra.mxu0 %v1444
          %2437 = vmatprep.subr.bf16.mxu0 %v1441
          %2438 = vmatpush1.bf16.msra.mxu0 %v1440
          %2439 = vmatprep.subr.bf16.mxu0 %v1437
          %2440 = vmatpush1.bf16.msra.mxu0 %v1436
          %2441 = vmatprep.subr.bf16.mxu0 %v1433
          %2442 = vmatpush1.bf16.msra.mxu0 %v1432
          %2443 = vmatprep.subr.bf16.mxu0 %v1429
          %2444 = vmatpush1.bf16.msra.mxu0 %v1428
          %2445 = vmatprep.subr.bf16.mxu0 %v1425
          %2446 = vmatpush1.bf16.msra.mxu0 %v1424
          %2447 = vmatprep.subr.bf16.mxu0 %v1421
          %2448 = vmatpush1.bf16.msra.mxu0 %v1420
          %2449 = vmatprep.subr.bf16.mxu0 %v1417
          %2450 = vmatpush1.bf16.msra.mxu0 %v1416
          %2451 = vmatprep.subr.bf16.mxu0 0
          %2452 = vmatpush2.bf16.msra.mxu0 0
          %2453 = vmatprep.subr.bf16.mxu0 0
          %2454 = vmatpush2.bf16.msra.mxu0 0
          %2455 = vmatprep.subr.bf16.mxu0 0
          %2456 = vmatpush2.bf16.msra.mxu0 0
          %2457 = vmatprep.subr.bf16.mxu0 0
          %2458 = vmatpush2.bf16.msra.mxu0 0
          %2459 = vmatprep.subr.bf16.mxu0 0
          %2460 = vmatpush2.bf16.msra.mxu0 0
          %2461 = vmatprep.subr.bf16.mxu0 0
          %2462 = vmatpush2.bf16.msra.mxu0 0
          %2463 = vmatprep.subr.bf16.mxu0 0
          %2464 = vmatpush2.bf16.msra.mxu0 0
          %2465 = vmatprep.subr.bf16.mxu0 0
          %2466 = vmatpush2.bf16.msra.mxu0 0
          %2467 = vmatprep.mubr.bf16.mxu0 0
          %2468 = vmatmul.mubr.bf16.gmra.mxu0 %v2363
          %v2469 = vpop.f32.mrf.mxu0
          %v2470 = vadd.f32 0.0, %v2469
          %v2471 = vpop.f32.mrf.mxu0
          %v2472 = vadd.f32 0.0, %v2471
          %v2473 = vpop.f32.mrf.mxu0
          %v2474 = vadd.f32 0.0, %v2473
          %v2475 = vpop.f32.mrf.mxu0
          %v2476 = vadd.f32 0.0, %v2475
          %2477 = vdwg.mxu0
          %v2478 = vadd.f32 %v2384, %v2427
          %v2479 = vadd.f32 %v2385, %v2429
          %v2480 = vadd.f32 %v2386, %v2470
          %v2481 = vadd.f32 %v2387, %v2472
          %v2482 = vadd.f32 %v2388, %v2431
          %v2483 = vadd.f32 %v2389, %v2433
          %v2484 = vadd.f32 %v2390, %v2474
          %v2485 = vadd.f32 %v2391, %v2476
          %v2486 = vpack.c.bf16 %v2482, %v2478
          %v2487 = vpack.c.bf16 %v2483, %v2479
          %v2488 = vpack.c.bf16 %v2484, %v2480
          %v2489 = vpack.c.bf16 %v2485, %v2481
          %v2490 = vxor.u32 %v2486, 2147516416
          %v2492 = vmul.bf16 %v2490, 1069105081
          %v2493 = vpow.bf16.pop %v2492
          %v2494 = vadd.bf16 %v2493, 1065369472
          %v2495 = vrcp.bf16.pop %v2494
          %v2496 = vmul.bf16 1065369472, %v2495
          %v2497 = vxor.u32 %v2487, 2147516416
          %v2499 = vmul.bf16 %v2497, 1069105081
          %v2500 = vpow.bf16.pop %v2499
          %v2501 = vadd.bf16 %v2500, 1065369472
          %v2502 = vrcp.bf16.pop %v2501
          %v2503 = vmul.bf16 1065369472, %v2502
          %v2504 = vtanh.bf16.pop %v2488
          %v2505 = vxor.u32 %v2489, 2147516416
          %v2507 = vmul.bf16 %v2505, 1069105081
          %v2508 = vpow.bf16.pop %v2507
          %v2509 = vadd.bf16 %v2508, 1065369472
          %v2510 = vrcp.bf16.pop %v2509
          %v2511 = vmul.bf16 1065369472, %v2510
          %v2512 = vunpack.c.l.bf16 %v2503
          %v2513 = vunpack.c.h.bf16 %v2503
          %v2514 = vmul.f32 %v2512, %v2364
          %v2515 = vmul.f32 %v2513, %v2365
          %v2516 = vmul.bf16 %v2496, %v2504
          %v2517 = vunpack.c.l.bf16 %v2516
          %v2518 = vunpack.c.h.bf16 %v2516
          %v2519 = vadd.f32 %v2514, %v2517
          %v2520 = vadd.f32 %v2515, %v2518
          %v2521 = vpack.c.bf16 %v2520, %v2519
          %v2522 = vtanh.bf16.pop %v2521
          %v2523 = vmul.bf16 %v2511, %v2522
          %s2524 = sadd.s32 %s1236, 5
          %v2525 = vstv %s2524
          %vm2526 = vcmp.lt.s32.totalorder %v2525, %v1211
          %vm2527 = vcmp.lt.s32.totalorder %v2525, %v1212
          %v2528 = vsel %vm2526, 1, 0
          %v2529 = vsel %vm2527, 1, 0
          %2530 = vset.pattern.permute.xlu0 0
          %2531 = vperm.xlu0 %2530, %v2528
          %v2532 = vpop.permute.xlu0 %2531
          %2533 = vset.pattern.permute.xlu0 0
          %2534 = vperm.xlu0 %2533, %v2529
          %v2535 = vpop.permute.xlu0 %2534
          %vm2536 = vcmp.eq.s32.totalorder %v2532, 1
          %vm2537 = vcmp.eq.s32.totalorder %v2535, 1
          %vm2538 = vmpackc.low %vm2536, %vm2536
          %vm2539 = vmpackc.low %vm2537, %vm2537
          %v2540 = vsel %vm2538, 65537, 0
          %v2541 = vsel %vm2539, 65537, 0
          %v2542 = vunpack.c.l.b16 %v2540
          %v2543 = vunpack.c.l.b16 %v2541
          %v2544 = vpack.c.b16 %v2543, %v2542
          %vm2545 = vcmp.ne.s16.totalorder %v2544, 0
          %v2546 = vsel %vm2545, %v2523, %v2363
          %v2547 = vsel %vm2536, %v2519, %v2364
          %v2548 = vsel %vm2537, %v2520, %v2365
          %s2549 = sadd.s32 %s1250, 96
          %s2550 = sshra.s32 %s2549, 3
          %s2551 = sand.u32 %s2549, 7
          %s2552 = smul.u32 %s2550, 4
          %s2553 = smul.addr %s2552, 4
          %s2554 = scalar_lea.vmem [#allocation2], %s2553
          %v2555 = vld [vmem:[%s2554] sm:$0xff]
          %v2556 = vld [vmem:[%s2554 + $0x8] sm:$0xff]
          %v2557 = vld [vmem:[%s2554 + $0x10] sm:$0xff]
          %v2558 = vld [vmem:[%s2554 + $0x18] sm:$0xff]
          %v2559 = vunpack.c.l.bf16 %v2555
          %v2560 = vunpack.c.h.bf16 %v2555
          %v2561 = vunpack.c.l.bf16 %v2556
          %v2562 = vunpack.c.h.bf16 %v2556
          %v2563 = vunpack.c.l.bf16 %v2557
          %v2564 = vunpack.c.h.bf16 %v2557
          %v2565 = vunpack.c.l.bf16 %v2558
          %v2566 = vunpack.c.h.bf16 %v2558
          %v2567 = vadd.f32 %v2559, %v1218
          %v2568 = vadd.f32 %v2560, %v1222
          %v2569 = vadd.f32 %v2561, %v1226
          %v2570 = vadd.f32 %v2562, %v1230
          %v2571 = vadd.f32 %v2563, %v1218
          %v2572 = vadd.f32 %v2564, %v1222
          %v2573 = vadd.f32 %v2565, %v1226
          %v2574 = vadd.f32 %v2566, %v1230
          %2575 = vmatprep.subr.bf16.mxu0 %v1443
          %2576 = vmatpush1.bf16.msra.mxu0 %v1442
          %2577 = vmatprep.subr.bf16.mxu0 %v1439
          %2578 = vmatpush1.bf16.msra.mxu0 %v1438
          %2579 = vmatprep.subr.bf16.mxu0 %v1435
          %2580 = vmatpush1.bf16.msra.mxu0 %v1434
          %2581 = vmatprep.subr.bf16.mxu0 %v1431
          %2582 = vmatpush1.bf16.msra.mxu0 %v1430
          %2583 = vmatprep.subr.bf16.mxu0 %v1427
          %2584 = vmatpush1.bf16.msra.mxu0 %v1426
          %2585 = vmatprep.subr.bf16.mxu0 %v1423
          %2586 = vmatpush1.bf16.msra.mxu0 %v1422
          %2587 = vmatprep.subr.bf16.mxu0 %v1419
          %2588 = vmatpush1.bf16.msra.mxu0 %v1418
          %2589 = vmatprep.subr.bf16.mxu0 %v1415
          %2590 = vmatpush1.bf16.msra.mxu0 %v1414
          %2591 = vmatprep.subr.bf16.mxu0 0
          %2592 = vmatpush2.bf16.msra.mxu0 0
          %2593 = vmatprep.subr.bf16.mxu0 0
          %2594 = vmatpush2.bf16.msra.mxu0 0
          %2595 = vmatprep.subr.bf16.mxu0 0
          %2596 = vmatpush2.bf16.msra.mxu0 0
          %2597 = vmatprep.subr.bf16.mxu0 0
          %2598 = vmatpush2.bf16.msra.mxu0 0
          %2599 = vmatprep.subr.bf16.mxu0 0
          %2600 = vmatpush2.bf16.msra.mxu0 0
          %2601 = vmatprep.subr.bf16.mxu0 0
          %2602 = vmatpush2.bf16.msra.mxu0 0
          %2603 = vmatprep.subr.bf16.mxu0 0
          %2604 = vmatpush2.bf16.msra.mxu0 0
          %2605 = vmatprep.subr.bf16.mxu0 0
          %2606 = vmatpush2.bf16.msra.mxu0 0
          %2607 = vmatprep.mubr.bf16.mxu0 0
          %2608 = vmatmul.mubr.bf16.gmra.mxu0 %v2546
          %v2609 = vpop.f32.mrf.mxu0
          %v2610 = vadd.f32 0.0, %v2609
          %v2611 = vpop.f32.mrf.mxu0
          %v2612 = vadd.f32 0.0, %v2611
          %v2613 = vpop.f32.mrf.mxu0
          %v2614 = vadd.f32 0.0, %v2613
          %v2615 = vpop.f32.mrf.mxu0
          %v2616 = vadd.f32 0.0, %v2615
          %2617 = vdwg.mxu0
          %2618 = vmatprep.subr.bf16.mxu0 %v1445
          %2619 = vmatpush1.bf16.msra.mxu0 %v1444
          %2620 = vmatprep.subr.bf16.mxu0 %v1441
          %2621 = vmatpush1.bf16.msra.mxu0 %v1440
          %2622 = vmatprep.subr.bf16.mxu0 %v1437
          %2623 = vmatpush1.bf16.msra.mxu0 %v1436
          %2624 = vmatprep.subr.bf16.mxu0 %v1433
          %2625 = vmatpush1.bf16.msra.mxu0 %v1432
          %2626 = vmatprep.subr.bf16.mxu0 %v1429
          %2627 = vmatpush1.bf16.msra.mxu0 %v1428
          %2628 = vmatprep.subr.bf16.mxu0 %v1425
          %2629 = vmatpush1.bf16.msra.mxu0 %v1424
          %2630 = vmatprep.subr.bf16.mxu0 %v1421
          %2631 = vmatpush1.bf16.msra.mxu0 %v1420
          %2632 = vmatprep.subr.bf16.mxu0 %v1417
          %2633 = vmatpush1.bf16.msra.mxu0 %v1416
          %2634 = vmatprep.subr.bf16.mxu0 0
          %2635 = vmatpush2.bf16.msra.mxu0 0
          %2636 = vmatprep.subr.bf16.mxu0 0
          %2637 = vmatpush2.bf16.msra.mxu0 0
          %2638 = vmatprep.subr.bf16.mxu0 0
          %2639 = vmatpush2.bf16.msra.mxu0 0
          %2640 = vmatprep.subr.bf16.mxu0 0
          %2641 = vmatpush2.bf16.msra.mxu0 0
          %2642 = vmatprep.subr.bf16.mxu0 0
          %2643 = vmatpush2.bf16.msra.mxu0 0
          %2644 = vmatprep.subr.bf16.mxu0 0
          %2645 = vmatpush2.bf16.msra.mxu0 0
          %2646 = vmatprep.subr.bf16.mxu0 0
          %2647 = vmatpush2.bf16.msra.mxu0 0
          %2648 = vmatprep.subr.bf16.mxu0 0
          %2649 = vmatpush2.bf16.msra.mxu0 0
          %2650 = vmatprep.mubr.bf16.mxu0 0
          %2651 = vmatmul.mubr.bf16.gmra.mxu0 %v2546
          %v2652 = vpop.f32.mrf.mxu0
          %v2653 = vadd.f32 0.0, %v2652
          %v2654 = vpop.f32.mrf.mxu0
          %v2655 = vadd.f32 0.0, %v2654
          %v2656 = vpop.f32.mrf.mxu0
          %v2657 = vadd.f32 0.0, %v2656
          %v2658 = vpop.f32.mrf.mxu0
          %v2659 = vadd.f32 0.0, %v2658
          %2660 = vdwg.mxu0
          %v2661 = vadd.f32 %v2567, %v2610
          %v2662 = vadd.f32 %v2568, %v2612
          %v2663 = vadd.f32 %v2569, %v2653
          %v2664 = vadd.f32 %v2570, %v2655
          %v2665 = vadd.f32 %v2571, %v2614
          %v2666 = vadd.f32 %v2572, %v2616
          %v2667 = vadd.f32 %v2573, %v2657
          %v2668 = vadd.f32 %v2574, %v2659
          %v2669 = vpack.c.bf16 %v2665, %v2661
          %v2670 = vpack.c.bf16 %v2666, %v2662
          %v2671 = vpack.c.bf16 %v2667, %v2663
          %v2672 = vpack.c.bf16 %v2668, %v2664
          %v2673 = vxor.u32 %v2669, 2147516416
          %v2675 = vmul.bf16 %v2673, 1069105081
          %v2676 = vpow.bf16.pop %v2675
          %v2677 = vadd.bf16 %v2676, 1065369472
          %v2678 = vrcp.bf16.pop %v2677
          %v2679 = vmul.bf16 1065369472, %v2678
          %v2680 = vxor.u32 %v2670, 2147516416
          %v2682 = vmul.bf16 %v2680, 1069105081
          %v2683 = vpow.bf16.pop %v2682
          %v2684 = vadd.bf16 %v2683, 1065369472
          %v2685 = vrcp.bf16.pop %v2684
          %v2686 = vmul.bf16 1065369472, %v2685
          %v2687 = vtanh.bf16.pop %v2671
          %v2688 = vxor.u32 %v2672, 2147516416
          %v2690 = vmul.bf16 %v2688, 1069105081
          %v2691 = vpow.bf16.pop %v2690
          %v2692 = vadd.bf16 %v2691, 1065369472
          %v2693 = vrcp.bf16.pop %v2692
          %v2694 = vmul.bf16 1065369472, %v2693
          %v2695 = vunpack.c.l.bf16 %v2686
          %v2696 = vunpack.c.h.bf16 %v2686
          %v2697 = vmul.f32 %v2695, %v2547
          %v2698 = vmul.f32 %v2696, %v2548
          %v2699 = vmul.bf16 %v2679, %v2687
          %v2700 = vunpack.c.l.bf16 %v2699
          %v2701 = vunpack.c.h.bf16 %v2699
          %v2702 = vadd.f32 %v2697, %v2700
          %v2703 = vadd.f32 %v2698, %v2701
          %v2704 = vpack.c.bf16 %v2703, %v2702
          %v2705 = vtanh.bf16.pop %v2704
          %v2706 = vmul.bf16 %v2694, %v2705
          %s2707 = sadd.s32 %s1236, 6
          %v2708 = vstv %s2707
          %vm2709 = vcmp.lt.s32.totalorder %v2708, %v1211
          %vm2710 = vcmp.lt.s32.totalorder %v2708, %v1212
          %v2711 = vsel %vm2709, 1, 0
          %v2712 = vsel %vm2710, 1, 0
          %2713 = vset.pattern.permute.xlu0 0
          %2714 = vperm.xlu0 %2713, %v2711
          %v2715 = vpop.permute.xlu0 %2714
          %2716 = vset.pattern.permute.xlu0 0
          %2717 = vperm.xlu0 %2716, %v2712
          %v2718 = vpop.permute.xlu0 %2717
          %vm2719 = vcmp.eq.s32.totalorder %v2715, 1
          %vm2720 = vcmp.eq.s32.totalorder %v2718, 1
          %vm2721 = vmpackc.low %vm2719, %vm2719
          %vm2722 = vmpackc.low %vm2720, %vm2720
          %v2723 = vsel %vm2721, 65537, 0
          %v2724 = vsel %vm2722, 65537, 0
          %v2725 = vunpack.c.l.b16 %v2723
          %v2726 = vunpack.c.l.b16 %v2724
          %v2727 = vpack.c.b16 %v2726, %v2725
          %vm2728 = vcmp.ne.s16.totalorder %v2727, 0
          %v2729 = vsel %vm2728, %v2706, %v2546
          %v2730 = vsel %vm2719, %v2702, %v2547
          %v2731 = vsel %vm2720, %v2703, %v2548
          %s2732 = sadd.s32 %s1250, 112
          %s2733 = sshra.s32 %s2732, 3
          %s2734 = sand.u32 %s2732, 7
          %s2735 = smul.u32 %s2733, 4
          %s2736 = smul.addr %s2735, 4
          %s2737 = scalar_lea.vmem [#allocation2], %s2736
          %v2738 = vld [vmem:[%s2737] sm:$0xff]
          %v2739 = vld [vmem:[%s2737 + $0x8] sm:$0xff]
          %v2740 = vld [vmem:[%s2737 + $0x10] sm:$0xff]
          %v2741 = vld [vmem:[%s2737 + $0x18] sm:$0xff]
          %v2742 = vunpack.c.l.bf16 %v2738
          %v2743 = vunpack.c.h.bf16 %v2738
          %v2744 = vunpack.c.l.bf16 %v2739
          %v2745 = vunpack.c.h.bf16 %v2739
          %v2746 = vunpack.c.l.bf16 %v2740
          %v2747 = vunpack.c.h.bf16 %v2740
          %v2748 = vunpack.c.l.bf16 %v2741
          %v2749 = vunpack.c.h.bf16 %v2741
          %v2750 = vadd.f32 %v2742, %v1218
          %v2751 = vadd.f32 %v2743, %v1222
          %v2752 = vadd.f32 %v2744, %v1226
          %v2753 = vadd.f32 %v2745, %v1230
          %v2754 = vadd.f32 %v2746, %v1218
          %v2755 = vadd.f32 %v2747, %v1222
          %v2756 = vadd.f32 %v2748, %v1226
          %v2757 = vadd.f32 %v2749, %v1230
          %2758 = vmatprep.subr.bf16.mxu0 %v1443
          %2759 = vmatpush1.bf16.msra.mxu0 %v1442
          %2760 = vmatprep.subr.bf16.mxu0 %v1439
          %2761 = vmatpush1.bf16.msra.mxu0 %v1438
          %2762 = vmatprep.subr.bf16.mxu0 %v1435
          %2763 = vmatpush1.bf16.msra.mxu0 %v1434
          %2764 = vmatprep.subr.bf16.mxu0 %v1431
          %2765 = vmatpush1.bf16.msra.mxu0 %v1430
          %2766 = vmatprep.subr.bf16.mxu0 %v1427
          %2767 = vmatpush1.bf16.msra.mxu0 %v1426
          %2768 = vmatprep.subr.bf16.mxu0 %v1423
          %2769 = vmatpush1.bf16.msra.mxu0 %v1422
          %2770 = vmatprep.subr.bf16.mxu0 %v1419
          %2771 = vmatpush1.bf16.msra.mxu0 %v1418
          %2772 = vmatprep.subr.bf16.mxu0 %v1415
          %2773 = vmatpush1.bf16.msra.mxu0 %v1414
          %2774 = vmatprep.subr.bf16.mxu0 0
          %2775 = vmatpush2.bf16.msra.mxu0 0
          %2776 = vmatprep.subr.bf16.mxu0 0
          %2777 = vmatpush2.bf16.msra.mxu0 0
          %2778 = vmatprep.subr.bf16.mxu0 0
          %2779 = vmatpush2.bf16.msra.mxu0 0
          %2780 = vmatprep.subr.bf16.mxu0 0
          %2781 = vmatpush2.bf16.msra.mxu0 0
          %2782 = vmatprep.subr.bf16.mxu0 0
          %2783 = vmatpush2.bf16.msra.mxu0 0
          %2784 = vmatprep.subr.bf16.mxu0 0
          %2785 = vmatpush2.bf16.msra.mxu0 0
          %2786 = vmatprep.subr.bf16.mxu0 0
          %2787 = vmatpush2.bf16.msra.mxu0 0
          %2788 = vmatprep.subr.bf16.mxu0 0
          %2789 = vmatpush2.bf16.msra.mxu0 0
          %2790 = vmatprep.mubr.bf16.mxu0 0
          %2791 = vmatmul.mubr.bf16.gmra.mxu0 %v2729
          %v2792 = vpop.f32.mrf.mxu0
          %v2793 = vadd.f32 0.0, %v2792
          %v2794 = vpop.f32.mrf.mxu0
          %v2795 = vadd.f32 0.0, %v2794
          %v2796 = vpop.f32.mrf.mxu0
          %v2797 = vadd.f32 0.0, %v2796
          %v2798 = vpop.f32.mrf.mxu0
          %v2799 = vadd.f32 0.0, %v2798
          %2800 = vdwg.mxu0
          %2801 = vmatprep.subr.bf16.mxu0 %v1445
          %2802 = vmatpush1.bf16.msra.mxu0 %v1444
          %2803 = vmatprep.subr.bf16.mxu0 %v1441
          %2804 = vmatpush1.bf16.msra.mxu0 %v1440
          %2805 = vmatprep.subr.bf16.mxu0 %v1437
          %2806 = vmatpush1.bf16.msra.mxu0 %v1436
          %2807 = vmatprep.subr.bf16.mxu0 %v1433
          %2808 = vmatpush1.bf16.msra.mxu0 %v1432
          %2809 = vmatprep.subr.bf16.mxu0 %v1429
          %2810 = vmatpush1.bf16.msra.mxu0 %v1428
          %2811 = vmatprep.subr.bf16.mxu0 %v1425
          %2812 = vmatpush1.bf16.msra.mxu0 %v1424
          %2813 = vmatprep.subr.bf16.mxu0 %v1421
          %2814 = vmatpush1.bf16.msra.mxu0 %v1420
          %2815 = vmatprep.subr.bf16.mxu0 %v1417
          %2816 = vmatpush1.bf16.msra.mxu0 %v1416
          %2817 = vmatprep.subr.bf16.mxu0 0
          %2818 = vmatpush2.bf16.msra.mxu0 0
          %2819 = vmatprep.subr.bf16.mxu0 0
          %2820 = vmatpush2.bf16.msra.mxu0 0
          %2821 = vmatprep.subr.bf16.mxu0 0
          %2822 = vmatpush2.bf16.msra.mxu0 0
          %2823 = vmatprep.subr.bf16.mxu0 0
          %2824 = vmatpush2.bf16.msra.mxu0 0
          %2825 = vmatprep.subr.bf16.mxu0 0
          %2826 = vmatpush2.bf16.msra.mxu0 0
          %2827 = vmatprep.subr.bf16.mxu0 0
          %2828 = vmatpush2.bf16.msra.mxu0 0
          %2829 = vmatprep.subr.bf16.mxu0 0
          %2830 = vmatpush2.bf16.msra.mxu0 0
          %2831 = vmatprep.subr.bf16.mxu0 0
          %2832 = vmatpush2.bf16.msra.mxu0 0
          %2833 = vmatprep.mubr.bf16.mxu0 0
          %2834 = vmatmul.mubr.bf16.gmra.mxu0 %v2729
          %v2835 = vpop.f32.mrf.mxu0
          %v2836 = vadd.f32 0.0, %v2835
          %v2837 = vpop.f32.mrf.mxu0
          %v2838 = vadd.f32 0.0, %v2837
          %v2839 = vpop.f32.mrf.mxu0
          %v2840 = vadd.f32 0.0, %v2839
          %v2841 = vpop.f32.mrf.mxu0
          %v2842 = vadd.f32 0.0, %v2841
          %2843 = vdwg.mxu0
          %v2844 = vadd.f32 %v2750, %v2793
          %v2845 = vadd.f32 %v2751, %v2795
          %v2846 = vadd.f32 %v2752, %v2836
          %v2847 = vadd.f32 %v2753, %v2838
          %v2848 = vadd.f32 %v2754, %v2797
          %v2849 = vadd.f32 %v2755, %v2799
          %v2850 = vadd.f32 %v2756, %v2840
          %v2851 = vadd.f32 %v2757, %v2842
          %v2852 = vpack.c.bf16 %v2848, %v2844
          %v2853 = vpack.c.bf16 %v2849, %v2845
          %v2854 = vpack.c.bf16 %v2850, %v2846
          %v2855 = vpack.c.bf16 %v2851, %v2847
          %v2856 = vxor.u32 %v2852, 2147516416
          %v2858 = vmul.bf16 %v2856, 1069105081
          %v2859 = vpow.bf16.pop %v2858
          %v2860 = vadd.bf16 %v2859, 1065369472
          %v2861 = vrcp.bf16.pop %v2860
          %v2862 = vmul.bf16 1065369472, %v2861
          %v2863 = vxor.u32 %v2853, 2147516416
          %v2865 = vmul.bf16 %v2863, 1069105081
          %v2866 = vpow.bf16.pop %v2865
          %v2867 = vadd.bf16 %v2866, 1065369472
          %v2868 = vrcp.bf16.pop %v2867
          %v2869 = vmul.bf16 1065369472, %v2868
          %v2870 = vtanh.bf16.pop %v2854
          %v2871 = vxor.u32 %v2855, 2147516416
          %v2873 = vmul.bf16 %v2871, 1069105081
          %v2874 = vpow.bf16.pop %v2873
          %v2875 = vadd.bf16 %v2874, 1065369472
          %v2876 = vrcp.bf16.pop %v2875
          %v2877 = vmul.bf16 1065369472, %v2876
          %v2878 = vunpack.c.l.bf16 %v2869
          %v2879 = vunpack.c.h.bf16 %v2869
          %v2880 = vmul.f32 %v2878, %v2730
          %v2881 = vmul.f32 %v2879, %v2731
          %v2882 = vmul.bf16 %v2862, %v2870
          %v2883 = vunpack.c.l.bf16 %v2882
          %v2884 = vunpack.c.h.bf16 %v2882
          %v2885 = vadd.f32 %v2880, %v2883
          %v2886 = vadd.f32 %v2881, %v2884
          %v2887 = vpack.c.bf16 %v2886, %v2885
          %v2888 = vtanh.bf16.pop %v2887
          %v2889 = vmul.bf16 %v2877, %v2888
          %s2890 = sadd.s32 %s1236, 7
          %v2891 = vstv %s2890
          %vm2892 = vcmp.lt.s32.totalorder %v2891, %v1211
          %vm2893 = vcmp.lt.s32.totalorder %v2891, %v1212
          %v2894 = vsel %vm2892, 1, 0
          %v2895 = vsel %vm2893, 1, 0
          %2896 = vset.pattern.permute.xlu0 0
          %2897 = vperm.xlu0 %2896, %v2894
          %v2898 = vpop.permute.xlu0 %2897
          %2899 = vset.pattern.permute.xlu0 0
          %2900 = vperm.xlu0 %2899, %v2895
          %v2901 = vpop.permute.xlu0 %2900
          %vm2902 = vcmp.eq.s32.totalorder %v2898, 1
          %vm2903 = vcmp.eq.s32.totalorder %v2901, 1
          %vm2904 = vmpackc.low %vm2902, %vm2902
          %vm2905 = vmpackc.low %vm2903, %vm2903
          %v2906 = vsel %vm2904, 65537, 0
          %v2907 = vsel %vm2905, 65537, 0
          %v2908 = vunpack.c.l.b16 %v2906
          %v2909 = vunpack.c.l.b16 %v2907
          %v2910 = vpack.c.b16 %v2909, %v2908
          %vm2911 = vcmp.ne.s16.totalorder %v2910, 0
          %v2912 = vsel %vm2911, %v2889, %v2729
          %v2913 = vsel %vm2902, %v2885, %v2730
          %v2914 = vsel %vm2903, %v2886, %v2731
          %v2916 = vunpack.c.l.b16 %v2912
          %v2917 = vunpack.c.h.b16 %v2912
          %v2918 = vpack.c.b16 %v2916, %v2916
          %v2919 = vpack.c.b16 %v2917, %v2917
          %2922 = vst [vmem:[#allocation3] sm:$0xf] %v2918
          %2923 = vst [vmem:[#allocation3 + $0x4] sm:$0xf] %v2919
          %2924 = vst [vmem:[#allocation4] sm:$0xff] %v2913
          %2925 = vst [vmem:[#allocation4 + $0x8] sm:$0xff] %v2914
        $region100: #{tpu_custom_call.1} parent=63 // pred_fallthru
          _
        %p2926 = scmp.eq.s32.totalorder %s29, 1
        // Predicated region
        $region101: #{tpu_custom_call.1} parent=63 // pred_check
          %p2927 = pneg %p2926
        $region102: #{tpu_custom_call.1} parent=63 // pred_check_branch
          %2929 = sbr.rel (%p2927) target = $region104
        $region103: #{tpu_custom_call.1} parent=63 // pred_region
          %v2930 = vld [vmem:[#allocation3] sm:$0xf]
          %v2931 = vld [vmem:[#allocation3 + $0x4] sm:$0xf]
          %v2932 = vunpack.c.l.bf16 %v2930
          %v2933 = vunpack.c.l.bf16 %v2931
          %v2934 = vpack.c.bf16 %v2932, %v2932
          %v2935 = vpack.c.bf16 %v2933, %v2933
          %v2936 = vsub.f32 %v2932, %v2933
          %v2937 = vand.u32 2147483647, %v2936
          %v2938 = vpack.c.bf16 %v2937, %v2937
          %v2939 = vmul.f32 %v2932, %v2933
          %v2940 = vpack.c.bf16 %v2939, %v2939
          %v2941 = vld [vmem:[#allocation11] sm:$0xf]
          %v2942 = vld [vmem:[#allocation11 + $0x4] sm:$0xf]
          %v2943 = vld [vmem:[#allocation11 + $0x8] sm:$0xf]
          %v2944 = vld [vmem:[#allocation11 + $0xc] sm:$0xf]
          %v2945 = vld [vmem:[#allocation11 + $0x10] sm:$0xf]
          %v2946 = vld [vmem:[#allocation11 + $0x14] sm:$0xf]
          %v2947 = vld [vmem:[#allocation11 + $0x18] sm:$0xf]
          %v2948 = vld [vmem:[#allocation11 + $0x1c] sm:$0xf]
          %v2949 = vld [vmem:[#allocation11 + $0x20] sm:$0xf]
          %v2950 = vld [vmem:[#allocation11 + $0x24] sm:$0xf]
          %v2951 = vld [vmem:[#allocation11 + $0x28] sm:$0xf]
          %v2952 = vld [vmem:[#allocation11 + $0x2c] sm:$0xf]
          %v2953 = vld [vmem:[#allocation11 + $0x30] sm:$0xf]
          %v2954 = vld [vmem:[#allocation11 + $0x34] sm:$0xf]
          %v2955 = vld [vmem:[#allocation11 + $0x38] sm:$0xf]
          %v2956 = vld [vmem:[#allocation11 + $0x3c] sm:$0xf]
          %v2957 = vld [vmem:[#allocation11 + $0x40] sm:$0xf]
          %v2958 = vld [vmem:[#allocation11 + $0x44] sm:$0xf]
          %v2959 = vld [vmem:[#allocation11 + $0x48] sm:$0xf]
          %v2960 = vld [vmem:[#allocation11 + $0x4c] sm:$0xf]
          %v2961 = vld [vmem:[#allocation11 + $0x50] sm:$0xf]
          %v2962 = vld [vmem:[#allocation11 + $0x54] sm:$0xf]
          %v2963 = vld [vmem:[#allocation11 + $0x58] sm:$0xf]
          %v2964 = vld [vmem:[#allocation11 + $0x5c] sm:$0xf]
          %v2965 = vld [vmem:[#allocation11 + $0x60] sm:$0xf]
          %v2966 = vld [vmem:[#allocation11 + $0x64] sm:$0xf]
          %v2967 = vld [vmem:[#allocation11 + $0x68] sm:$0xf]
          %v2968 = vld [vmem:[#allocation11 + $0x6c] sm:$0xf]
          %v2969 = vld [vmem:[#allocation11 + $0x70] sm:$0xf]
          %v2970 = vld [vmem:[#allocation11 + $0x74] sm:$0xf]
          %v2971 = vld [vmem:[#allocation11 + $0x78] sm:$0xf]
          %v2972 = vld [vmem:[#allocation11 + $0x7c] sm:$0xf]
          %v2989 = vunpack.c.l.b16 %v2957
          %v2990 = vunpack.c.l.b16 %v2958
          %v2991 = vunpack.c.l.b16 %v2959
          %v2992 = vunpack.c.l.b16 %v2960
          %v2993 = vunpack.c.l.b16 %v2961
          %v2994 = vunpack.c.l.b16 %v2962
          %v2995 = vunpack.c.l.b16 %v2963
          %v2996 = vunpack.c.l.b16 %v2964
          %v2997 = vunpack.c.l.b16 %v2965
          %v2998 = vunpack.c.l.b16 %v2966
          %v2999 = vunpack.c.l.b16 %v2967
          %v3000 = vunpack.c.l.b16 %v2968
          %v3001 = vunpack.c.l.b16 %v2969
          %v3002 = vunpack.c.l.b16 %v2970
          %v3003 = vunpack.c.l.b16 %v2971
          %v3004 = vunpack.c.l.b16 %v2972
          %v3005 = vpack.c.b16 %v2990, %v2989
          %v3006 = vpack.c.b16 %v2992, %v2991
          %v3007 = vpack.c.b16 %v2994, %v2993
          %v3008 = vpack.c.b16 %v2996, %v2995
          %v3009 = vpack.c.b16 %v2998, %v2997
          %v3010 = vpack.c.b16 %v3000, %v2999
          %v3011 = vpack.c.b16 %v3002, %v3001
          %v3012 = vpack.c.b16 %v3004, %v3003
          %3021 = vmatprep.subr.bf16.mxu0 0
          %3022 = vmatpush1.bf16.msra.mxu0 %v3012
          %3023 = vmatprep.subr.bf16.mxu0 0
          %3024 = vmatpush1.bf16.msra.mxu0 %v3011
          %3025 = vmatprep.subr.bf16.mxu0 0
          %3026 = vmatpush1.bf16.msra.mxu0 %v3010
          %3027 = vmatprep.subr.bf16.mxu0 0
          %3028 = vmatpush1.bf16.msra.mxu0 %v3009
          %3029 = vmatprep.subr.bf16.mxu0 0
          %3030 = vmatpush1.bf16.msra.mxu0 %v3008
          %3031 = vmatprep.subr.bf16.mxu0 0
          %3032 = vmatpush1.bf16.msra.mxu0 %v3007
          %3033 = vmatprep.subr.bf16.mxu0 0
          %3034 = vmatpush1.bf16.msra.mxu0 %v3006
          %3035 = vmatprep.subr.bf16.mxu0 0
          %3036 = vmatpush1.bf16.msra.mxu0 %v3005
          %3037 = vmatprep.subr.bf16.mxu0 0
          %3038 = vmatpush2.bf16.msra.mxu0 0
          %3039 = vmatprep.subr.bf16.mxu0 0
          %3040 = vmatpush2.bf16.msra.mxu0 0
          %3041 = vmatprep.subr.bf16.mxu0 0
          %3042 = vmatpush2.bf16.msra.mxu0 0
          %3043 = vmatprep.subr.bf16.mxu0 0
          %3044 = vmatpush2.bf16.msra.mxu0 0
          %3045 = vmatprep.subr.bf16.mxu0 0
          %3046 = vmatpush2.bf16.msra.mxu0 0
          %3047 = vmatprep.subr.bf16.mxu0 0
          %3048 = vmatpush2.bf16.msra.mxu0 0
          %3049 = vmatprep.subr.bf16.mxu0 0
          %3050 = vmatpush2.bf16.msra.mxu0 0
          %3051 = vmatprep.subr.bf16.mxu0 0
          %3052 = vmatpush2.bf16.msra.mxu0 0
          %3053 = vmatprep.mubr.bf16.mxu0 0
          %3054 = vmatmul.mubr.bf16.gmra.mxu0 %v2935
          %v3055 = vpop.f32.mrf.mxu0
          %v3056 = vadd.f32 0.0, %v3055
          %v3057 = vpop.f32.mrf.mxu0
          %v3058 = vpop.f32.mrf.mxu0
          %v3059 = vpop.f32.mrf.mxu0
          %3060 = vdwg.mxu0
          %v3077 = vunpack.c.l.b16 %v2941
          %v3078 = vunpack.c.l.b16 %v2942
          %v3079 = vunpack.c.l.b16 %v2943
          %v3080 = vunpack.c.l.b16 %v2944
          %v3081 = vunpack.c.l.b16 %v2945
          %v3082 = vunpack.c.l.b16 %v2946
          %v3083 = vunpack.c.l.b16 %v2947
          %v3084 = vunpack.c.l.b16 %v2948
          %v3085 = vunpack.c.l.b16 %v2949
          %v3086 = vunpack.c.l.b16 %v2950
          %v3087 = vunpack.c.l.b16 %v2951
          %v3088 = vunpack.c.l.b16 %v2952
          %v3089 = vunpack.c.l.b16 %v2953
          %v3090 = vunpack.c.l.b16 %v2954
          %v3091 = vunpack.c.l.b16 %v2955
          %v3092 = vunpack.c.l.b16 %v2956
          %v3093 = vpack.c.b16 %v3078, %v3077
          %v3094 = vpack.c.b16 %v3080, %v3079
          %v3095 = vpack.c.b16 %v3082, %v3081
          %v3096 = vpack.c.b16 %v3084, %v3083
          %v3097 = vpack.c.b16 %v3086, %v3085
          %v3098 = vpack.c.b16 %v3088, %v3087
          %v3099 = vpack.c.b16 %v3090, %v3089
          %v3100 = vpack.c.b16 %v3092, %v3091
          %3109 = vmatprep.subr.bf16.mxu0 0
          %3110 = vmatpush1.bf16.msra.mxu0 %v3100
          %3111 = vmatprep.subr.bf16.mxu0 0
          %3112 = vmatpush1.bf16.msra.mxu0 %v3099
          %3113 = vmatprep.subr.bf16.mxu0 0
          %3114 = vmatpush1.bf16.msra.mxu0 %v3098
          %3115 = vmatprep.subr.bf16.mxu0 0
          %3116 = vmatpush1.bf16.msra.mxu0 %v3097
          %3117 = vmatprep.subr.bf16.mxu0 0
          %3118 = vmatpush1.bf16.msra.mxu0 %v3096
          %3119 = vmatprep.subr.bf16.mxu0 0
          %3120 = vmatpush1.bf16.msra.mxu0 %v3095
          %3121 = vmatprep.subr.bf16.mxu0 0
          %3122 = vmatpush1.bf16.msra.mxu0 %v3094
          %3123 = vmatprep.subr.bf16.mxu0 0
          %3124 = vmatpush1.bf16.msra.mxu0 %v3093
          %3125 = vmatprep.subr.bf16.mxu0 0
          %3126 = vmatpush2.bf16.msra.mxu0 0
          %3127 = vmatprep.subr.bf16.mxu0 0
          %3128 = vmatpush2.bf16.msra.mxu0 0
          %3129 = vmatprep.subr.bf16.mxu0 0
          %3130 = vmatpush2.bf16.msra.mxu0 0
          %3131 = vmatprep.subr.bf16.mxu0 0
          %3132 = vmatpush2.bf16.msra.mxu0 0
          %3133 = vmatprep.subr.bf16.mxu0 0
          %3134 = vmatpush2.bf16.msra.mxu0 0
          %3135 = vmatprep.subr.bf16.mxu0 0
          %3136 = vmatpush2.bf16.msra.mxu0 0
          %3137 = vmatprep.subr.bf16.mxu0 0
          %3138 = vmatpush2.bf16.msra.mxu0 0
          %3139 = vmatprep.subr.bf16.mxu0 0
          %3140 = vmatpush2.bf16.msra.mxu0 0
          %3141 = vmatprep.mubr.bf16.mxu0 0
          %3142 = vmatmul.mubr.bf16.gmra.mxu0 %v2934
          %v3143 = vpop.f32.mrf.mxu0
          %v3144 = vadd.f32 %v3056, %v3143
          %v3145 = vpop.f32.mrf.mxu0
          %v3146 = vpop.f32.mrf.mxu0
          %v3147 = vpop.f32.mrf.mxu0
          %3148 = vdwg.mxu0
          %v3149 = vld [vmem:[#allocation11 + $0x80] sm:$0xf]
          %v3150 = vld [vmem:[#allocation11 + $0x84] sm:$0xf]
          %v3151 = vld [vmem:[#allocation11 + $0x88] sm:$0xf]
          %v3152 = vld [vmem:[#allocation11 + $0x8c] sm:$0xf]
          %v3153 = vld [vmem:[#allocation11 + $0x90] sm:$0xf]
          %v3154 = vld [vmem:[#allocation11 + $0x94] sm:$0xf]
          %v3155 = vld [vmem:[#allocation11 + $0x98] sm:$0xf]
          %v3156 = vld [vmem:[#allocation11 + $0x9c] sm:$0xf]
          %v3157 = vld [vmem:[#allocation11 + $0xa0] sm:$0xf]
          %v3158 = vld [vmem:[#allocation11 + $0xa4] sm:$0xf]
          %v3159 = vld [vmem:[#allocation11 + $0xa8] sm:$0xf]
          %v3160 = vld [vmem:[#allocation11 + $0xac] sm:$0xf]
          %v3161 = vld [vmem:[#allocation11 + $0xb0] sm:$0xf]
          %v3162 = vld [vmem:[#allocation11 + $0xb4] sm:$0xf]
          %v3163 = vld [vmem:[#allocation11 + $0xb8] sm:$0xf]
          %v3164 = vld [vmem:[#allocation11 + $0xbc] sm:$0xf]
          %v3181 = vunpack.c.l.b16 %v3149
          %v3182 = vunpack.c.l.b16 %v3150
          %v3183 = vunpack.c.l.b16 %v3151
          %v3184 = vunpack.c.l.b16 %v3152
          %v3185 = vunpack.c.l.b16 %v3153
          %v3186 = vunpack.c.l.b16 %v3154
          %v3187 = vunpack.c.l.b16 %v3155
          %v3188 = vunpack.c.l.b16 %v3156
          %v3189 = vunpack.c.l.b16 %v3157
          %v3190 = vunpack.c.l.b16 %v3158
          %v3191 = vunpack.c.l.b16 %v3159
          %v3192 = vunpack.c.l.b16 %v3160
          %v3193 = vunpack.c.l.b16 %v3161
          %v3194 = vunpack.c.l.b16 %v3162
          %v3195 = vunpack.c.l.b16 %v3163
          %v3196 = vunpack.c.l.b16 %v3164
          %v3197 = vpack.c.b16 %v3182, %v3181
          %v3198 = vpack.c.b16 %v3184, %v3183
          %v3199 = vpack.c.b16 %v3186, %v3185
          %v3200 = vpack.c.b16 %v3188, %v3187
          %v3201 = vpack.c.b16 %v3190, %v3189
          %v3202 = vpack.c.b16 %v3192, %v3191
          %v3203 = vpack.c.b16 %v3194, %v3193
          %v3204 = vpack.c.b16 %v3196, %v3195
          %3213 = vmatprep.subr.bf16.mxu0 0
          %3214 = vmatpush1.bf16.msra.mxu0 %v3204
          %3215 = vmatprep.subr.bf16.mxu0 0
          %3216 = vmatpush1.bf16.msra.mxu0 %v3203
          %3217 = vmatprep.subr.bf16.mxu0 0
          %3218 = vmatpush1.bf16.msra.mxu0 %v3202
          %3219 = vmatprep.subr.bf16.mxu0 0
          %3220 = vmatpush1.bf16.msra.mxu0 %v3201
          %3221 = vmatprep.subr.bf16.mxu0 0
          %3222 = vmatpush1.bf16.msra.mxu0 %v3200
          %3223 = vmatprep.subr.bf16.mxu0 0
          %3224 = vmatpush1.bf16.msra.mxu0 %v3199
          %3225 = vmatprep.subr.bf16.mxu0 0
          %3226 = vmatpush1.bf16.msra.mxu0 %v3198
          %3227 = vmatprep.subr.bf16.mxu0 0
          %3228 = vmatpush1.bf16.msra.mxu0 %v3197
          %3229 = vmatprep.subr.bf16.mxu0 0
          %3230 = vmatpush2.bf16.msra.mxu0 0
          %3231 = vmatprep.subr.bf16.mxu0 0
          %3232 = vmatpush2.bf16.msra.mxu0 0
          %3233 = vmatprep.subr.bf16.mxu0 0
          %3234 = vmatpush2.bf16.msra.mxu0 0
          %3235 = vmatprep.subr.bf16.mxu0 0
          %3236 = vmatpush2.bf16.msra.mxu0 0
          %3237 = vmatprep.subr.bf16.mxu0 0
          %3238 = vmatpush2.bf16.msra.mxu0 0
          %3239 = vmatprep.subr.bf16.mxu0 0
          %3240 = vmatpush2.bf16.msra.mxu0 0
          %3241 = vmatprep.subr.bf16.mxu0 0
          %3242 = vmatpush2.bf16.msra.mxu0 0
          %3243 = vmatprep.subr.bf16.mxu0 0
          %3244 = vmatpush2.bf16.msra.mxu0 0
          %3245 = vmatprep.mubr.bf16.mxu0 0
          %3246 = vmatmul.mubr.bf16.gmra.mxu0 %v2938
          %v3247 = vpop.f32.mrf.mxu0
          %v3248 = vadd.f32 0.0, %v3247
          %v3249 = vpop.f32.mrf.mxu0
          %v3250 = vpop.f32.mrf.mxu0
          %v3251 = vpop.f32.mrf.mxu0
          %3252 = vdwg.mxu0
          %v3253 = vadd.f32 %v3144, %v3248
          %v3254 = vld [vmem:[#allocation11 + $0xc0] sm:$0xf]
          %v3255 = vld [vmem:[#allocation11 + $0xc4] sm:$0xf]
          %v3256 = vld [vmem:[#allocation11 + $0xc8] sm:$0xf]
          %v3257 = vld [vmem:[#allocation11 + $0xcc] sm:$0xf]
          %v3258 = vld [vmem:[#allocation11 + $0xd0] sm:$0xf]
          %v3259 = vld [vmem:[#allocation11 + $0xd4] sm:$0xf]
          %v3260 = vld [vmem:[#allocation11 + $0xd8] sm:$0xf]
          %v3261 = vld [vmem:[#allocation11 + $0xdc] sm:$0xf]
          %v3262 = vld [vmem:[#allocation11 + $0xe0] sm:$0xf]
          %v3263 = vld [vmem:[#allocation11 + $0xe4] sm:$0xf]
          %v3264 = vld [vmem:[#allocation11 + $0xe8] sm:$0xf]
          %v3265 = vld [vmem:[#allocation11 + $0xec] sm:$0xf]
          %v3266 = vld [vmem:[#allocation11 + $0xf0] sm:$0xf]
          %v3267 = vld [vmem:[#allocation11 + $0xf4] sm:$0xf]
          %v3268 = vld [vmem:[#allocation11 + $0xf8] sm:$0xf]
          %v3269 = vld [vmem:[#allocation11 + $0xfc] sm:$0xf]
          %v3286 = vunpack.c.l.b16 %v3254
          %v3287 = vunpack.c.l.b16 %v3255
          %v3288 = vunpack.c.l.b16 %v3256
          %v3289 = vunpack.c.l.b16 %v3257
          %v3290 = vunpack.c.l.b16 %v3258
          %v3291 = vunpack.c.l.b16 %v3259
          %v3292 = vunpack.c.l.b16 %v3260
          %v3293 = vunpack.c.l.b16 %v3261
          %v3294 = vunpack.c.l.b16 %v3262
          %v3295 = vunpack.c.l.b16 %v3263
          %v3296 = vunpack.c.l.b16 %v3264
          %v3297 = vunpack.c.l.b16 %v3265
          %v3298 = vunpack.c.l.b16 %v3266
          %v3299 = vunpack.c.l.b16 %v3267
          %v3300 = vunpack.c.l.b16 %v3268
          %v3301 = vunpack.c.l.b16 %v3269
          %v3302 = vpack.c.b16 %v3287, %v3286
          %v3303 = vpack.c.b16 %v3289, %v3288
          %v3304 = vpack.c.b16 %v3291, %v3290
          %v3305 = vpack.c.b16 %v3293, %v3292
          %v3306 = vpack.c.b16 %v3295, %v3294
          %v3307 = vpack.c.b16 %v3297, %v3296
          %v3308 = vpack.c.b16 %v3299, %v3298
          %v3309 = vpack.c.b16 %v3301, %v3300
          %3318 = vmatprep.subr.bf16.mxu0 0
          %3319 = vmatpush1.bf16.msra.mxu0 %v3309
          %3320 = vmatprep.subr.bf16.mxu0 0
          %3321 = vmatpush1.bf16.msra.mxu0 %v3308
          %3322 = vmatprep.subr.bf16.mxu0 0
          %3323 = vmatpush1.bf16.msra.mxu0 %v3307
          %3324 = vmatprep.subr.bf16.mxu0 0
          %3325 = vmatpush1.bf16.msra.mxu0 %v3306
          %3326 = vmatprep.subr.bf16.mxu0 0
          %3327 = vmatpush1.bf16.msra.mxu0 %v3305
          %3328 = vmatprep.subr.bf16.mxu0 0
          %3329 = vmatpush1.bf16.msra.mxu0 %v3304
          %3330 = vmatprep.subr.bf16.mxu0 0
          %3331 = vmatpush1.bf16.msra.mxu0 %v3303
          %3332 = vmatprep.subr.bf16.mxu0 0
          %3333 = vmatpush1.bf16.msra.mxu0 %v3302
          %3334 = vmatprep.subr.bf16.mxu0 0
          %3335 = vmatpush2.bf16.msra.mxu0 0
          %3336 = vmatprep.subr.bf16.mxu0 0
          %3337 = vmatpush2.bf16.msra.mxu0 0
          %3338 = vmatprep.subr.bf16.mxu0 0
          %3339 = vmatpush2.bf16.msra.mxu0 0
          %3340 = vmatprep.subr.bf16.mxu0 0
          %3341 = vmatpush2.bf16.msra.mxu0 0
          %3342 = vmatprep.subr.bf16.mxu0 0
          %3343 = vmatpush2.bf16.msra.mxu0 0
          %3344 = vmatprep.subr.bf16.mxu0 0
          %3345 = vmatpush2.bf16.msra.mxu0 0
          %3346 = vmatprep.subr.bf16.mxu0 0
          %3347 = vmatpush2.bf16.msra.mxu0 0
          %3348 = vmatprep.subr.bf16.mxu0 0
          %3349 = vmatpush2.bf16.msra.mxu0 0
          %3350 = vmatprep.mubr.bf16.mxu0 0
          %3351 = vmatmul.mubr.bf16.gmra.mxu0 %v2940
          %v3352 = vpop.f32.mrf.mxu0
          %v3353 = vadd.f32 0.0, %v3352
          %v3354 = vpop.f32.mrf.mxu0
          %v3355 = vpop.f32.mrf.mxu0
          %v3356 = vpop.f32.mrf.mxu0
          %3357 = vdwg.mxu0
          %v3358 = vadd.f32 %v3253, %v3353
          %v3359 = vld [vmem:[%s6] sm:$0x1]
          %v3361 = vlaneseq
          %v3362 = vshrl.u32 %v3361, 7
          %v3363 = vsub.s32 0, %v3362
          %v3364 = vrot.slane %v3359, %v3363
          %v3366 = vadd.f32 %v3358, %v3364
          %v3367 = vpack.c.bf16 %v3366, %v3366
          %v3368 = vld [vmem:[#allocation13] sm:$0xf]
          %v3369 = vld [vmem:[#allocation13 + $0x4] sm:$0xf]
          %v3370 = vld [vmem:[#allocation13 + $0x8] sm:$0xf]
          %v3371 = vld [vmem:[#allocation13 + $0xc] sm:$0xf]
          %v3372 = vld [vmem:[#allocation13 + $0x10] sm:$0xf]
          %v3373 = vld [vmem:[#allocation13 + $0x14] sm:$0xf]
          %v3374 = vld [vmem:[#allocation13 + $0x18] sm:$0xf]
          %v3375 = vld [vmem:[#allocation13 + $0x1c] sm:$0xf]
          %v3376 = vld [vmem:[#allocation13 + $0x20] sm:$0xf]
          %v3377 = vld [vmem:[#allocation13 + $0x24] sm:$0xf]
          %v3378 = vld [vmem:[#allocation13 + $0x28] sm:$0xf]
          %v3379 = vld [vmem:[#allocation13 + $0x2c] sm:$0xf]
          %v3380 = vld [vmem:[#allocation13 + $0x30] sm:$0xf]
          %v3381 = vld [vmem:[#allocation13 + $0x34] sm:$0xf]
          %v3382 = vld [vmem:[#allocation13 + $0x38] sm:$0xf]
          %v3383 = vld [vmem:[#allocation13 + $0x3c] sm:$0xf]
          %v3384 = vld [vmem:[%s8] sm:$0x1]
          %v3386 = vlaneseq
          %v3387 = vshrl.u32 %v3386, 7
          %v3388 = vsub.s32 0, %v3387
          %v3389 = vrot.slane %v3384, %v3388
          %v3407 = vunpack.c.l.b16 %v3368
          %v3408 = vunpack.c.l.b16 %v3369
          %v3409 = vunpack.c.l.b16 %v3370
          %v3410 = vunpack.c.l.b16 %v3371
          %v3411 = vunpack.c.l.b16 %v3372
          %v3412 = vunpack.c.l.b16 %v3373
          %v3413 = vunpack.c.l.b16 %v3374
          %v3414 = vunpack.c.l.b16 %v3375
          %v3415 = vunpack.c.l.b16 %v3376
          %v3416 = vunpack.c.l.b16 %v3377
          %v3417 = vunpack.c.l.b16 %v3378
          %v3418 = vunpack.c.l.b16 %v3379
          %v3419 = vunpack.c.l.b16 %v3380
          %v3420 = vunpack.c.l.b16 %v3381
          %v3421 = vunpack.c.l.b16 %v3382
          %v3422 = vunpack.c.l.b16 %v3383
          %v3423 = vpack.c.b16 %v3408, %v3407
          %v3424 = vpack.c.b16 %v3410, %v3409
          %v3425 = vpack.c.b16 %v3412, %v3411
          %v3426 = vpack.c.b16 %v3414, %v3413
          %v3427 = vpack.c.b16 %v3416, %v3415
          %v3428 = vpack.c.b16 %v3418, %v3417
          %v3429 = vpack.c.b16 %v3420, %v3419
          %v3430 = vpack.c.b16 %v3422, %v3421
          %3439 = vmatprep.subr.bf16.mxu0 0
          %3440 = vmatpush1.bf16.msra.mxu0 %v3430
          %3441 = vmatprep.subr.bf16.mxu0 0
          %3442 = vmatpush1.bf16.msra.mxu0 %v3429
          %3443 = vmatprep.subr.bf16.mxu0 0
          %3444 = vmatpush1.bf16.msra.mxu0 %v3428
          %3445 = vmatprep.subr.bf16.mxu0 0
          %3446 = vmatpush1.bf16.msra.mxu0 %v3427
          %3447 = vmatprep.subr.bf16.mxu0 0
          %3448 = vmatpush1.bf16.msra.mxu0 %v3426
          %3449 = vmatprep.subr.bf16.mxu0 0
          %3450 = vmatpush1.bf16.msra.mxu0 %v3425
          %3451 = vmatprep.subr.bf16.mxu0 0
          %3452 = vmatpush1.bf16.msra.mxu0 %v3424
          %3453 = vmatprep.subr.bf16.mxu0 0
          %3454 = vmatpush1.bf16.msra.mxu0 %v3423
          %3455 = vmatprep.subr.bf16.mxu0 0
          %3456 = vmatpush2.bf16.msra.mxu0 0
          %3457 = vmatprep.subr.bf16.mxu0 0
          %3458 = vmatpush2.bf16.msra.mxu0 0
          %3459 = vmatprep.subr.bf16.mxu0 0
          %3460 = vmatpush2.bf16.msra.mxu0 0
          %3461 = vmatprep.subr.bf16.mxu0 0
          %3462 = vmatpush2.bf16.msra.mxu0 0
          %3463 = vmatprep.subr.bf16.mxu0 0
          %3464 = vmatpush2.bf16.msra.mxu0 0
          %3465 = vmatprep.subr.bf16.mxu0 0
          %3466 = vmatpush2.bf16.msra.mxu0 0
          %3467 = vmatprep.subr.bf16.mxu0 0
          %3468 = vmatpush2.bf16.msra.mxu0 0
          %3469 = vmatprep.subr.bf16.mxu0 0
          %3470 = vmatpush2.bf16.msra.mxu0 0
          %3471 = vmatprep.mubr.bf16.mxu0 0
          %3472 = vmatmul.mubr.bf16.gmra.mxu0 %v3367
          %v3473 = vpop.f32.mrf.mxu0
          %v3474 = vadd.f32 %v3389, %v3473
          %v3475 = vpop.f32.mrf.mxu0
          %v3476 = vpop.f32.mrf.mxu0
          %v3477 = vpop.f32.mrf.mxu0
          %3478 = vdwg.mxu0
          %v3479 = vpack.c.bf16 %v3474, %v3474
          %v3480 = vld [vmem:[#allocation14] sm:$0xf]
          %v3481 = vld [vmem:[#allocation14 + $0x4] sm:$0xf]
          %v3482 = vld [vmem:[#allocation14 + $0x8] sm:$0xf]
          %v3483 = vld [vmem:[#allocation14 + $0xc] sm:$0xf]
          %v3484 = vld [vmem:[#allocation14 + $0x10] sm:$0xf]
          %v3485 = vld [vmem:[#allocation14 + $0x14] sm:$0xf]
          %v3486 = vld [vmem:[#allocation14 + $0x18] sm:$0xf]
          %v3487 = vld [vmem:[#allocation14 + $0x1c] sm:$0xf]
          %v3488 = vld [vmem:[#allocation14 + $0x20] sm:$0xf]
          %v3489 = vld [vmem:[#allocation14 + $0x24] sm:$0xf]
          %v3490 = vld [vmem:[#allocation14 + $0x28] sm:$0xf]
          %v3491 = vld [vmem:[#allocation14 + $0x2c] sm:$0xf]
          %v3492 = vld [vmem:[#allocation14 + $0x30] sm:$0xf]
          %v3493 = vld [vmem:[#allocation14 + $0x34] sm:$0xf]
          %v3494 = vld [vmem:[#allocation14 + $0x38] sm:$0xf]
          %v3495 = vld [vmem:[#allocation14 + $0x3c] sm:$0xf]
          %v3496 = vld [vmem:[%s10] sm:$0x1]
          %v3498 = vlaneseq
          %v3499 = vshrl.u32 %v3498, 7
          %v3500 = vsub.s32 0, %v3499
          %v3501 = vrot.slane %v3496, %v3500
          %v3519 = vunpack.c.l.b16 %v3480
          %v3520 = vunpack.c.l.b16 %v3481
          %v3521 = vunpack.c.l.b16 %v3482
          %v3522 = vunpack.c.l.b16 %v3483
          %v3523 = vunpack.c.l.b16 %v3484
          %v3524 = vunpack.c.l.b16 %v3485
          %v3525 = vunpack.c.l.b16 %v3486
          %v3526 = vunpack.c.l.b16 %v3487
          %v3527 = vunpack.c.l.b16 %v3488
          %v3528 = vunpack.c.l.b16 %v3489
          %v3529 = vunpack.c.l.b16 %v3490
          %v3530 = vunpack.c.l.b16 %v3491
          %v3531 = vunpack.c.l.b16 %v3492
          %v3532 = vunpack.c.l.b16 %v3493
          %v3533 = vunpack.c.l.b16 %v3494
          %v3534 = vunpack.c.l.b16 %v3495
          %v3535 = vpack.c.b16 %v3520, %v3519
          %v3536 = vpack.c.b16 %v3522, %v3521
          %v3537 = vpack.c.b16 %v3524, %v3523
          %v3538 = vpack.c.b16 %v3526, %v3525
          %v3539 = vpack.c.b16 %v3528, %v3527
          %v3540 = vpack.c.b16 %v3530, %v3529
          %v3541 = vpack.c.b16 %v3532, %v3531
          %v3542 = vpack.c.b16 %v3534, %v3533
          %3551 = vmatprep.subr.bf16.mxu0 0
          %3552 = vmatpush1.bf16.msra.mxu0 %v3542
          %3553 = vmatprep.subr.bf16.mxu0 0
          %3554 = vmatpush1.bf16.msra.mxu0 %v3541
          %3555 = vmatprep.subr.bf16.mxu0 0
          %3556 = vmatpush1.bf16.msra.mxu0 %v3540
          %3557 = vmatprep.subr.bf16.mxu0 0
          %3558 = vmatpush1.bf16.msra.mxu0 %v3539
          %3559 = vmatprep.subr.bf16.mxu0 0
          %3560 = vmatpush1.bf16.msra.mxu0 %v3538
          %3561 = vmatprep.subr.bf16.mxu0 0
          %3562 = vmatpush1.bf16.msra.mxu0 %v3537
          %3563 = vmatprep.subr.bf16.mxu0 0
          %3564 = vmatpush1.bf16.msra.mxu0 %v3536
          %3565 = vmatprep.subr.bf16.mxu0 0
          %3566 = vmatpush1.bf16.msra.mxu0 %v3535
          %3567 = vmatprep.subr.bf16.mxu0 0
          %3568 = vmatpush2.bf16.msra.mxu0 0
          %3569 = vmatprep.subr.bf16.mxu0 0
          %3570 = vmatpush2.bf16.msra.mxu0 0
          %3571 = vmatprep.subr.bf16.mxu0 0
          %3572 = vmatpush2.bf16.msra.mxu0 0
          %3573 = vmatprep.subr.bf16.mxu0 0
          %3574 = vmatpush2.bf16.msra.mxu0 0
          %3575 = vmatprep.subr.bf16.mxu0 0
          %3576 = vmatpush2.bf16.msra.mxu0 0
          %3577 = vmatprep.subr.bf16.mxu0 0
          %3578 = vmatpush2.bf16.msra.mxu0 0
          %3579 = vmatprep.subr.bf16.mxu0 0
          %3580 = vmatpush2.bf16.msra.mxu0 0
          %3581 = vmatprep.subr.bf16.mxu0 0
          %3582 = vmatpush2.bf16.msra.mxu0 0
          %3583 = vmatprep.mubr.bf16.mxu0 0
          %3584 = vmatmul.mubr.bf16.gmra.mxu0 %v3479
          %v3585 = vpop.f32.mrf.mxu0
          %v3586 = vadd.f32 %v3501, %v3585
          %v3587 = vpop.f32.mrf.mxu0
          %v3588 = vpop.f32.mrf.mxu0
          %v3589 = vpop.f32.mrf.mxu0
          %3590 = vdwg.mxu0
          %3591 = vst [vmem:[#allocation16] sm:$0xff] %v3586
        $region104: #{tpu_custom_call.1} parent=63 // pred_fallthru
          _
        // Predicated region
        $region105: #{tpu_custom_call.1} parent=63 // pred_check
          %p3592 = pneg %p278
        $region106: #{tpu_custom_call.1} parent=63 // pred_check_branch
          %3594 = sbr.rel (%p3592) target = $region108
        $region107: #{tpu_custom_call.1} parent=63 // pred_region
          %s3596 = ssub.s32 128, 128
          %3597 = vsyncadd [#allocation7], %s3596
          %s3599 = sshll.u32 [#allocation16], 4
          %s3600 = int_to_ptr.vmem [resolvable:$true] %s3599
          %3602 = dma.vmem_to_hbm [thread:$0]  %s3600, 128, %s11, [#allocation7]
        $region108: #{tpu_custom_call.1} parent=63 // pred_fallthru
          _
        // Predicated region
        $region109: #{tpu_custom_call.1} parent=63 // pred_check
          %p3603 = pneg %p278
        $region110: #{tpu_custom_call.1} parent=63 // pred_check_branch
          %3605 = sbr.rel (%p3603) target = $region112
        $region111: #{tpu_custom_call.1} parent=63 // pred_region
          %3606 = dma.done [#allocation7], 128
        $region112: #{tpu_custom_call.1} parent=63 // pred_fallthru
          _
      $region64: #{tpu_custom_call.1} parent=5 // pred_fallthru
        _
      %p3607 = scmp.le.s32.totalorder 2, %s24
      // Predicated region
      $region113: #{tpu_custom_call.1} parent=5 // pred_check
        %p3608 = pneg %p3607
      $region114: #{tpu_custom_call.1} parent=5 // pred_check_branch
        %3610 = sbr.rel (%p3608) target = $region116
      $region115: #{tpu_custom_call.1} parent=5 // pred_region
        %s3611 = ssub.s32 %s24, 2
      $region116: #{tpu_custom_call.1} parent=5 // pred_fallthru
        _
    $region6: #{tpu_custom_call.1} parent=1 // loop_footer
      %s28 = sadd.s32 1, %s24
    $region7: #{tpu_custom_call.1} parent=1 // loop_footer_branch
      %23 = sbr.rel target = $region3
    $region8: #{tpu_custom_call.1} parent=1 // loop_exit
      _
    %3612 = vsyncpa [#allocation6], 1
    %s3613 = scalar_lea.sflag [#allocation6], 1
    %3614 = vsyncpa %s3613, 1
    %3615 = vsyncpa [#allocation9], 1
    %3616 = vsyncpa [#allocation12], 1
    %3617 = vsyncpa [#allocation15], 1
    %3618 = vsyncpa [#allocation7], 1
    %s3619 = scalar_lea.sflag [#allocation7], 1
    %3620 = vsyncpa %s3619, 1

</llo_original>
